<compile_context>
chip_gen: v5e
topology: v5e:2x2
jax: 0.10.0
libtpu: 0.0.40
codegen_flags: <defaults>
</compile_context>

<pallas_src>
import numpy as np
import jax
import jax.numpy as jnp
from jax.experimental import pallas as pl
from jax.experimental.pallas import tpu as pltpu


# --------------------------------------------------------------------------
# Fused Pallas kernel
# --------------------------------------------------------------------------

def _make_fused_kernel(H, W, Cin, Cout):
    Hp, Wp = H // 2, W // 2
    HW = H * W

    def kernel(x_ref, w1_ref, b1_ref, w2p_ref, b2_ref, ws_ref, bs_ref,
               out_ref, xpad_ref, h1pad_ref, col_ref):
        # x_ref   : (1, H, W, Cin)        unpadded NHWC input block
        # w1_ref  : (9*Cin, Cout)         conv1 weights, im2col-ordered
        # w2p_ref : (4, 4, Cout, Cout)    conv2 weights with AvgPool2d folded in
        # ws_ref  : (Cin, Cout)           1x1 shortcut conv weights
        # b*_ref  : (1, Cout)
        # out_ref : (1, Hp*Wp, Cout)
        # xpad_ref: (H+2, W+2, Cin)  VMEM, zero halo
        # h1pad_ref:(H+2, W+2, Cout) VMEM, zero halo
        # col_ref : (H*W, 9*Cin)     VMEM im2col buffer

        f32 = jnp.float32

        # ---- in-kernel zero padding of the input (no host-side pad / HBM pass).
        # Zero only the halo; re-zero each step (multi-core-parallel safe).
        xpad_ref[0:1, :, :] = jnp.zeros((1, W + 2, Cin), f32)
        xpad_ref[H + 1:H + 2, :, :] = jnp.zeros((1, W + 2, Cin), f32)
        xpad_ref[:, 0:1, :] = jnp.zeros((H + 2, 1, Cin), f32)
        xpad_ref[:, W + 1:W + 2, :] = jnp.zeros((H + 2, 1, Cin), f32)
        xpad_ref[1:H + 1, 1:W + 1, :] = x_ref[0]

        h1pad_ref[0:1, :, :] = jnp.zeros((1, W + 2, Cout), f32)
        h1pad_ref[H + 1:H + 2, :, :] = jnp.zeros((1, W + 2, Cout), f32)
        h1pad_ref[:, 0:1, :] = jnp.zeros((H + 2, 1, Cout), f32)
        h1pad_ref[:, W + 1:W + 2, :] = jnp.zeros((H + 2, 1, Cout), f32)

        # ---- conv1 (3x3, pad 1) + ReLU: in-VMEM im2col, then ONE MXU dot
        for t in range(9):
            dy, dx = t // 3, t % 3
            col_ref[:, t * Cin:(t + 1) * Cin] = (
                xpad_ref[dy:dy + H, dx:dx + W, :].reshape(HW, Cin))
        h1 = jnp.maximum(
            jnp.dot(col_ref[...], w1_ref[...],
                    preferred_element_type=jnp.float32) + b1_ref[...], 0.0)
        # h1 never leaves VMEM: write into the interior of the zero-haloed scratch.
        h1pad_ref[1:H + 1, 1:W + 1, :] = h1.reshape(H, W, Cout)

        # ---- conv2 (3x3, pad 1) + AvgPool2d(2) folded into a 4x4 stride-2 conv:
        #      16 strided dot-accumulates straight out of h1pad (no h2 scratch).
        acc = jnp.zeros((Hp * Wp, Cout), jnp.float32)
        for u in range(4):
            for v in range(4):
                patch = h1pad_ref[pl.ds(u, Hp, stride=2),
                                  pl.ds(v, Wp, stride=2), :]        # (Hp,Wp,Cout)
                acc = acc + jnp.dot(patch.reshape(Hp * Wp, Cout), w2p_ref[u, v],
                                    preferred_element_type=jnp.float32)
        res = acc + b2_ref[...]                                      # (Hp*Wp, Cout)

        # ---- shortcut: AvgPool2d(2) as 4 strided taps on the VPU, then the
        #      1x1 conv as ONE MXU dot (x rows/cols are at offset +1 in xpad).
        xs = (xpad_ref[pl.ds(1, Hp, stride=2), pl.ds(1, Wp, stride=2), :] +
              xpad_ref[pl.ds(1, Hp, stride=2), pl.ds(2, Wp, stride=2), :] +
              xpad_ref[pl.ds(2, Hp, stride=2), pl.ds(1, Wp, stride=2), :] +
              xpad_ref[pl.ds(2, Hp, stride=2), pl.ds(2, Wp, stride=2), :]) * 0.25
        sc = jnp.dot(xs.reshape(Hp * Wp, Cin), ws_ref[...],
                     preferred_element_type=jnp.float32) + bs_ref[...]

        out_ref[0] = res + sc

    return kernel


# --------------------------------------------------------------------------
# Wrapper
# --------------------------------------------------------------------------

def optimized_res_disblock_wgan(x_nchw, params):
    N, Cin, H, W = x_nchw.shape
    assert H % 2 == 0 and W % 2 == 0
    Cout = params["w1"].shape[0]
    Hp, Wp = H // 2, W // 2

    x = jnp.transpose(x_nchw, (0, 2, 3, 1)).astype(jnp.float32)       # NHWC, unpadded

    # conv1 weights in im2col order: K index = (dy*3+dx)*Cin + cin
    w1 = jnp.transpose(params["w1"], (2, 3, 1, 0)).astype(jnp.float32)  # (3,3,Cin,Cout)
    w1col = w1.reshape(9 * Cin, Cout)

    # Fold AvgPool2d(2) into conv2: 4x4 stride-2 kernel
    #   w2p[u,v] = 0.25 * sum_{a,b in {0,1}, 0<=u-a<3, 0<=v-b<3} w2[u-a, v-b]
    w2 = jnp.transpose(params["w2"], (2, 3, 1, 0)).astype(jnp.float32)  # (3,3,Cout,Cout)
    rows = []
    for u in range(4):
        row = []
        for v in range(4):
            acc = jnp.zeros((Cout, Cout), jnp.float32)
            for a in (0, 1):
                for b in (0, 1):
                    dy, dx = u - a, v - b
                    if 0 <= dy < 3 and 0 <= dx < 3:
                        acc = acc + w2[dy, dx]
            row.append(0.25 * acc)
        rows.append(jnp.stack(row))
    w2p = jnp.stack(rows)                                              # (4,4,Cout,Cout)

    ws = params["ws"].reshape(Cout, Cin).T.astype(jnp.float32)         # (Cin,Cout)
    b1 = params["b1"].reshape(1, Cout).astype(jnp.float32)
    b2 = params["b2"].reshape(1, Cout).astype(jnp.float32)
    bs = params["bs"].reshape(1, Cout).astype(jnp.float32)

    kernel = _make_fused_kernel(H, W, Cin, Cout)

    out_flat = pl.pallas_call(
        kernel,
        out_shape=jax.ShapeDtypeStruct((N, Hp * Wp, Cout), jnp.float32),
        grid=(N,),
        in_specs=[
            pl.BlockSpec((1, H, W, Cin), lambda n: (n, 0, 0, 0)),
            pl.BlockSpec((9 * Cin, Cout), lambda n: (0, 0)),
            pl.BlockSpec((1, Cout), lambda n: (0, 0)),
            pl.BlockSpec((4, 4, Cout, Cout), lambda n: (0, 0, 0, 0)),
            pl.BlockSpec((1, Cout), lambda n: (0, 0)),
            pl.BlockSpec((Cin, Cout), lambda n: (0, 0)),
            pl.BlockSpec((1, Cout), lambda n: (0, 0)),
        ],
        out_specs=pl.BlockSpec((1, Hp * Wp, Cout), lambda n: (n, 0, 0)),
        scratch_shapes=[
            pltpu.VMEM((H + 2, W + 2, Cin), jnp.float32),    # zero-haloed input
            pltpu.VMEM((H + 2, W + 2, Cout), jnp.float32),   # zero-haloed h1
            pltpu.VMEM((H * W, 9 * Cin), jnp.float32),       # conv1 im2col buffer
        ],
        compiler_params=pltpu.CompilerParams(
            dimension_semantics=("parallel",),
            vmem_limit_bytes=32 * 1024 * 1024),
    )(x, w1col, b1, w2p, b2, ws, bs)

    out = out_flat.reshape(N, Hp, Wp, Cout)
    return jnp.transpose(out, (0, 3, 1, 2))                            # NCHW


# --------------------------------------------------------------------------
# Parameter init (matches the PyTorch module's initialize())
# --------------------------------------------------------------------------

def _xavier_uniform(key, shape, gain):
    fan_in = shape[1] * shape[2] * shape[3]
    fan_out = shape[0] * shape[2] * shape[3]
    bound = gain * np.sqrt(6.0 / (fan_in + fan_out))
    return jax.random.uniform(key, shape, jnp.float32, -bound, bound)


def init_params(key, in_channels, out_channels):
    k1, k2, k3 = jax.random.split(key, 3)
    gain = np.sqrt(2.0)
    w1 = _xavier_uniform(k1, (out_channels, in_channels, 3, 3), gain)
    w2 = _xavier_uniform(k2, (out_channels, out_channels, 3, 3), gain)
    ws = _xavier_uniform(k3, (out_channels, in_channels, 1, 1), 1.0)
    b1 = jnp.zeros((out_channels,), jnp.float32)
    b2 = jnp.zeros((out_channels,), jnp.float32)
    bs = jnp.zeros((out_channels,), jnp.float32)
    return dict(w1=w1, b1=b1, w2=w2, b2=b2, ws=ws, bs=bs)


# --------------------------------------------------------------------------
# Pure-JAX reference (for verification)
# --------------------------------------------------------------------------

def _reference(x, params):
    def conv(t, w, b, pad):
        dn = jax.lax.conv_dimension_numbers(t.shape, w.shape, ("NCHW", "OIHW", "NCHW"))
        y = jax.lax.conv_general_dilated(t, w, (1, 1), ((pad, pad), (pad, pad)),
                                         dimension_numbers=dn,
                                         precision=jax.lax.Precision.HIGHEST)
        return y + b[None, :, None, None]

    def avgpool2(t):
        N, C, H, W = t.shape
        return t.reshape(N, C, H // 2, 2, W // 2, 2).mean(axis=(3, 5))

    h = jnp.maximum(conv(x, params["w1"], params["b1"], 1), 0.0)
    h = conv(h, params["w2"], params["b2"], 1)
    res = avgpool2(h)
    sc = conv(avgpool2(x), params["ws"], params["bs"], 0)
    return res + sc


# --------------------------------------------------------------------------

if __name__ == "__main__":
    key = jax.random.PRNGKey(0)
    kx, kp = jax.random.split(key)

    N, Cin, Cout, H, W = 2, 4, 8, 16, 16
    x = jax.random.normal(kx, (N, Cin, H, W), jnp.float32)
    params = init_params(kp, Cin, Cout)

    out = jax.block_until_ready(optimized_res_disblock_wgan(x, params))
    ref = jax.block_until_ready(_reference(x, params))

    np.testing.assert_allclose(np.asarray(out), np.asarray(ref), rtol=2e-3, atol=2e-3)
    assert out.shape == (N, Cout, H // 2, W // 2)

    print("KERNEL_OK")
</pallas_src>

<mosaic_0001>
module attributes {stable_mosaic.version = 11 : i64} {
  func.func @kernel(%arg0: i32, %arg1: memref<1x16x16x4xf32, #tpu.memory_space<vmem>>, %arg2: memref<36x8xf32, #tpu.memory_space<vmem>>, %arg3: memref<1x8xf32, #tpu.memory_space<vmem>>, %arg4: memref<4x4x8x8xf32, #tpu.memory_space<vmem>>, %arg5: memref<1x8xf32, #tpu.memory_space<vmem>>, %arg6: memref<4x8xf32, #tpu.memory_space<vmem>>, %arg7: memref<1x8xf32, #tpu.memory_space<vmem>>, %arg8: memref<1x64x8xf32, #tpu.memory_space<vmem>>, %arg9: memref<18x18x4xf32, #tpu.memory_space<vmem>>, %arg10: memref<18x18x8xf32, #tpu.memory_space<vmem>>, %arg11: memref<256x36xf32, #tpu.memory_space<vmem>>) attributes {dimension_semantics = [#tpu.dimension_semantics<parallel>], iteration_bounds = array<i64: 2>, scalar_prefetch = 0 : i64, scratch_operands = 3 : i64, tpu.core_type = #tpu.core_type<tc>, window_params = [{transform_indices = @transform_0, window_bounds = array<i64: 1, 16, 16, 4>}, {pipeline_mode = #tpu.pipeline_mode<synchronous>, transform_indices = @transform_1, window_bounds = array<i64: 36, 8>}, {pipeline_mode = #tpu.pipeline_mode<synchronous>, transform_indices = @transform_2, window_bounds = array<i64: 1, 8>}, {pipeline_mode = #tpu.pipeline_mode<synchronous>, transform_indices = @transform_3, window_bounds = array<i64: 4, 4, 8, 8>}, {pipeline_mode = #tpu.pipeline_mode<synchronous>, transform_indices = @transform_4, window_bounds = array<i64: 1, 8>}, {pipeline_mode = #tpu.pipeline_mode<synchronous>, transform_indices = @transform_5, window_bounds = array<i64: 4, 8>}, {pipeline_mode = #tpu.pipeline_mode<synchronous>, transform_indices = @transform_6, window_bounds = array<i64: 1, 8>}, {transform_indices = @transform_7, window_bounds = array<i64: 1, 64, 8>}]} {
    %cst = arith.constant 0.000000e+00 : f32
    %0 = vector.broadcast %cst : f32 to vector<1x18x4xf32>
    %c0 = arith.constant 0 : index
    %c0_0 = arith.constant 0 : index
    %c0_1 = arith.constant 0 : index
    %1 = vector.load %arg9[%c0, %c0_0, %c0_1] : memref<18x18x4xf32, #tpu.memory_space<vmem>>, vector<1x18x4xf32>
    tpu.vector_store %arg9[%c0, %c0_0, %c0_1], %0 {strides = array<i32>} : memref<18x18x4xf32, #tpu.memory_space<vmem>>, vector<1x18x4xf32>,
    %cst_2 = arith.constant 0.000000e+00 : f32
    %2 = vector.broadcast %cst_2 : f32 to vector<1x18x4xf32>
    %c17 = arith.constant 17 : index
    %c0_3 = arith.constant 0 : index
    %c0_4 = arith.constant 0 : index
    %3 = vector.load %arg9[%c17, %c0_3, %c0_4] : memref<18x18x4xf32, #tpu.memory_space<vmem>>, vector<1x18x4xf32>
    tpu.vector_store %arg9[%c17, %c0_3, %c0_4], %2 {strides = array<i32>} : memref<18x18x4xf32, #tpu.memory_space<vmem>>, vector<1x18x4xf32>,
    %cst_5 = arith.constant 0.000000e+00 : f32
    %4 = vector.broadcast %cst_5 : f32 to vector<18x1x4xf32>
    %c0_6 = arith.constant 0 : index
    %c0_7 = arith.constant 0 : index
    %c0_8 = arith.constant 0 : index
    %5 = vector.load %arg9[%c0_6, %c0_7, %c0_8] : memref<18x18x4xf32, #tpu.memory_space<vmem>>, vector<18x1x4xf32>
    tpu.vector_store %arg9[%c0_6, %c0_7, %c0_8], %4 {strides = array<i32>} : memref<18x18x4xf32, #tpu.memory_space<vmem>>, vector<18x1x4xf32>,
    %cst_9 = arith.constant 0.000000e+00 : f32
    %6 = vector.broadcast %cst_9 : f32 to vector<18x1x4xf32>
    %c0_10 = arith.constant 0 : index
    %c17_11 = arith.constant 17 : index
    %c0_12 = arith.constant 0 : index
    %7 = vector.load %arg9[%c0_10, %c17_11, %c0_12] : memref<18x18x4xf32, #tpu.memory_space<vmem>>, vector<18x1x4xf32>
    tpu.vector_store %arg9[%c0_10, %c17_11, %c0_12], %6 {strides = array<i32>} : memref<18x18x4xf32, #tpu.memory_space<vmem>>, vector<18x1x4xf32>,
    %c0_13 = arith.constant 0 : index
    %c0_14 = arith.constant 0 : index
    %c0_15 = arith.constant 0 : index
    %c0_16 = arith.constant 0 : index
    %8 = vector.load %arg1[%c0_13, %c0_14, %c0_15, %c0_16] : memref<1x16x16x4xf32, #tpu.memory_space<vmem>>, vector<1x16x16x4xf32>
    %9 = vector.shape_cast %8 : vector<1x16x16x4xf32> to vector<16x16x4xf32>
    %c1 = arith.constant 1 : index
    %c1_17 = arith.constant 1 : index
    %c0_18 = arith.constant 0 : index
    %10 = vector.load %arg9[%c1, %c1_17, %c0_18] : memref<18x18x4xf32, #tpu.memory_space<vmem>>, vector<16x16x4xf32>
    tpu.vector_store %arg9[%c1, %c1_17, %c0_18], %9 {strides = array<i32>} : memref<18x18x4xf32, #tpu.memory_space<vmem>>, vector<16x16x4xf32>,
    %cst_19 = arith.constant 0.000000e+00 : f32
    %11 = vector.broadcast %cst_19 : f32 to vector<1x18x8xf32>
    %c0_20 = arith.constant 0 : index
    %c0_21 = arith.constant 0 : index
    %c0_22 = arith.constant 0 : index
    %12 = vector.load %arg10[%c0_20, %c0_21, %c0_22] : memref<18x18x8xf32, #tpu.memory_space<vmem>>, vector<1x18x8xf32>
    tpu.vector_store %arg10[%c0_20, %c0_21, %c0_22], %11 {strides = array<i32>} : memref<18x18x8xf32, #tpu.memory_space<vmem>>, vector<1x18x8xf32>,
    %cst_23 = arith.constant 0.000000e+00 : f32
    %13 = vector.broadcast %cst_23 : f32 to vector<1x18x8xf32>
    %c17_24 = arith.constant 17 : index
    %c0_25 = arith.constant 0 : index
    %c0_26 = arith.constant 0 : index
    %14 = vector.load %arg10[%c17_24, %c0_25, %c0_26] : memref<18x18x8xf32, #tpu.memory_space<vmem>>, vector<1x18x8xf32>
    tpu.vector_store %arg10[%c17_24, %c0_25, %c0_26], %13 {strides = array<i32>} : memref<18x18x8xf32, #tpu.memory_space<vmem>>, vector<1x18x8xf32>,
    %cst_27 = arith.constant 0.000000e+00 : f32
    %15 = vector.broadcast %cst_27 : f32 to vector<18x1x8xf32>
    %c0_28 = arith.constant 0 : index
    %c0_29 = arith.constant 0 : index
    %c0_30 = arith.constant 0 : index
    %16 = vector.load %arg10[%c0_28, %c0_29, %c0_30] : memref<18x18x8xf32, #tpu.memory_space<vmem>>, vector<18x1x8xf32>
    tpu.vector_store %arg10[%c0_28, %c0_29, %c0_30], %15 {strides = array<i32>} : memref<18x18x8xf32, #tpu.memory_space<vmem>>, vector<18x1x8xf32>,
    %cst_31 = arith.constant 0.000000e+00 : f32
    %17 = vector.broadcast %cst_31 : f32 to vector<18x1x8xf32>
    %c0_32 = arith.constant 0 : index
    %c17_33 = arith.constant 17 : index
    %c0_34 = arith.constant 0 : index
    %18 = vector.load %arg10[%c0_32, %c17_33, %c0_34] : memref<18x18x8xf32, #tpu.memory_space<vmem>>, vector<18x1x8xf32>
    tpu.vector_store %arg10[%c0_32, %c17_33, %c0_34], %17 {strides = array<i32>} : memref<18x18x8xf32, #tpu.memory_space<vmem>>, vector<18x1x8xf32>,
    %c0_35 = arith.constant 0 : index
    %c0_36 = arith.constant 0 : index
    %c0_37 = arith.constant 0 : index
    %19 = vector.load %arg9[%c0_35, %c0_36, %c0_37] : memref<18x18x4xf32, #tpu.memory_space<vmem>>, vector<16x16x4xf32>
    %20 = vector.shape_cast %19 : vector<16x16x4xf32> to vector<256x4xf32>
    %c0_38 = arith.constant 0 : index
    %c0_39 = arith.constant 0 : index
    %21 = vector.load %arg11[%c0_38, %c0_39] : memref<256x36xf32, #tpu.memory_space<vmem>>, vector<256x4xf32>
    tpu.vector_store %arg11[%c0_38, %c0_39], %20 {strides = array<i32>} : memref<256x36xf32, #tpu.memory_space<vmem>>, vector<256x4xf32>,
    %c0_40 = arith.constant 0 : index
    %c1_41 = arith.constant 1 : index
    %c0_42 = arith.constant 0 : index
    %22 = vector.load %arg9[%c0_40, %c1_41, %c0_42] : memref<18x18x4xf32, #tpu.memory_space<vmem>>, vector<16x16x4xf32>
    %23 = vector.shape_cast %22 : vector<16x16x4xf32> to vector<256x4xf32>
    %c0_43 = arith.constant 0 : index
    %c4 = arith.constant 4 : index
    %24 = vector.load %arg11[%c0_43, %c4] : memref<256x36xf32, #tpu.memory_space<vmem>>, vector<256x4xf32>
    tpu.vector_store %arg11[%c0_43, %c4], %23 {strides = array<i32>} : memref<256x36xf32, #tpu.memory_space<vmem>>, vector<256x4xf32>,
    %c0_44 = arith.constant 0 : index
    %c2 = arith.constant 2 : index
    %c0_45 = arith.constant 0 : index
    %25 = vector.load %arg9[%c0_44, %c2, %c0_45] : memref<18x18x4xf32, #tpu.memory_space<vmem>>, vector<16x16x4xf32>
    %26 = vector.shape_cast %25 : vector<16x16x4xf32> to vector<256x4xf32>
    %c0_46 = arith.constant 0 : index
    %c8 = arith.constant 8 : index
    %27 = vector.load %arg11[%c0_46, %c8] : memref<256x36xf32, #tpu.memory_space<vmem>>, vector<256x4xf32>
    tpu.vector_store %arg11[%c0_46, %c8], %26 {strides = array<i32>} : memref<256x36xf32, #tpu.memory_space<vmem>>, vector<256x4xf32>,
    %c1_47 = arith.constant 1 : index
    %c0_48 = arith.constant 0 : index
    %c0_49 = arith.constant 0 : index
    %28 = vector.load %arg9[%c1_47, %c0_48, %c0_49] : memref<18x18x4xf32, #tpu.memory_space<vmem>>, vector<16x16x4xf32>
    %29 = vector.shape_cast %28 : vector<16x16x4xf32> to vector<256x4xf32>
    %c0_50 = arith.constant 0 : index
    %c12 = arith.constant 12 : index
    %30 = vector.load %arg11[%c0_50, %c12] : memref<256x36xf32, #tpu.memory_space<vmem>>, vector<256x4xf32>
    tpu.vector_store %arg11[%c0_50, %c12], %29 {strides = array<i32>} : memref<256x36xf32, #tpu.memory_space<vmem>>, vector<256x4xf32>,
    %c1_51 = arith.constant 1 : index
    %c1_52 = arith.constant 1 : index
    %c0_53 = arith.constant 0 : index
    %31 = vector.load %arg9[%c1_51, %c1_52, %c0_53] : memref<18x18x4xf32, #tpu.memory_space<vmem>>, vector<16x16x4xf32>
    %32 = vector.shape_cast %31 : vector<16x16x4xf32> to vector<256x4xf32>
    %c0_54 = arith.constant 0 : index
    %c16 = arith.constant 16 : index
    %33 = vector.load %arg11[%c0_54, %c16] : memref<256x36xf32, #tpu.memory_space<vmem>>, vector<256x4xf32>
    tpu.vector_store %arg11[%c0_54, %c16], %32 {strides = array<i32>} : memref<256x36xf32, #tpu.memory_space<vmem>>, vector<256x4xf32>,
    %c1_55 = arith.constant 1 : index
    %c2_56 = arith.constant 2 : index
    %c0_57 = arith.constant 0 : index
    %34 = vector.load %arg9[%c1_55, %c2_56, %c0_57] : memref<18x18x4xf32, #tpu.memory_space<vmem>>, vector<16x16x4xf32>
    %35 = vector.shape_cast %34 : vector<16x16x4xf32> to vector<256x4xf32>
    %c0_58 = arith.constant 0 : index
    %c20 = arith.constant 20 : index
    %36 = vector.load %arg11[%c0_58, %c20] : memref<256x36xf32, #tpu.memory_space<vmem>>, vector<256x4xf32>
    tpu.vector_store %arg11[%c0_58, %c20], %35 {strides = array<i32>} : memref<256x36xf32, #tpu.memory_space<vmem>>, vector<256x4xf32>,
    %c2_59 = arith.constant 2 : index
    %c0_60 = arith.constant 0 : index
    %c0_61 = arith.constant 0 : index
    %37 = vector.load %arg9[%c2_59, %c0_60, %c0_61] : memref<18x18x4xf32, #tpu.memory_space<vmem>>, vector<16x16x4xf32>
    %38 = vector.shape_cast %37 : vector<16x16x4xf32> to vector<256x4xf32>
    %c0_62 = arith.constant 0 : index
    %c24 = arith.constant 24 : index
    %39 = vector.load %arg11[%c0_62, %c24] : memref<256x36xf32, #tpu.memory_space<vmem>>, vector<256x4xf32>
    tpu.vector_store %arg11[%c0_62, %c24], %38 {strides = array<i32>} : memref<256x36xf32, #tpu.memory_space<vmem>>, vector<256x4xf32>,
    %c2_63 = arith.constant 2 : index
    %c1_64 = arith.constant 1 : index
    %c0_65 = arith.constant 0 : index
    %40 = vector.load %arg9[%c2_63, %c1_64, %c0_65] : memref<18x18x4xf32, #tpu.memory_space<vmem>>, vector<16x16x4xf32>
    %41 = vector.shape_cast %40 : vector<16x16x4xf32> to vector<256x4xf32>
    %c0_66 = arith.constant 0 : index
    %c28 = arith.constant 28 : index
    %42 = vector.load %arg11[%c0_66, %c28] : memref<256x36xf32, #tpu.memory_space<vmem>>, vector<256x4xf32>
    tpu.vector_store %arg11[%c0_66, %c28], %41 {strides = array<i32>} : memref<256x36xf32, #tpu.memory_space<vmem>>, vector<256x4xf32>,
    %c2_67 = arith.constant 2 : index
    %c2_68 = arith.constant 2 : index
    %c0_69 = arith.constant 0 : index
    %43 = vector.load %arg9[%c2_67, %c2_68, %c0_69] : memref<18x18x4xf32, #tpu.memory_space<vmem>>, vector<16x16x4xf32>
    %44 = vector.shape_cast %43 : vector<16x16x4xf32> to vector<256x4xf32>
    %c0_70 = arith.constant 0 : index
    %c32 = arith.constant 32 : index
    %45 = vector.load %arg11[%c0_70, %c32] : memref<256x36xf32, #tpu.memory_space<vmem>>, vector<256x4xf32>
    tpu.vector_store %arg11[%c0_70, %c32], %44 {strides = array<i32>} : memref<256x36xf32, #tpu.memory_space<vmem>>, vector<256x4xf32>,
    %c0_71 = arith.constant 0 : index
    %c0_72 = arith.constant 0 : index
    %46 = vector.load %arg11[%c0_71, %c0_72] : memref<256x36xf32, #tpu.memory_space<vmem>>, vector<256x36xf32>
    %c0_73 = arith.constant 0 : index
    %c0_74 = arith.constant 0 : index
    %47 = vector.load %arg2[%c0_73, %c0_74] : memref<36x8xf32, #tpu.memory_space<vmem>>, vector<36x8xf32>
    %cst_75 = arith.constant dense<0.000000e+00> : vector<256x8xf32>
    %48 = tpu.matmul %46, %47, %cst_75 {dimension_numbers = #tpu.dot_dimension_numbers<[1], [0], [0], [1], [0, 0, 1, 1], [], []>} : vector<256x36xf32>, vector<36x8xf32>, vector<256x8xf32> -> vector<256x8xf32>
    %c0_76 = arith.constant 0 : index
    %c0_77 = arith.constant 0 : index
    %49 = vector.load %arg3[%c0_76, %c0_77] : memref<1x8xf32, #tpu.memory_space<vmem>>, vector<1x8xf32>
    %50 = vector.broadcast %49 : vector<1x8xf32> to vector<256x8xf32>
    %51 = arith.addf %48, %50 : vector<256x8xf32>
    %cst_78 = arith.constant 0.000000e+00 : f32
    %52 = vector.broadcast %cst_78 : f32 to vector<256x8xf32>
    %53 = arith.maximumf %51, %52 : vector<256x8xf32>
    %54 = vector.shape_cast %53 : vector<256x8xf32> to vector<16x16x8xf32>
    %c1_79 = arith.constant 1 : index
    %c1_80 = arith.constant 1 : index
    %c0_81 = arith.constant 0 : index
    %55 = vector.load %arg10[%c1_79, %c1_80, %c0_81] : memref<18x18x8xf32, #tpu.memory_space<vmem>>, vector<16x16x8xf32>
    tpu.vector_store %arg10[%c1_79, %c1_80, %c0_81], %54 {strides = array<i32>} : memref<18x18x8xf32, #tpu.memory_space<vmem>>, vector<16x16x8xf32>,
    %cst_82 = arith.constant 0.000000e+00 : f32
    %56 = vector.broadcast %cst_82 : f32 to vector<64x8xf32>
    %c0_83 = arith.constant 0 : index
    %c0_84 = arith.constant 0 : index
    %c0_85 = arith.constant 0 : index
    %57 = tpu.strided_load %arg10[%c0_83, %c0_84, %c0_85] {strides = array<i32: 2, 2, 1>} : memref<18x18x8xf32, #tpu.memory_space<vmem>>, vector<8x8x8xf32>
    %58 = vector.shape_cast %57 : vector<8x8x8xf32> to vector<64x8xf32>
    %c0_86 = arith.constant 0 : index
    %c0_87 = arith.constant 0 : index
    %c0_88 = arith.constant 0 : index
    %c0_89 = arith.constant 0 : index
    %59 = vector.load %arg4[%c0_86, %c0_87, %c0_88, %c0_89] : memref<4x4x8x8xf32, #tpu.memory_space<vmem>>, vector<1x1x8x8xf32>
    %60 = vector.shape_cast %59 : vector<1x1x8x8xf32> to vector<8x8xf32>
    %cst_90 = arith.constant dense<0.000000e+00> : vector<64x8xf32>
    %61 = tpu.matmul %58, %60, %cst_90 {dimension_numbers = #tpu.dot_dimension_numbers<[1], [0], [0], [1], [0, 0, 1, 1], [], []>} : vector<64x8xf32>, vector<8x8xf32>, vector<64x8xf32> -> vector<64x8xf32>
    %62 = arith.addf %56, %61 : vector<64x8xf32>
    %c0_91 = arith.constant 0 : index
    %c1_92 = arith.constant 1 : index
    %c0_93 = arith.constant 0 : index
    %63 = tpu.strided_load %arg10[%c0_91, %c1_92, %c0_93] {strides = array<i32: 2, 2, 1>} : memref<18x18x8xf32, #tpu.memory_space<vmem>>, vector<8x8x8xf32>
    %64 = vector.shape_cast %63 : vector<8x8x8xf32> to vector<64x8xf32>
    %c0_94 = arith.constant 0 : index
    %c1_95 = arith.constant 1 : index
    %c0_96 = arith.constant 0 : index
    %c0_97 = arith.constant 0 : index
    %65 = vector.load %arg4[%c0_94, %c1_95, %c0_96, %c0_97] : memref<4x4x8x8xf32, #tpu.memory_space<vmem>>, vector<1x1x8x8xf32>
    %66 = vector.shape_cast %65 : vector<1x1x8x8xf32> to vector<8x8xf32>
    %cst_98 = arith.constant dense<0.000000e+00> : vector<64x8xf32>
    %67 = tpu.matmul %64, %66, %cst_98 {dimension_numbers = #tpu.dot_dimension_numbers<[1], [0], [0], [1], [0, 0, 1, 1], [], []>} : vector<64x8xf32>, vector<8x8xf32>, vector<64x8xf32> -> vector<64x8xf32>
    %68 = arith.addf %62, %67 : vector<64x8xf32>
    %c0_99 = arith.constant 0 : index
    %c2_100 = arith.constant 2 : index
    %c0_101 = arith.constant 0 : index
    %69 = tpu.strided_load %arg10[%c0_99, %c2_100, %c0_101] {strides = array<i32: 2, 2, 1>} : memref<18x18x8xf32, #tpu.memory_space<vmem>>, vector<8x8x8xf32>
    %70 = vector.shape_cast %69 : vector<8x8x8xf32> to vector<64x8xf32>
    %c0_102 = arith.constant 0 : index
    %c2_103 = arith.constant 2 : index
    %c0_104 = arith.constant 0 : index
    %c0_105 = arith.constant 0 : index
    %71 = vector.load %arg4[%c0_102, %c2_103, %c0_104, %c0_105] : memref<4x4x8x8xf32, #tpu.memory_space<vmem>>, vector<1x1x8x8xf32>
    %72 = vector.shape_cast %71 : vector<1x1x8x8xf32> to vector<8x8xf32>
    %cst_106 = arith.constant dense<0.000000e+00> : vector<64x8xf32>
    %73 = tpu.matmul %70, %72, %cst_106 {dimension_numbers = #tpu.dot_dimension_numbers<[1], [0], [0], [1], [0, 0, 1, 1], [], []>} : vector<64x8xf32>, vector<8x8xf32>, vector<64x8xf32> -> vector<64x8xf32>
    %74 = arith.addf %68, %73 : vector<64x8xf32>
    %c0_107 = arith.constant 0 : index
    %c3 = arith.constant 3 : index
    %c0_108 = arith.constant 0 : index
    %75 = tpu.strided_load %arg10[%c0_107, %c3, %c0_108] {strides = array<i32: 2, 2, 1>} : memref<18x18x8xf32, #tpu.memory_space<vmem>>, vector<8x8x8xf32>
    %76 = vector.shape_cast %75 : vector<8x8x8xf32> to vector<64x8xf32>
    %c0_109 = arith.constant 0 : index
    %c3_110 = arith.constant 3 : index
    %c0_111 = arith.constant 0 : index
    %c0_112 = arith.constant 0 : index
    %77 = vector.load %arg4[%c0_109, %c3_110, %c0_111, %c0_112] : memref<4x4x8x8xf32, #tpu.memory_space<vmem>>, vector<1x1x8x8xf32>
    %78 = vector.shape_cast %77 : vector<1x1x8x8xf32> to vector<8x8xf32>
    %cst_113 = arith.constant dense<0.000000e+00> : vector<64x8xf32>
    %79 = tpu.matmul %76, %78, %cst_113 {dimension_numbers = #tpu.dot_dimension_numbers<[1], [0], [0], [1], [0, 0, 1, 1], [], []>} : vector<64x8xf32>, vector<8x8xf32>, vector<64x8xf32> -> vector<64x8xf32>
    %80 = arith.addf %74, %79 : vector<64x8xf32>
    %c1_114 = arith.constant 1 : index
    %c0_115 = arith.constant 0 : index
    %c0_116 = arith.constant 0 : index
    %81 = tpu.strided_load %arg10[%c1_114, %c0_115, %c0_116] {strides = array<i32: 2, 2, 1>} : memref<18x18x8xf32, #tpu.memory_space<vmem>>, vector<8x8x8xf32>
    %82 = vector.shape_cast %81 : vector<8x8x8xf32> to vector<64x8xf32>
    %c1_117 = arith.constant 1 : index
    %c0_118 = arith.constant 0 : index
    %c0_119 = arith.constant 0 : index
    %c0_120 = arith.constant 0 : index
    %83 = vector.load %arg4[%c1_117, %c0_118, %c0_119, %c0_120] : memref<4x4x8x8xf32, #tpu.memory_space<vmem>>, vector<1x1x8x8xf32>
    %84 = vector.shape_cast %83 : vector<1x1x8x8xf32> to vector<8x8xf32>
    %cst_121 = arith.constant dense<0.000000e+00> : vector<64x8xf32>
    %85 = tpu.matmul %82, %84, %cst_121 {dimension_numbers = #tpu.dot_dimension_numbers<[1], [0], [0], [1], [0, 0, 1, 1], [], []>} : vector<64x8xf32>, vector<8x8xf32>, vector<64x8xf32> -> vector<64x8xf32>
    %86 = arith.addf %80, %85 : vector<64x8xf32>
    %c1_122 = arith.constant 1 : index
    %c1_123 = arith.constant 1 : index
    %c0_124 = arith.constant 0 : index
    %87 = tpu.strided_load %arg10[%c1_122, %c1_123, %c0_124] {strides = array<i32: 2, 2, 1>} : memref<18x18x8xf32, #tpu.memory_space<vmem>>, vector<8x8x8xf32>
    %88 = vector.shape_cast %87 : vector<8x8x8xf32> to vector<64x8xf32>
    %c1_125 = arith.constant 1 : index
    %c1_126 = arith.constant 1 : index
    %c0_127 = arith.constant 0 : index
    %c0_128 = arith.constant 0 : index
    %89 = vector.load %arg4[%c1_125, %c1_126, %c0_127, %c0_128] : memref<4x4x8x8xf32, #tpu.memory_space<vmem>>, vector<1x1x8x8xf32>
    %90 = vector.shape_cast %89 : vector<1x1x8x8xf32> to vector<8x8xf32>
    %cst_129 = arith.constant dense<0.000000e+00> : vector<64x8xf32>
    %91 = tpu.matmul %88, %90, %cst_129 {dimension_numbers = #tpu.dot_dimension_numbers<[1], [0], [0], [1], [0, 0, 1, 1], [], []>} : vector<64x8xf32>, vector<8x8xf32>, vector<64x8xf32> -> vector<64x8xf32>
    %92 = arith.addf %86, %91 : vector<64x8xf32>
    %c1_130 = arith.constant 1 : index
    %c2_131 = arith.constant 2 : index
    %c0_132 = arith.constant 0 : index
    %93 = tpu.strided_load %arg10[%c1_130, %c2_131, %c0_132] {strides = array<i32: 2, 2, 1>} : memref<18x18x8xf32, #tpu.memory_space<vmem>>, vector<8x8x8xf32>
    %94 = vector.shape_cast %93 : vector<8x8x8xf32> to vector<64x8xf32>
    %c1_133 = arith.constant 1 : index
    %c2_134 = arith.constant 2 : index
    %c0_135 = arith.constant 0 : index
    %c0_136 = arith.constant 0 : index
    %95 = vector.load %arg4[%c1_133, %c2_134, %c0_135, %c0_136] : memref<4x4x8x8xf32, #tpu.memory_space<vmem>>, vector<1x1x8x8xf32>
    %96 = vector.shape_cast %95 : vector<1x1x8x8xf32> to vector<8x8xf32>
    %cst_137 = arith.constant dense<0.000000e+00> : vector<64x8xf32>
    %97 = tpu.matmul %94, %96, %cst_137 {dimension_numbers = #tpu.dot_dimension_numbers<[1], [0], [0], [1], [0, 0, 1, 1], [], []>} : vector<64x8xf32>, vector<8x8xf32>, vector<64x8xf32> -> vector<64x8xf32>
    %98 = arith.addf %92, %97 : vector<64x8xf32>
    %c1_138 = arith.constant 1 : index
    %c3_139 = arith.constant 3 : index
    %c0_140 = arith.constant 0 : index
    %99 = tpu.strided_load %arg10[%c1_138, %c3_139, %c0_140] {strides = array<i32: 2, 2, 1>} : memref<18x18x8xf32, #tpu.memory_space<vmem>>, vector<8x8x8xf32>
    %100 = vector.shape_cast %99 : vector<8x8x8xf32> to vector<64x8xf32>
    %c1_141 = arith.constant 1 : index
    %c3_142 = arith.constant 3 : index
    %c0_143 = arith.constant 0 : index
    %c0_144 = arith.constant 0 : index
    %101 = vector.load %arg4[%c1_141, %c3_142, %c0_143, %c0_144] : memref<4x4x8x8xf32, #tpu.memory_space<vmem>>, vector<1x1x8x8xf32>
    %102 = vector.shape_cast %101 : vector<1x1x8x8xf32> to vector<8x8xf32>
    %cst_145 = arith.constant dense<0.000000e+00> : vector<64x8xf32>
    %103 = tpu.matmul %100, %102, %cst_145 {dimension_numbers = #tpu.dot_dimension_numbers<[1], [0], [0], [1], [0, 0, 1, 1], [], []>} : vector<64x8xf32>, vector<8x8xf32>, vector<64x8xf32> -> vector<64x8xf32>
    %104 = arith.addf %98, %103 : vector<64x8xf32>
    %c2_146 = arith.constant 2 : index
    %c0_147 = arith.constant 0 : index
    %c0_148 = arith.constant 0 : index
    %105 = tpu.strided_load %arg10[%c2_146, %c0_147, %c0_148] {strides = array<i32: 2, 2, 1>} : memref<18x18x8xf32, #tpu.memory_space<vmem>>, vector<8x8x8xf32>
    %106 = vector.shape_cast %105 : vector<8x8x8xf32> to vector<64x8xf32>
    %c2_149 = arith.constant 2 : index
    %c0_150 = arith.constant 0 : index
    %c0_151 = arith.constant 0 : index
    %c0_152 = arith.constant 0 : index
    %107 = vector.load %arg4[%c2_149, %c0_150, %c0_151, %c0_152] : memref<4x4x8x8xf32, #tpu.memory_space<vmem>>, vector<1x1x8x8xf32>
    %108 = vector.shape_cast %107 : vector<1x1x8x8xf32> to vector<8x8xf32>
    %cst_153 = arith.constant dense<0.000000e+00> : vector<64x8xf32>
    %109 = tpu.matmul %106, %108, %cst_153 {dimension_numbers = #tpu.dot_dimension_numbers<[1], [0], [0], [1], [0, 0, 1, 1], [], []>} : vector<64x8xf32>, vector<8x8xf32>, vector<64x8xf32> -> vector<64x8xf32>
    %110 = arith.addf %104, %109 : vector<64x8xf32>
    %c2_154 = arith.constant 2 : index
    %c1_155 = arith.constant 1 : index
    %c0_156 = arith.constant 0 : index
    %111 = tpu.strided_load %arg10[%c2_154, %c1_155, %c0_156] {strides = array<i32: 2, 2, 1>} : memref<18x18x8xf32, #tpu.memory_space<vmem>>, vector<8x8x8xf32>
    %112 = vector.shape_cast %111 : vector<8x8x8xf32> to vector<64x8xf32>
    %c2_157 = arith.constant 2 : index
    %c1_158 = arith.constant 1 : index
    %c0_159 = arith.constant 0 : index
    %c0_160 = arith.constant 0 : index
    %113 = vector.load %arg4[%c2_157, %c1_158, %c0_159, %c0_160] : memref<4x4x8x8xf32, #tpu.memory_space<vmem>>, vector<1x1x8x8xf32>
    %114 = vector.shape_cast %113 : vector<1x1x8x8xf32> to vector<8x8xf32>
    %cst_161 = arith.constant dense<0.000000e+00> : vector<64x8xf32>
    %115 = tpu.matmul %112, %114, %cst_161 {dimension_numbers = #tpu.dot_dimension_numbers<[1], [0], [0], [1], [0, 0, 1, 1], [], []>} : vector<64x8xf32>, vector<8x8xf32>, vector<64x8xf32> -> vector<64x8xf32>
    %116 = arith.addf %110, %115 : vector<64x8xf32>
    %c2_162 = arith.constant 2 : index
    %c2_163 = arith.constant 2 : index
    %c0_164 = arith.constant 0 : index
    %117 = tpu.strided_load %arg10[%c2_162, %c2_163, %c0_164] {strides = array<i32: 2, 2, 1>} : memref<18x18x8xf32, #tpu.memory_space<vmem>>, vector<8x8x8xf32>
    %118 = vector.shape_cast %117 : vector<8x8x8xf32> to vector<64x8xf32>
    %c2_165 = arith.constant 2 : index
    %c2_166 = arith.constant 2 : index
    %c0_167 = arith.constant 0 : index
    %c0_168 = arith.constant 0 : index
    %119 = vector.load %arg4[%c2_165, %c2_166, %c0_167, %c0_168] : memref<4x4x8x8xf32, #tpu.memory_space<vmem>>, vector<1x1x8x8xf32>
    %120 = vector.shape_cast %119 : vector<1x1x8x8xf32> to vector<8x8xf32>
    %cst_169 = arith.constant dense<0.000000e+00> : vector<64x8xf32>
    %121 = tpu.matmul %118, %120, %cst_169 {dimension_numbers = #tpu.dot_dimension_numbers<[1], [0], [0], [1], [0, 0, 1, 1], [], []>} : vector<64x8xf32>, vector<8x8xf32>, vector<64x8xf32> -> vector<64x8xf32>
    %122 = arith.addf %116, %121 : vector<64x8xf32>
    %c2_170 = arith.constant 2 : index
    %c3_171 = arith.constant 3 : index
    %c0_172 = arith.constant 0 : index
    %123 = tpu.strided_load %arg10[%c2_170, %c3_171, %c0_172] {strides = array<i32: 2, 2, 1>} : memref<18x18x8xf32, #tpu.memory_space<vmem>>, vector<8x8x8xf32>
    %124 = vector.shape_cast %123 : vector<8x8x8xf32> to vector<64x8xf32>
    %c2_173 = arith.constant 2 : index
    %c3_174 = arith.constant 3 : index
    %c0_175 = arith.constant 0 : index
    %c0_176 = arith.constant 0 : index
    %125 = vector.load %arg4[%c2_173, %c3_174, %c0_175, %c0_176] : memref<4x4x8x8xf32, #tpu.memory_space<vmem>>, vector<1x1x8x8xf32>
    %126 = vector.shape_cast %125 : vector<1x1x8x8xf32> to vector<8x8xf32>
    %cst_177 = arith.constant dense<0.000000e+00> : vector<64x8xf32>
    %127 = tpu.matmul %124, %126, %cst_177 {dimension_numbers = #tpu.dot_dimension_numbers<[1], [0], [0], [1], [0, 0, 1, 1], [], []>} : vector<64x8xf32>, vector<8x8xf32>, vector<64x8xf32> -> vector<64x8xf32>
    %128 = arith.addf %122, %127 : vector<64x8xf32>
    %c3_178 = arith.constant 3 : index
    %c0_179 = arith.constant 0 : index
    %c0_180 = arith.constant 0 : index
    %129 = tpu.strided_load %arg10[%c3_178, %c0_179, %c0_180] {strides = array<i32: 2, 2, 1>} : memref<18x18x8xf32, #tpu.memory_space<vmem>>, vector<8x8x8xf32>
    %130 = vector.shape_cast %129 : vector<8x8x8xf32> to vector<64x8xf32>
    %c3_181 = arith.constant 3 : index
    %c0_182 = arith.constant 0 : index
    %c0_183 = arith.constant 0 : index
    %c0_184 = arith.constant 0 : index
    %131 = vector.load %arg4[%c3_181, %c0_182, %c0_183, %c0_184] : memref<4x4x8x8xf32, #tpu.memory_space<vmem>>, vector<1x1x8x8xf32>
    %132 = vector.shape_cast %131 : vector<1x1x8x8xf32> to vector<8x8xf32>
    %cst_185 = arith.constant dense<0.000000e+00> : vector<64x8xf32>
    %133 = tpu.matmul %130, %132, %cst_185 {dimension_numbers = #tpu.dot_dimension_numbers<[1], [0], [0], [1], [0, 0, 1, 1], [], []>} : vector<64x8xf32>, vector<8x8xf32>, vector<64x8xf32> -> vector<64x8xf32>
    %134 = arith.addf %128, %133 : vector<64x8xf32>
    %c3_186 = arith.constant 3 : index
    %c1_187 = arith.constant 1 : index
    %c0_188 = arith.constant 0 : index
    %135 = tpu.strided_load %arg10[%c3_186, %c1_187, %c0_188] {strides = array<i32: 2, 2, 1>} : memref<18x18x8xf32, #tpu.memory_space<vmem>>, vector<8x8x8xf32>
    %136 = vector.shape_cast %135 : vector<8x8x8xf32> to vector<64x8xf32>
    %c3_189 = arith.constant 3 : index
    %c1_190 = arith.constant 1 : index
    %c0_191 = arith.constant 0 : index
    %c0_192 = arith.constant 0 : index
    %137 = vector.load %arg4[%c3_189, %c1_190, %c0_191, %c0_192] : memref<4x4x8x8xf32, #tpu.memory_space<vmem>>, vector<1x1x8x8xf32>
    %138 = vector.shape_cast %137 : vector<1x1x8x8xf32> to vector<8x8xf32>
    %cst_193 = arith.constant dense<0.000000e+00> : vector<64x8xf32>
    %139 = tpu.matmul %136, %138, %cst_193 {dimension_numbers = #tpu.dot_dimension_numbers<[1], [0], [0], [1], [0, 0, 1, 1], [], []>} : vector<64x8xf32>, vector<8x8xf32>, vector<64x8xf32> -> vector<64x8xf32>
    %140 = arith.addf %134, %139 : vector<64x8xf32>
    %c3_194 = arith.constant 3 : index
    %c2_195 = arith.constant 2 : index
    %c0_196 = arith.constant 0 : index
    %141 = tpu.strided_load %arg10[%c3_194, %c2_195, %c0_196] {strides = array<i32: 2, 2, 1>} : memref<18x18x8xf32, #tpu.memory_space<vmem>>, vector<8x8x8xf32>
    %142 = vector.shape_cast %141 : vector<8x8x8xf32> to vector<64x8xf32>
    %c3_197 = arith.constant 3 : index
    %c2_198 = arith.constant 2 : index
    %c0_199 = arith.constant 0 : index
    %c0_200 = arith.constant 0 : index
    %143 = vector.load %arg4[%c3_197, %c2_198, %c0_199, %c0_200] : memref<4x4x8x8xf32, #tpu.memory_space<vmem>>, vector<1x1x8x8xf32>
    %144 = vector.shape_cast %143 : vector<1x1x8x8xf32> to vector<8x8xf32>
    %cst_201 = arith.constant dense<0.000000e+00> : vector<64x8xf32>
    %145 = tpu.matmul %142, %144, %cst_201 {dimension_numbers = #tpu.dot_dimension_numbers<[1], [0], [0], [1], [0, 0, 1, 1], [], []>} : vector<64x8xf32>, vector<8x8xf32>, vector<64x8xf32> -> vector<64x8xf32>
    %146 = arith.addf %140, %145 : vector<64x8xf32>
    %c3_202 = arith.constant 3 : index
    %c3_203 = arith.constant 3 : index
    %c0_204 = arith.constant 0 : index
    %147 = tpu.strided_load %arg10[%c3_202, %c3_203, %c0_204] {strides = array<i32: 2, 2, 1>} : memref<18x18x8xf32, #tpu.memory_space<vmem>>, vector<8x8x8xf32>
    %148 = vector.shape_cast %147 : vector<8x8x8xf32> to vector<64x8xf32>
    %c3_205 = arith.constant 3 : index
    %c3_206 = arith.constant 3 : index
    %c0_207 = arith.constant 0 : index
    %c0_208 = arith.constant 0 : index
    %149 = vector.load %arg4[%c3_205, %c3_206, %c0_207, %c0_208] : memref<4x4x8x8xf32, #tpu.memory_space<vmem>>, vector<1x1x8x8xf32>
    %150 = vector.shape_cast %149 : vector<1x1x8x8xf32> to vector<8x8xf32>
    %cst_209 = arith.constant dense<0.000000e+00> : vector<64x8xf32>
    %151 = tpu.matmul %148, %150, %cst_209 {dimension_numbers = #tpu.dot_dimension_numbers<[1], [0], [0], [1], [0, 0, 1, 1], [], []>} : vector<64x8xf32>, vector<8x8xf32>, vector<64x8xf32> -> vector<64x8xf32>
    %152 = arith.addf %146, %151 : vector<64x8xf32>
    %c0_210 = arith.constant 0 : index
    %c0_211 = arith.constant 0 : index
    %153 = vector.load %arg5[%c0_210, %c0_211] : memref<1x8xf32, #tpu.memory_space<vmem>>, vector<1x8xf32>
    %154 = vector.broadcast %153 : vector<1x8xf32> to vector<64x8xf32>
    %155 = arith.addf %152, %154 : vector<64x8xf32>
    %c1_212 = arith.constant 1 : index
    %c1_213 = arith.constant 1 : index
    %c0_214 = arith.constant 0 : index
    %156 = tpu.strided_load %arg9[%c1_212, %c1_213, %c0_214] {strides = array<i32: 2, 2, 1>} : memref<18x18x4xf32, #tpu.memory_space<vmem>>, vector<8x8x4xf32>
    %c1_215 = arith.constant 1 : index
    %c2_216 = arith.constant 2 : index
    %c0_217 = arith.constant 0 : index
    %157 = tpu.strided_load %arg9[%c1_215, %c2_216, %c0_217] {strides = array<i32: 2, 2, 1>} : memref<18x18x4xf32, #tpu.memory_space<vmem>>, vector<8x8x4xf32>
    %158 = arith.addf %156, %157 : vector<8x8x4xf32>
    %c2_218 = arith.constant 2 : index
    %c1_219 = arith.constant 1 : index
    %c0_220 = arith.constant 0 : index
    %159 = tpu.strided_load %arg9[%c2_218, %c1_219, %c0_220] {strides = array<i32: 2, 2, 1>} : memref<18x18x4xf32, #tpu.memory_space<vmem>>, vector<8x8x4xf32>
    %160 = arith.addf %158, %159 : vector<8x8x4xf32>
    %c2_221 = arith.constant 2 : index
    %c2_222 = arith.constant 2 : index
    %c0_223 = arith.constant 0 : index
    %161 = tpu.strided_load %arg9[%c2_221, %c2_222, %c0_223] {strides = array<i32: 2, 2, 1>} : memref<18x18x4xf32, #tpu.memory_space<vmem>>, vector<8x8x4xf32>
    %162 = arith.addf %160, %161 : vector<8x8x4xf32>
    %cst_224 = arith.constant 2.500000e-01 : f32
    %163 = vector.broadcast %cst_224 : f32 to vector<8x8x4xf32>
    %164 = arith.mulf %162, %163 : vector<8x8x4xf32>
    %165 = vector.shape_cast %164 : vector<8x8x4xf32> to vector<64x4xf32>
    %c0_225 = arith.constant 0 : index
    %c0_226 = arith.constant 0 : index
    %166 = vector.load %arg6[%c0_225, %c0_226] : memref<4x8xf32, #tpu.memory_space<vmem>>, vector<4x8xf32>
    %cst_227 = arith.constant dense<0.000000e+00> : vector<64x8xf32>
    %167 = tpu.matmul %165, %166, %cst_227 {dimension_numbers = #tpu.dot_dimension_numbers<[1], [0], [0], [1], [0, 0, 1, 1], [], []>} : vector<64x4xf32>, vector<4x8xf32>, vector<64x8xf32> -> vector<64x8xf32>
    %c0_228 = arith.constant 0 : index
    %c0_229 = arith.constant 0 : index
    %168 = vector.load %arg7[%c0_228, %c0_229] : memref<1x8xf32, #tpu.memory_space<vmem>>, vector<1x8xf32>
    %169 = vector.broadcast %168 : vector<1x8xf32> to vector<64x8xf32>
    %170 = arith.addf %167, %169 : vector<64x8xf32>
    %171 = arith.addf %155, %170 : vector<64x8xf32>
    %c0_230 = arith.constant 0 : index
    %c0_231 = arith.constant 0 : index
    %c0_232 = arith.constant 0 : index
    %172 = vector.load %arg8[%c0_230, %c0_231, %c0_232] : memref<1x64x8xf32, #tpu.memory_space<vmem>>, vector<1x64x8xf32>
    %173 = vector.shape_cast %172 : vector<1x64x8xf32> to vector<64x8xf32>
    %174 = vector.shape_cast %171 : vector<64x8xf32> to vector<1x64x8xf32>
    tpu.vector_store %arg8[%c0_230, %c0_231, %c0_232], %174 {strides = array<i32>} : memref<1x64x8xf32, #tpu.memory_space<vmem>>, vector<1x64x8xf32>,
    return
  }
  func.func @transform_0(%arg0: i32) -> (i32, i32, i32, i32) {
    %c0_i32 = arith.constant 0 : i32
    %c0_i32_0 = arith.constant 0 : i32
    %c0_i32_1 = arith.constant 0 : i32
    %c0_i32_2 = arith.constant 0 : i32
    return %arg0, %c0_i32, %c0_i32_0, %c0_i32_1 : i32, i32, i32, i32
  }
  func.func @transform_1(%arg0: i32) -> (i32, i32) {
    %c0_i32 = arith.constant 0 : i32
    %c0_i32_0 = arith.constant 0 : i32
    %c0_i32_1 = arith.constant 0 : i32
    return %c0_i32, %c0_i32_0 : i32, i32
  }
  func.func @transform_2(%arg0: i32) -> (i32, i32) {
    %c0_i32 = arith.constant 0 : i32
    %c0_i32_0 = arith.constant 0 : i32
    %c0_i32_1 = arith.constant 0 : i32
    return %c0_i32, %c0_i32_0 : i32, i32
  }
  func.func @transform_3(%arg0: i32) -> (i32, i32, i32, i32) {
    %c0_i32 = arith.constant 0 : i32
    %c0_i32_0 = arith.constant 0 : i32
    %c0_i32_1 = arith.constant 0 : i32
    %c0_i32_2 = arith.constant 0 : i32
    %c0_i32_3 = arith.constant 0 : i32
    return %c0_i32, %c0_i32_0, %c0_i32_1, %c0_i32_2 : i32, i32, i32, i32
  }
  func.func @transform_4(%arg0: i32) -> (i32, i32) {
    %c0_i32 = arith.constant 0 : i32
    %c0_i32_0 = arith.constant 0 : i32
    %c0_i32_1 = arith.constant 0 : i32
    return %c0_i32, %c0_i32_0 : i32, i32
  }
  func.func @transform_5(%arg0: i32) -> (i32, i32) {
    %c0_i32 = arith.constant 0 : i32
    %c0_i32_0 = arith.constant 0 : i32
    %c0_i32_1 = arith.constant 0 : i32
    return %c0_i32, %c0_i32_0 : i32, i32
  }
  func.func @transform_6(%arg0: i32) -> (i32, i32) {
    %c0_i32 = arith.constant 0 : i32
    %c0_i32_0 = arith.constant 0 : i32
    %c0_i32_1 = arith.constant 0 : i32
    return %c0_i32, %c0_i32_0 : i32, i32
  }
  func.func @transform_7(%arg0: i32) -> (i32, i32, i32) {
    %c0_i32 = arith.constant 0 : i32
    %c0_i32_0 = arith.constant 0 : i32
    %c0_i32_1 = arith.constant 0 : i32
    return %arg0, %c0_i32, %c0_i32_0 : i32, i32, i32
  }
}

</mosaic_0001>

<llo_original>
// kernel: tpu_custom_call.1
$region0: #{tpu_custom_call.1}
  #allocation0 [shape = 'u32[]', space=smem, size = 0x4, offset = 0x4, fixed_abs, tag = 'smem constant byte address 0x4 - core index']
  #allocation1 [shape = 'u32[72,128]{1,0:T(1,128)}', space=vmem, size = 0x9000, scoped, tag = 'internal scratch']
  #allocation2 [shape = 'f32[18,18,4]{2,1,0:T(8,128)}', space=vmem, size = 0x36000, scoped, tag = 'scratch operand']
  #allocation3 [shape = 'f32[18,18,8]{2,1,0:T(8,128)}', space=vmem, size = 0x36000, scoped, tag = 'scratch operand']
  #allocation4 [shape = 'f32[256,36]{1,0:T(8,128)}', space=vmem, size = 0x20000, scoped, tag = 'scratch operand']
  %s0 = inlined_call_operand.vmem [shape: f32[2,16,16,4], index: 0, kind: input, shape index: {}]
  %s1 = inlined_call_operand.vmem [shape: f32[36,8], index: 1, kind: input, shape index: {}]
  %s2 = inlined_call_operand.vmem [shape: f32[1,8], index: 2, kind: input, shape index: {}]
  %s3 = inlined_call_operand.vmem [shape: f32[4,4,8,8], index: 3, kind: input, shape index: {}]
  %s4 = inlined_call_operand.vmem [shape: f32[1,8], index: 4, kind: input, shape index: {}]
  %s5 = inlined_call_operand.vmem [shape: f32[4,8], index: 5, kind: input, shape index: {}]
  %s6 = inlined_call_operand.vmem [shape: f32[1,8], index: 6, kind: input, shape index: {}]
  %s7 = inlined_call_operand.vmem [shape: f32[2,64,8], index: 7, kind: output, shape index: {}]
  %s8 = sld [smem:[#allocation0]]
  $region61: #{tpu_custom_call.1} parent=0
    _
  %s10 = ssub.s32 1, %s8
  %s11 = scalar_select 0, %s10, %s8
  loop: start=0, step=1, limit=4
  $region2: #{tpu_custom_call.1} parent=0 // loop_pre_header
    _
  $region3: #{tpu_custom_call.1} parent=0 // loop_header
    %s13 = sphi 0, %s17
    %p14 = scmp.ge.s32.totalorder %s13, 4
    %s23 = sphi 0, %s25
    %s26 = sphi 0, %s23
    %s27 = sphi 0, %s26
    %s43 = sphi 0, %s27
    %s47 = sphi 0, %s47
    %s49 = sphi 0, %s47
    %s50 = sphi 0, %s49
    %s64 = sphi 0, %s50
    %s68 = sphi 0, %s68
    %s70 = sphi 0, %s68
    %s71 = sphi 0, %s70
    %s85 = sphi 0, %s71
    %s89 = sphi 0, %s89
    %s91 = sphi 0, %s89
    %s92 = sphi 0, %s91
    %s106 = sphi 0, %s92
    %s110 = sphi 0, %s110
    %s112 = sphi 0, %s110
    %s113 = sphi 0, %s112
    %s127 = sphi 0, %s113
    %s131 = sphi 0, %s131
    %s133 = sphi 0, %s131
    %s134 = sphi 0, %s133
    %s148 = sphi 0, %s134
    %s152 = sphi 0, %s152
    %s154 = sphi 0, %s152
    %s155 = sphi 0, %s154
    %s169 = sphi 0, %s155
    %s175 = sphi 0, %s177
    %s178 = sphi 0, %s175
    %s179 = sphi 0, %s178
    %s195 = sphi 0, %s179
  $region4: #{tpu_custom_call.1} parent=0 // loop_header_branch
    %16 = sbr.rel (%p14) target = $region8
  $region5: #{tpu_custom_call.1} parent=0 // loop_body
    %s18 = ssub.s32 %s13, 1
    %s19 = ssub.s32 %s13, 2
    %s20 = sadd.s32 %s13, 1
    %s21 = ssub.s32 %s13, %s20
    %p22 = scmp.eq.s32.totalorder %s21, 0
    %s24 = sadd.s32 %s23, 1
    %s25 = scalar_select %p22, %s23, %s24
    %p28 = pneg %p22
    %p29 = scmp.eq.s32.totalorder %s13, 1
    %p30 = por %p28, %p29
    %p31 = scmp.ne.s32.totalorder %s23, %s26
    %p32 = scmp.eq.s32.totalorder %s13, 0
    %p33 = por %p31, %p32
    %p34 = scmp.ne.s32.totalorder %s23, %s26
    %p35 = scmp.eq.s32.totalorder %s18, 1
    %p36 = por %p34, %p35
    %p37 = scmp.ne.s32.totalorder %s26, %s27
    %p38 = scmp.eq.s32.totalorder %s18, 0
    %p39 = por %p37, %p38
    %p40 = scmp.ne.s32.totalorder %s26, %s27
    %p41 = scmp.eq.s32.totalorder %s19, 1
    %p42 = por %p40, %p41
    %p44 = scmp.ne.s32.totalorder %s27, %s43
    %p45 = scmp.eq.s32.totalorder %s19, 0
    %p46 = por %p44, %p45
    %s48 = sadd.s32 %s47, 1
    %p51 = scmp.eq.s32.totalorder %s13, 1
    %p52 = scmp.ne.s32.totalorder %s47, %s49
    %p53 = scmp.eq.s32.totalorder %s13, 0
    %p54 = por %p52, %p53
    %p55 = scmp.ne.s32.totalorder %s47, %s49
    %p56 = scmp.eq.s32.totalorder %s18, 1
    %p57 = por %p55, %p56
    %p58 = scmp.ne.s32.totalorder %s49, %s50
    %p59 = scmp.eq.s32.totalorder %s18, 0
    %p60 = por %p58, %p59
    %p61 = scmp.ne.s32.totalorder %s49, %s50
    %p62 = scmp.eq.s32.totalorder %s19, 1
    %p63 = por %p61, %p62
    %p65 = scmp.ne.s32.totalorder %s50, %s64
    %p66 = scmp.eq.s32.totalorder %s19, 0
    %p67 = por %p65, %p66
    %s69 = sadd.s32 %s68, 1
    %p72 = scmp.eq.s32.totalorder %s13, 1
    %p73 = scmp.ne.s32.totalorder %s68, %s70
    %p74 = scmp.eq.s32.totalorder %s13, 0
    %p75 = por %p73, %p74
    %p76 = scmp.ne.s32.totalorder %s68, %s70
    %p77 = scmp.eq.s32.totalorder %s18, 1
    %p78 = por %p76, %p77
    %p79 = scmp.ne.s32.totalorder %s70, %s71
    %p80 = scmp.eq.s32.totalorder %s18, 0
    %p81 = por %p79, %p80
    %p82 = scmp.ne.s32.totalorder %s70, %s71
    %p83 = scmp.eq.s32.totalorder %s19, 1
    %p84 = por %p82, %p83
    %p86 = scmp.ne.s32.totalorder %s71, %s85
    %p87 = scmp.eq.s32.totalorder %s19, 0
    %p88 = por %p86, %p87
    %s90 = sadd.s32 %s89, 1
    %p93 = scmp.eq.s32.totalorder %s13, 1
    %p94 = scmp.ne.s32.totalorder %s89, %s91
    %p95 = scmp.eq.s32.totalorder %s13, 0
    %p96 = por %p94, %p95
    %p97 = scmp.ne.s32.totalorder %s89, %s91
    %p98 = scmp.eq.s32.totalorder %s18, 1
    %p99 = por %p97, %p98
    %p100 = scmp.ne.s32.totalorder %s91, %s92
    %p101 = scmp.eq.s32.totalorder %s18, 0
    %p102 = por %p100, %p101
    %p103 = scmp.ne.s32.totalorder %s91, %s92
    %p104 = scmp.eq.s32.totalorder %s19, 1
    %p105 = por %p103, %p104
    %p107 = scmp.ne.s32.totalorder %s92, %s106
    %p108 = scmp.eq.s32.totalorder %s19, 0
    %p109 = por %p107, %p108
    %s111 = sadd.s32 %s110, 1
    %p114 = scmp.eq.s32.totalorder %s13, 1
    %p115 = scmp.ne.s32.totalorder %s110, %s112
    %p116 = scmp.eq.s32.totalorder %s13, 0
    %p117 = por %p115, %p116
    %p118 = scmp.ne.s32.totalorder %s110, %s112
    %p119 = scmp.eq.s32.totalorder %s18, 1
    %p120 = por %p118, %p119
    %p121 = scmp.ne.s32.totalorder %s112, %s113
    %p122 = scmp.eq.s32.totalorder %s18, 0
    %p123 = por %p121, %p122
    %p124 = scmp.ne.s32.totalorder %s112, %s113
    %p125 = scmp.eq.s32.totalorder %s19, 1
    %p126 = por %p124, %p125
    %p128 = scmp.ne.s32.totalorder %s113, %s127
    %p129 = scmp.eq.s32.totalorder %s19, 0
    %p130 = por %p128, %p129
    %s132 = sadd.s32 %s131, 1
    %p135 = scmp.eq.s32.totalorder %s13, 1
    %p136 = scmp.ne.s32.totalorder %s131, %s133
    %p137 = scmp.eq.s32.totalorder %s13, 0
    %p138 = por %p136, %p137
    %p139 = scmp.ne.s32.totalorder %s131, %s133
    %p140 = scmp.eq.s32.totalorder %s18, 1
    %p141 = por %p139, %p140
    %p142 = scmp.ne.s32.totalorder %s133, %s134
    %p143 = scmp.eq.s32.totalorder %s18, 0
    %p144 = por %p142, %p143
    %p145 = scmp.ne.s32.totalorder %s133, %s134
    %p146 = scmp.eq.s32.totalorder %s19, 1
    %p147 = por %p145, %p146
    %p149 = scmp.ne.s32.totalorder %s134, %s148
    %p150 = scmp.eq.s32.totalorder %s19, 0
    %p151 = por %p149, %p150
    %s153 = sadd.s32 %s152, 1
    %p156 = scmp.eq.s32.totalorder %s13, 1
    %p157 = scmp.ne.s32.totalorder %s152, %s154
    %p158 = scmp.eq.s32.totalorder %s13, 0
    %p159 = por %p157, %p158
    %p160 = scmp.ne.s32.totalorder %s152, %s154
    %p161 = scmp.eq.s32.totalorder %s18, 1
    %p162 = por %p160, %p161
    %p163 = scmp.ne.s32.totalorder %s154, %s155
    %p164 = scmp.eq.s32.totalorder %s18, 0
    %p165 = por %p163, %p164
    %p166 = scmp.ne.s32.totalorder %s154, %s155
    %p167 = scmp.eq.s32.totalorder %s19, 1
    %p168 = por %p166, %p167
    %p170 = scmp.ne.s32.totalorder %s155, %s169
    %p171 = scmp.eq.s32.totalorder %s19, 0
    %p172 = por %p170, %p171
    %s173 = ssub.s32 %s13, %s20
    %p174 = scmp.eq.s32.totalorder %s173, 0
    %s176 = sadd.s32 %s175, 1
    %s177 = scalar_select %p174, %s175, %s176
    %p180 = pneg %p174
    %p181 = scmp.eq.s32.totalorder %s13, 1
    %p182 = por %p180, %p181
    %p183 = scmp.ne.s32.totalorder %s175, %s178
    %p184 = scmp.eq.s32.totalorder %s13, 0
    %p185 = por %p183, %p184
    %p186 = scmp.ne.s32.totalorder %s175, %s178
    %p187 = scmp.eq.s32.totalorder %s18, 1
    %p188 = por %p186, %p187
    %p189 = scmp.ne.s32.totalorder %s178, %s179
    %p190 = scmp.eq.s32.totalorder %s18, 0
    %p191 = por %p189, %p190
    %p192 = scmp.ne.s32.totalorder %s178, %s179
    %p193 = scmp.eq.s32.totalorder %s19, 1
    %p194 = por %p192, %p193
    %p196 = scmp.ne.s32.totalorder %s179, %s195
    %p197 = scmp.eq.s32.totalorder %s19, 0
    %p198 = por %p196, %p197
    %p199 = scmp.le.s32.totalorder 1, %s13
    %p200 = scmp.lt.s32.totalorder %s13, 3
    %p201 = pnand %p199, %p200
    %p202 = pneg %p201
    // Predicated region
    $region9: #{tpu_custom_call.1} parent=5 // pred_check
      _
    $region10: #{tpu_custom_call.1} parent=5 // pred_check_branch
      %204 = sbr.rel (%p201) target = $region12
    $region11: #{tpu_custom_call.1} parent=5 // pred_region
      %s205 = ssub.s32 %s13, 1
      // Predicated region
      $region13: #{tpu_custom_call.1} parent=11 // pred_check
        %p206 = pneg %p60
      $region14: #{tpu_custom_call.1} parent=11 // pred_check_branch
        %208 = sbr.rel (%p206) target = $region16
      $region15: #{tpu_custom_call.1} parent=11 // pred_region
        _
      $region16: #{tpu_custom_call.1} parent=11 // pred_fallthru
        _
      // Predicated region
      $region17: #{tpu_custom_call.1} parent=11 // pred_check
        %p209 = pneg %p81
      $region18: #{tpu_custom_call.1} parent=11 // pred_check_branch
        %211 = sbr.rel (%p209) target = $region20
      $region19: #{tpu_custom_call.1} parent=11 // pred_region
        _
      $region20: #{tpu_custom_call.1} parent=11 // pred_fallthru
        _
      // Predicated region
      $region21: #{tpu_custom_call.1} parent=11 // pred_check
        %p212 = pneg %p102
      $region22: #{tpu_custom_call.1} parent=11 // pred_check_branch
        %214 = sbr.rel (%p212) target = $region24
      $region23: #{tpu_custom_call.1} parent=11 // pred_region
        _
      $region24: #{tpu_custom_call.1} parent=11 // pred_fallthru
        _
      // Predicated region
      $region25: #{tpu_custom_call.1} parent=11 // pred_check
        %p215 = pneg %p123
      $region26: #{tpu_custom_call.1} parent=11 // pred_check_branch
        %217 = sbr.rel (%p215) target = $region28
      $region27: #{tpu_custom_call.1} parent=11 // pred_region
        _
      $region28: #{tpu_custom_call.1} parent=11 // pred_fallthru
        _
      // Predicated region
      $region29: #{tpu_custom_call.1} parent=11 // pred_check
        %p218 = pneg %p144
      $region30: #{tpu_custom_call.1} parent=11 // pred_check_branch
        %220 = sbr.rel (%p218) target = $region32
      $region31: #{tpu_custom_call.1} parent=11 // pred_region
        _
      $region32: #{tpu_custom_call.1} parent=11 // pred_fallthru
        _
      // Predicated region
      $region33: #{tpu_custom_call.1} parent=11 // pred_check
        %p221 = pneg %p165
      $region34: #{tpu_custom_call.1} parent=11 // pred_check_branch
        %223 = sbr.rel (%p221) target = $region36
      $region35: #{tpu_custom_call.1} parent=11 // pred_region
        _
      $region36: #{tpu_custom_call.1} parent=11 // pred_fallthru
        _
    $region12: #{tpu_custom_call.1} parent=5 // pred_fallthru
      _
    %p224 = scmp.lt.s32.totalorder %s13, 2
    // Predicated region
    $region37: #{tpu_custom_call.1} parent=5 // pred_check
      %p225 = pneg %p224
    $region38: #{tpu_custom_call.1} parent=5 // pred_check_branch
      %227 = sbr.rel (%p225) target = $region40
    $region39: #{tpu_custom_call.1} parent=5 // pred_region
      // Predicated region
      $region41: #{tpu_custom_call.1} parent=39 // pred_check
        %p228 = pneg %p33
      $region42: #{tpu_custom_call.1} parent=39 // pred_check_branch
        %230 = sbr.rel (%p228) target = $region44
      $region43: #{tpu_custom_call.1} parent=39 // pred_region
        %p231 = scmp.lt.s32.totalorder %s13, 1
        %s232 = scalar_select %p231, %s13, 1
        %s233 = smul.addr %s232, 32
        %s234 = smul.addr %s233, 8
        %s235 = scalar_lea.vmem %s0, %s234
      $region44: #{tpu_custom_call.1} parent=39 // pred_fallthru
        _
    $region40: #{tpu_custom_call.1} parent=5 // pred_fallthru
      _
    %p236 = scmp.le.s32.totalorder 1, %s13
    %p237 = scmp.lt.s32.totalorder %s13, 3
    %p238 = pnand %p236, %p237
    %p239 = pneg %p238
    // Predicated region
    $region45: #{tpu_custom_call.1} parent=5 // pred_check
      _
    $region46: #{tpu_custom_call.1} parent=5 // pred_check_branch
      %241 = sbr.rel (%p238) target = $region48
    $region47: #{tpu_custom_call.1} parent=5 // pred_region
      %s242 = ssub.s32 %s13, 1
      %p243 = scmp.lt.s32.totalorder %s18, 1
      %s244 = scalar_select %p243, %s18, 1
      %s245 = smul.addr %s244, 32
      %s246 = smul.addr %s245, 8
      %s247 = scalar_lea.vmem %s0, %s246
      %p248 = pneg %p39
      %p249 = pneg %p36
      %p250 = pneg %p60
      %p251 = pneg %p57
      %p252 = pneg %p81
      %p253 = pneg %p78
      %p254 = pneg %p102
      %p255 = pneg %p99
      %p256 = pneg %p123
      %p257 = pneg %p120
      %p258 = pneg %p144
      %p259 = pneg %p141
      %p260 = pneg %p165
      %p261 = pneg %p162
      %p262 = pneg %p191
      %p263 = pneg %p188
      %p264 = scmp.lt.s32.totalorder %s18, 1
      %s265 = scalar_select %p264, %s18, 1
      %s266 = smul.addr %s265, 8
      %s267 = smul.addr %s266, 8
      %s268 = scalar_lea.vmem %s7, %s267
      %p269 = scmp.lt.s32.totalorder %s18, 1
      %s270 = scalar_select %p269, %s18, 1
      %s271 = smul.addr %s270, 32
      %s272 = smul.addr %s271, 8
      %s273 = scalar_lea.vmem %s0, %s272
      %p274 = scmp.lt.s32.totalorder %s18, 1
      %s275 = scalar_select %p274, %s18, 1
      %s276 = smul.addr %s275, 8
      %s277 = smul.addr %s276, 8
      %s278 = scalar_lea.vmem %s7, %s277
      %vm279 = vcmask 31744
      %280 = vst.msk [vmem:[#allocation2] sm:$0xff] %vm279, 0.0
      %281 = vst.msk [vmem:[#allocation2 + $0x8] sm:$0xff] %vm279, 0.0
      %vm282 = vcmask 25600
      %283 = vst.msk [vmem:[#allocation2 + $0x10] sm:$0x3] %vm282, 0.0
      %s284 = scalar_lea.vmem [#allocation2], 408
      %285 = vst.msk [vmem:[%s284] sm:$0xff] %vm279, 0.0
      %286 = vst.msk [vmem:[%s284 + $0x8] sm:$0xff] %vm279, 0.0
      %287 = vst.msk [vmem:[%s284 + $0x10] sm:$0x3] %vm282, 0.0
      %vm288 = vcmask 24576
      %289 = vst.msk [vmem:[#allocation2] sm:$0x1] %vm288, 0.0
      %290 = vst.msk [vmem:[#allocation2 + $0x18] sm:$0x1] %vm288, 0.0
      %291 = vst.msk [vmem:[#allocation2 + $0x30] sm:$0x1] %vm288, 0.0
      %292 = vst.msk [vmem:[#allocation2 + $0x48] sm:$0x1] %vm288, 0.0
      %293 = vst.msk [vmem:[#allocation2 + $0x60] sm:$0x1] %vm288, 0.0
      %294 = vst.msk [vmem:[#allocation2 + $0x78] sm:$0x1] %vm288, 0.0
      %295 = vst.msk [vmem:[#allocation2 + $0x90] sm:$0x1] %vm288, 0.0
      %296 = vst.msk [vmem:[#allocation2 + $0xa8] sm:$0x1] %vm288, 0.0
      %297 = vst.msk [vmem:[#allocation2 + $0xc0] sm:$0x1] %vm288, 0.0
      %298 = vst.msk [vmem:[#allocation2 + $0xd8] sm:$0x1] %vm288, 0.0
      %299 = vst.msk [vmem:[#allocation2 + $0xf0] sm:$0x1] %vm288, 0.0
      %300 = vst.msk [vmem:[#allocation2 + $0x108] sm:$0x1] %vm288, 0.0
      %301 = vst.msk [vmem:[#allocation2 + $0x120] sm:$0x1] %vm288, 0.0
      %302 = vst.msk [vmem:[#allocation2 + $0x138] sm:$0x1] %vm288, 0.0
      %303 = vst.msk [vmem:[#allocation2 + $0x150] sm:$0x1] %vm288, 0.0
      %304 = vst.msk [vmem:[#allocation2 + $0x168] sm:$0x1] %vm288, 0.0
      %305 = vst.msk [vmem:[#allocation2 + $0x180] sm:$0x1] %vm288, 0.0
      %306 = vst.msk [vmem:[#allocation2 + $0x198] sm:$0x1] %vm288, 0.0
      %307 = vst.msk [vmem:[#allocation2 + $0x11] sm:$0x1] %vm288, 0.0
      %308 = vst.msk [vmem:[#allocation2 + $0x29] sm:$0x1] %vm288, 0.0
      %309 = vst.msk [vmem:[#allocation2 + $0x41] sm:$0x1] %vm288, 0.0
      %310 = vst.msk [vmem:[#allocation2 + $0x59] sm:$0x1] %vm288, 0.0
      %311 = vst.msk [vmem:[#allocation2 + $0x71] sm:$0x1] %vm288, 0.0
      %312 = vst.msk [vmem:[#allocation2 + $0x89] sm:$0x1] %vm288, 0.0
      %313 = vst.msk [vmem:[#allocation2 + $0xa1] sm:$0x1] %vm288, 0.0
      %314 = vst.msk [vmem:[#allocation2 + $0xb9] sm:$0x1] %vm288, 0.0
      %315 = vst.msk [vmem:[#allocation2 + $0xd1] sm:$0x1] %vm288, 0.0
      %316 = vst.msk [vmem:[#allocation2 + $0xe9] sm:$0x1] %vm288, 0.0
      %317 = vst.msk [vmem:[#allocation2 + $0x101] sm:$0x1] %vm288, 0.0
      %318 = vst.msk [vmem:[#allocation2 + $0x119] sm:$0x1] %vm288, 0.0
      %319 = vst.msk [vmem:[#allocation2 + $0x131] sm:$0x1] %vm288, 0.0
      %320 = vst.msk [vmem:[#allocation2 + $0x149] sm:$0x1] %vm288, 0.0
      %321 = vst.msk [vmem:[#allocation2 + $0x161] sm:$0x1] %vm288, 0.0
      %322 = vst.msk [vmem:[#allocation2 + $0x179] sm:$0x1] %vm288, 0.0
      %323 = vst.msk [vmem:[#allocation2 + $0x191] sm:$0x1] %vm288, 0.0
      %324 = vst.msk [vmem:[#allocation2 + $0x1a9] sm:$0x1] %vm288, 0.0
      %v325 = vld [vmem:[%s273] sm:$0xff]
      %v326 = vld [vmem:[%s273 + $0x8] sm:$0xff]
      %v327 = vld [vmem:[%s273 + $0x10] sm:$0xff]
      %v328 = vld [vmem:[%s273 + $0x18] sm:$0xff]
      %v329 = vld [vmem:[%s273 + $0x20] sm:$0xff]
      %v330 = vld [vmem:[%s273 + $0x28] sm:$0xff]
      %v331 = vld [vmem:[%s273 + $0x30] sm:$0xff]
      %v332 = vld [vmem:[%s273 + $0x38] sm:$0xff]
      %v333 = vld [vmem:[%s273 + $0x40] sm:$0xff]
      %v334 = vld [vmem:[%s273 + $0x48] sm:$0xff]
      %v335 = vld [vmem:[%s273 + $0x50] sm:$0xff]
      %v336 = vld [vmem:[%s273 + $0x58] sm:$0xff]
      %v337 = vld [vmem:[%s273 + $0x60] sm:$0xff]
      %v338 = vld [vmem:[%s273 + $0x68] sm:$0xff]
      %v339 = vld [vmem:[%s273 + $0x70] sm:$0xff]
      %v340 = vld [vmem:[%s273 + $0x78] sm:$0xff]
      %v341 = vld [vmem:[%s273 + $0x80] sm:$0xff]
      %v342 = vld [vmem:[%s273 + $0x88] sm:$0xff]
      %v343 = vld [vmem:[%s273 + $0x90] sm:$0xff]
      %v344 = vld [vmem:[%s273 + $0x98] sm:$0xff]
      %v345 = vld [vmem:[%s273 + $0xa0] sm:$0xff]
      %v346 = vld [vmem:[%s273 + $0xa8] sm:$0xff]
      %v347 = vld [vmem:[%s273 + $0xb0] sm:$0xff]
      %v348 = vld [vmem:[%s273 + $0xb8] sm:$0xff]
      %v349 = vld [vmem:[%s273 + $0xc0] sm:$0xff]
      %v350 = vld [vmem:[%s273 + $0xc8] sm:$0xff]
      %v351 = vld [vmem:[%s273 + $0xd0] sm:$0xff]
      %v352 = vld [vmem:[%s273 + $0xd8] sm:$0xff]
      %v353 = vld [vmem:[%s273 + $0xe0] sm:$0xff]
      %v354 = vld [vmem:[%s273 + $0xe8] sm:$0xff]
      %v355 = vld [vmem:[%s273 + $0xf0] sm:$0xff]
      %v356 = vld [vmem:[%s273 + $0xf8] sm:$0xff]
      %s357 = scalar_lea.vmem [#allocation2], 24
      %358 = vst.msk [vmem:[%s357 + $0x1] sm:$0xff] %vm279, %v325
      %359 = vst.msk [vmem:[%s357 + $0x9] sm:$0xff] %vm279, %v326
      %360 = vst.msk [vmem:[%s357 + $0x19] sm:$0xff] %vm279, %v327
      %361 = vst.msk [vmem:[%s357 + $0x21] sm:$0xff] %vm279, %v328
      %362 = vst.msk [vmem:[%s357 + $0x31] sm:$0xff] %vm279, %v329
      %363 = vst.msk [vmem:[%s357 + $0x39] sm:$0xff] %vm279, %v330
      %364 = vst.msk [vmem:[%s357 + $0x49] sm:$0xff] %vm279, %v331
      %365 = vst.msk [vmem:[%s357 + $0x51] sm:$0xff] %vm279, %v332
      %366 = vst.msk [vmem:[%s357 + $0x61] sm:$0xff] %vm279, %v333
      %367 = vst.msk [vmem:[%s357 + $0x69] sm:$0xff] %vm279, %v334
      %368 = vst.msk [vmem:[%s357 + $0x79] sm:$0xff] %vm279, %v335
      %369 = vst.msk [vmem:[%s357 + $0x81] sm:$0xff] %vm279, %v336
      %370 = vst.msk [vmem:[%s357 + $0x91] sm:$0xff] %vm279, %v337
      %371 = vst.msk [vmem:[%s357 + $0x99] sm:$0xff] %vm279, %v338
      %372 = vst.msk [vmem:[%s357 + $0xa9] sm:$0xff] %vm279, %v339
      %373 = vst.msk [vmem:[%s357 + $0xb1] sm:$0xff] %vm279, %v340
      %374 = vst.msk [vmem:[%s357 + $0xc1] sm:$0xff] %vm279, %v341
      %375 = vst.msk [vmem:[%s357 + $0xc9] sm:$0xff] %vm279, %v342
      %376 = vst.msk [vmem:[%s357 + $0xd9] sm:$0xff] %vm279, %v343
      %377 = vst.msk [vmem:[%s357 + $0xe1] sm:$0xff] %vm279, %v344
      %378 = vst.msk [vmem:[%s357 + $0xf1] sm:$0xff] %vm279, %v345
      %379 = vst.msk [vmem:[%s357 + $0xf9] sm:$0xff] %vm279, %v346
      %380 = vst.msk [vmem:[%s357 + $0x109] sm:$0xff] %vm279, %v347
      %381 = vst.msk [vmem:[%s357 + $0x111] sm:$0xff] %vm279, %v348
      %382 = vst.msk [vmem:[%s357 + $0x121] sm:$0xff] %vm279, %v349
      %383 = vst.msk [vmem:[%s357 + $0x129] sm:$0xff] %vm279, %v350
      %384 = vst.msk [vmem:[%s357 + $0x139] sm:$0xff] %vm279, %v351
      %385 = vst.msk [vmem:[%s357 + $0x141] sm:$0xff] %vm279, %v352
      %386 = vst.msk [vmem:[%s357 + $0x151] sm:$0xff] %vm279, %v353
      %387 = vst.msk [vmem:[%s357 + $0x159] sm:$0xff] %vm279, %v354
      %388 = vst.msk [vmem:[%s357 + $0x169] sm:$0xff] %vm279, %v355
      %389 = vst.msk [vmem:[%s357 + $0x171] sm:$0xff] %vm279, %v356
      %vm390 = vcmask 64512
      %391 = vst.msk [vmem:[#allocation3] sm:$0xff] %vm390, 0.0
      %392 = vst.msk [vmem:[#allocation3 + $0x8] sm:$0xff] %vm390, 0.0
      %vm393 = vcmask 58368
      %394 = vst.msk [vmem:[#allocation3 + $0x10] sm:$0x3] %vm393, 0.0
      %s395 = scalar_lea.vmem [#allocation3], 408
      %396 = vst.msk [vmem:[%s395] sm:$0xff] %vm390, 0.0
      %397 = vst.msk [vmem:[%s395 + $0x8] sm:$0xff] %vm390, 0.0
      %398 = vst.msk [vmem:[%s395 + $0x10] sm:$0x3] %vm393, 0.0
      %vm399 = vcmask 57344
      %400 = vst.msk [vmem:[#allocation3] sm:$0x1] %vm399, 0.0
      %401 = vst.msk [vmem:[#allocation3 + $0x18] sm:$0x1] %vm399, 0.0
      %402 = vst.msk [vmem:[#allocation3 + $0x30] sm:$0x1] %vm399, 0.0
      %403 = vst.msk [vmem:[#allocation3 + $0x48] sm:$0x1] %vm399, 0.0
      %404 = vst.msk [vmem:[#allocation3 + $0x60] sm:$0x1] %vm399, 0.0
      %405 = vst.msk [vmem:[#allocation3 + $0x78] sm:$0x1] %vm399, 0.0
      %406 = vst.msk [vmem:[#allocation3 + $0x90] sm:$0x1] %vm399, 0.0
      %407 = vst.msk [vmem:[#allocation3 + $0xa8] sm:$0x1] %vm399, 0.0
      %408 = vst.msk [vmem:[#allocation3 + $0xc0] sm:$0x1] %vm399, 0.0
      %409 = vst.msk [vmem:[#allocation3 + $0xd8] sm:$0x1] %vm399, 0.0
      %410 = vst.msk [vmem:[#allocation3 + $0xf0] sm:$0x1] %vm399, 0.0
      %411 = vst.msk [vmem:[#allocation3 + $0x108] sm:$0x1] %vm399, 0.0
      %412 = vst.msk [vmem:[#allocation3 + $0x120] sm:$0x1] %vm399, 0.0
      %413 = vst.msk [vmem:[#allocation3 + $0x138] sm:$0x1] %vm399, 0.0
      %414 = vst.msk [vmem:[#allocation3 + $0x150] sm:$0x1] %vm399, 0.0
      %415 = vst.msk [vmem:[#allocation3 + $0x168] sm:$0x1] %vm399, 0.0
      %416 = vst.msk [vmem:[#allocation3 + $0x180] sm:$0x1] %vm399, 0.0
      %417 = vst.msk [vmem:[#allocation3 + $0x198] sm:$0x1] %vm399, 0.0
      %418 = vst.msk [vmem:[#allocation3 + $0x11] sm:$0x1] %vm399, 0.0
      %419 = vst.msk [vmem:[#allocation3 + $0x29] sm:$0x1] %vm399, 0.0
      %420 = vst.msk [vmem:[#allocation3 + $0x41] sm:$0x1] %vm399, 0.0
      %421 = vst.msk [vmem:[#allocation3 + $0x59] sm:$0x1] %vm399, 0.0
      %422 = vst.msk [vmem:[#allocation3 + $0x71] sm:$0x1] %vm399, 0.0
      %423 = vst.msk [vmem:[#allocation3 + $0x89] sm:$0x1] %vm399, 0.0
      %424 = vst.msk [vmem:[#allocation3 + $0xa1] sm:$0x1] %vm399, 0.0
      %425 = vst.msk [vmem:[#allocation3 + $0xb9] sm:$0x1] %vm399, 0.0
      %426 = vst.msk [vmem:[#allocation3 + $0xd1] sm:$0x1] %vm399, 0.0
      %427 = vst.msk [vmem:[#allocation3 + $0xe9] sm:$0x1] %vm399, 0.0
      %428 = vst.msk [vmem:[#allocation3 + $0x101] sm:$0x1] %vm399, 0.0
      %429 = vst.msk [vmem:[#allocation3 + $0x119] sm:$0x1] %vm399, 0.0
      %430 = vst.msk [vmem:[#allocation3 + $0x131] sm:$0x1] %vm399, 0.0
      %431 = vst.msk [vmem:[#allocation3 + $0x149] sm:$0x1] %vm399, 0.0
      %432 = vst.msk [vmem:[#allocation3 + $0x161] sm:$0x1] %vm399, 0.0
      %433 = vst.msk [vmem:[#allocation3 + $0x179] sm:$0x1] %vm399, 0.0
      %434 = vst.msk [vmem:[#allocation3 + $0x191] sm:$0x1] %vm399, 0.0
      %435 = vst.msk [vmem:[#allocation3 + $0x1a9] sm:$0x1] %vm399, 0.0
      %v436 = vld [vmem:[#allocation2] sm:$0xff]
      %v437 = vld [vmem:[#allocation2 + $0x8] sm:$0xff]
      %v438 = vld [vmem:[#allocation2 + $0x18] sm:$0xff]
      %v439 = vld [vmem:[#allocation2 + $0x20] sm:$0xff]
      %v440 = vld [vmem:[#allocation2 + $0x30] sm:$0xff]
      %v441 = vld [vmem:[#allocation2 + $0x38] sm:$0xff]
      %v442 = vld [vmem:[#allocation2 + $0x48] sm:$0xff]
      %v443 = vld [vmem:[#allocation2 + $0x50] sm:$0xff]
      %v444 = vld [vmem:[#allocation2 + $0x60] sm:$0xff]
      %v445 = vld [vmem:[#allocation2 + $0x68] sm:$0xff]
      %v446 = vld [vmem:[#allocation2 + $0x78] sm:$0xff]
      %v447 = vld [vmem:[#allocation2 + $0x80] sm:$0xff]
      %v448 = vld [vmem:[#allocation2 + $0x90] sm:$0xff]
      %v449 = vld [vmem:[#allocation2 + $0x98] sm:$0xff]
      %v450 = vld [vmem:[#allocation2 + $0xa8] sm:$0xff]
      %v451 = vld [vmem:[#allocation2 + $0xb0] sm:$0xff]
      %v452 = vld [vmem:[#allocation2 + $0xc0] sm:$0xff]
      %v453 = vld [vmem:[#allocation2 + $0xc8] sm:$0xff]
      %v454 = vld [vmem:[#allocation2 + $0xd8] sm:$0xff]
      %v455 = vld [vmem:[#allocation2 + $0xe0] sm:$0xff]
      %v456 = vld [vmem:[#allocation2 + $0xf0] sm:$0xff]
      %v457 = vld [vmem:[#allocation2 + $0xf8] sm:$0xff]
      %v458 = vld [vmem:[#allocation2 + $0x108] sm:$0xff]
      %v459 = vld [vmem:[#allocation2 + $0x110] sm:$0xff]
      %v460 = vld [vmem:[#allocation2 + $0x120] sm:$0xff]
      %v461 = vld [vmem:[#allocation2 + $0x128] sm:$0xff]
      %v462 = vld [vmem:[#allocation2 + $0x138] sm:$0xff]
      %v463 = vld [vmem:[#allocation2 + $0x140] sm:$0xff]
      %v464 = vld [vmem:[#allocation2 + $0x150] sm:$0xff]
      %v465 = vld [vmem:[#allocation2 + $0x158] sm:$0xff]
      %v466 = vld [vmem:[#allocation2 + $0x168] sm:$0xff]
      %v467 = vld [vmem:[#allocation2 + $0x170] sm:$0xff]
      %468 = vst.msk [vmem:[#allocation4] sm:$0xff] %vm279, %v436
      %469 = vst.msk [vmem:[#allocation4 + $0x8] sm:$0xff] %vm279, %v437
      %470 = vst.msk [vmem:[#allocation4 + $0x10] sm:$0xff] %vm279, %v438
      %471 = vst.msk [vmem:[#allocation4 + $0x18] sm:$0xff] %vm279, %v439
      %472 = vst.msk [vmem:[#allocation4 + $0x20] sm:$0xff] %vm279, %v440
      %473 = vst.msk [vmem:[#allocation4 + $0x28] sm:$0xff] %vm279, %v441
      %474 = vst.msk [vmem:[#allocation4 + $0x30] sm:$0xff] %vm279, %v442
      %475 = vst.msk [vmem:[#allocation4 + $0x38] sm:$0xff] %vm279, %v443
      %476 = vst.msk [vmem:[#allocation4 + $0x40] sm:$0xff] %vm279, %v444
      %477 = vst.msk [vmem:[#allocation4 + $0x48] sm:$0xff] %vm279, %v445
      %478 = vst.msk [vmem:[#allocation4 + $0x50] sm:$0xff] %vm279, %v446
      %479 = vst.msk [vmem:[#allocation4 + $0x58] sm:$0xff] %vm279, %v447
      %480 = vst.msk [vmem:[#allocation4 + $0x60] sm:$0xff] %vm279, %v448
      %481 = vst.msk [vmem:[#allocation4 + $0x68] sm:$0xff] %vm279, %v449
      %482 = vst.msk [vmem:[#allocation4 + $0x70] sm:$0xff] %vm279, %v450
      %483 = vst.msk [vmem:[#allocation4 + $0x78] sm:$0xff] %vm279, %v451
      %484 = vst.msk [vmem:[#allocation4 + $0x80] sm:$0xff] %vm279, %v452
      %485 = vst.msk [vmem:[#allocation4 + $0x88] sm:$0xff] %vm279, %v453
      %486 = vst.msk [vmem:[#allocation4 + $0x90] sm:$0xff] %vm279, %v454
      %487 = vst.msk [vmem:[#allocation4 + $0x98] sm:$0xff] %vm279, %v455
      %488 = vst.msk [vmem:[#allocation4 + $0xa0] sm:$0xff] %vm279, %v456
      %489 = vst.msk [vmem:[#allocation4 + $0xa8] sm:$0xff] %vm279, %v457
      %490 = vst.msk [vmem:[#allocation4 + $0xb0] sm:$0xff] %vm279, %v458
      %491 = vst.msk [vmem:[#allocation4 + $0xb8] sm:$0xff] %vm279, %v459
      %492 = vst.msk [vmem:[#allocation4 + $0xc0] sm:$0xff] %vm279, %v460
      %493 = vst.msk [vmem:[#allocation4 + $0xc8] sm:$0xff] %vm279, %v461
      %494 = vst.msk [vmem:[#allocation4 + $0xd0] sm:$0xff] %vm279, %v462
      %495 = vst.msk [vmem:[#allocation4 + $0xd8] sm:$0xff] %vm279, %v463
      %496 = vst.msk [vmem:[#allocation4 + $0xe0] sm:$0xff] %vm279, %v464
      %497 = vst.msk [vmem:[#allocation4 + $0xe8] sm:$0xff] %vm279, %v465
      %498 = vst.msk [vmem:[#allocation4 + $0xf0] sm:$0xff] %vm279, %v466
      %499 = vst.msk [vmem:[#allocation4 + $0xf8] sm:$0xff] %vm279, %v467
      %v500 = vld [vmem:[#allocation2 + $0x1] sm:$0xff]
      %v501 = vld [vmem:[#allocation2 + $0x9] sm:$0xff]
      %v502 = vld [vmem:[#allocation2 + $0x19] sm:$0xff]
      %v503 = vld [vmem:[#allocation2 + $0x21] sm:$0xff]
      %v504 = vld [vmem:[#allocation2 + $0x31] sm:$0xff]
      %v505 = vld [vmem:[#allocation2 + $0x39] sm:$0xff]
      %v506 = vld [vmem:[#allocation2 + $0x49] sm:$0xff]
      %v507 = vld [vmem:[#allocation2 + $0x51] sm:$0xff]
      %v508 = vld [vmem:[#allocation2 + $0x61] sm:$0xff]
      %v509 = vld [vmem:[#allocation2 + $0x69] sm:$0xff]
      %v510 = vld [vmem:[#allocation2 + $0x79] sm:$0xff]
      %v511 = vld [vmem:[#allocation2 + $0x81] sm:$0xff]
      %v512 = vld [vmem:[#allocation2 + $0x91] sm:$0xff]
      %v513 = vld [vmem:[#allocation2 + $0x99] sm:$0xff]
      %v514 = vld [vmem:[#allocation2 + $0xa9] sm:$0xff]
      %v515 = vld [vmem:[#allocation2 + $0xb1] sm:$0xff]
      %v516 = vld [vmem:[#allocation2 + $0xc1] sm:$0xff]
      %v517 = vld [vmem:[#allocation2 + $0xc9] sm:$0xff]
      %v518 = vld [vmem:[#allocation2 + $0xd9] sm:$0xff]
      %v519 = vld [vmem:[#allocation2 + $0xe1] sm:$0xff]
      %v520 = vld [vmem:[#allocation2 + $0xf1] sm:$0xff]
      %v521 = vld [vmem:[#allocation2 + $0xf9] sm:$0xff]
      %v522 = vld [vmem:[#allocation2 + $0x109] sm:$0xff]
      %v523 = vld [vmem:[#allocation2 + $0x111] sm:$0xff]
      %v524 = vld [vmem:[#allocation2 + $0x121] sm:$0xff]
      %v525 = vld [vmem:[#allocation2 + $0x129] sm:$0xff]
      %v526 = vld [vmem:[#allocation2 + $0x139] sm:$0xff]
      %v527 = vld [vmem:[#allocation2 + $0x141] sm:$0xff]
      %v528 = vld [vmem:[#allocation2 + $0x151] sm:$0xff]
      %v529 = vld [vmem:[#allocation2 + $0x159] sm:$0xff]
      %v530 = vld [vmem:[#allocation2 + $0x169] sm:$0xff]
      %v531 = vld [vmem:[#allocation2 + $0x171] sm:$0xff]
      %564 = vrot.lane.b32.xlu0 %v500, 4
      %v565 = vpop.permute.xlu0 %564
      %566 = vrot.lane.b32.xlu0 %v501, 4
      %v567 = vpop.permute.xlu0 %566
      %568 = vrot.lane.b32.xlu0 %v502, 4
      %v569 = vpop.permute.xlu0 %568
      %570 = vrot.lane.b32.xlu0 %v503, 4
      %v571 = vpop.permute.xlu0 %570
      %572 = vrot.lane.b32.xlu0 %v504, 4
      %v573 = vpop.permute.xlu0 %572
      %574 = vrot.lane.b32.xlu0 %v505, 4
      %v575 = vpop.permute.xlu0 %574
      %576 = vrot.lane.b32.xlu0 %v506, 4
      %v577 = vpop.permute.xlu0 %576
      %578 = vrot.lane.b32.xlu0 %v507, 4
      %v579 = vpop.permute.xlu0 %578
      %580 = vrot.lane.b32.xlu0 %v508, 4
      %v581 = vpop.permute.xlu0 %580
      %582 = vrot.lane.b32.xlu0 %v509, 4
      %v583 = vpop.permute.xlu0 %582
      %584 = vrot.lane.b32.xlu0 %v510, 4
      %v585 = vpop.permute.xlu0 %584
      %586 = vrot.lane.b32.xlu0 %v511, 4
      %v587 = vpop.permute.xlu0 %586
      %588 = vrot.lane.b32.xlu0 %v512, 4
      %v589 = vpop.permute.xlu0 %588
      %590 = vrot.lane.b32.xlu0 %v513, 4
      %v591 = vpop.permute.xlu0 %590
      %592 = vrot.lane.b32.xlu0 %v514, 4
      %v593 = vpop.permute.xlu0 %592
      %594 = vrot.lane.b32.xlu0 %v515, 4
      %v595 = vpop.permute.xlu0 %594
      %596 = vrot.lane.b32.xlu0 %v516, 4
      %v597 = vpop.permute.xlu0 %596
      %598 = vrot.lane.b32.xlu0 %v517, 4
      %v599 = vpop.permute.xlu0 %598
      %600 = vrot.lane.b32.xlu0 %v518, 4
      %v601 = vpop.permute.xlu0 %600
      %602 = vrot.lane.b32.xlu0 %v519, 4
      %v603 = vpop.permute.xlu0 %602
      %604 = vrot.lane.b32.xlu0 %v520, 4
      %v605 = vpop.permute.xlu0 %604
      %606 = vrot.lane.b32.xlu0 %v521, 4
      %v607 = vpop.permute.xlu0 %606
      %608 = vrot.lane.b32.xlu0 %v522, 4
      %v609 = vpop.permute.xlu0 %608
      %610 = vrot.lane.b32.xlu0 %v523, 4
      %v611 = vpop.permute.xlu0 %610
      %612 = vrot.lane.b32.xlu0 %v524, 4
      %v613 = vpop.permute.xlu0 %612
      %614 = vrot.lane.b32.xlu0 %v525, 4
      %v615 = vpop.permute.xlu0 %614
      %616 = vrot.lane.b32.xlu0 %v526, 4
      %v617 = vpop.permute.xlu0 %616
      %618 = vrot.lane.b32.xlu0 %v527, 4
      %v619 = vpop.permute.xlu0 %618
      %620 = vrot.lane.b32.xlu0 %v528, 4
      %v621 = vpop.permute.xlu0 %620
      %622 = vrot.lane.b32.xlu0 %v529, 4
      %v623 = vpop.permute.xlu0 %622
      %624 = vrot.lane.b32.xlu0 %v530, 4
      %v625 = vpop.permute.xlu0 %624
      %626 = vrot.lane.b32.xlu0 %v531, 4
      %v627 = vpop.permute.xlu0 %626
      %vm660 = vcmask 64544
      %661 = vst.msk [vmem:[#allocation4] sm:$0xff] %vm660, %v565
      %662 = vst.msk [vmem:[#allocation4 + $0x8] sm:$0xff] %vm660, %v567
      %663 = vst.msk [vmem:[#allocation4 + $0x10] sm:$0xff] %vm660, %v569
      %664 = vst.msk [vmem:[#allocation4 + $0x18] sm:$0xff] %vm660, %v571
      %665 = vst.msk [vmem:[#allocation4 + $0x20] sm:$0xff] %vm660, %v573
      %666 = vst.msk [vmem:[#allocation4 + $0x28] sm:$0xff] %vm660, %v575
      %667 = vst.msk [vmem:[#allocation4 + $0x30] sm:$0xff] %vm660, %v577
      %668 = vst.msk [vmem:[#allocation4 + $0x38] sm:$0xff] %vm660, %v579
      %669 = vst.msk [vmem:[#allocation4 + $0x40] sm:$0xff] %vm660, %v581
      %670 = vst.msk [vmem:[#allocation4 + $0x48] sm:$0xff] %vm660, %v583
      %671 = vst.msk [vmem:[#allocation4 + $0x50] sm:$0xff] %vm660, %v585
      %672 = vst.msk [vmem:[#allocation4 + $0x58] sm:$0xff] %vm660, %v587
      %673 = vst.msk [vmem:[#allocation4 + $0x60] sm:$0xff] %vm660, %v589
      %674 = vst.msk [vmem:[#allocation4 + $0x68] sm:$0xff] %vm660, %v591
      %675 = vst.msk [vmem:[#allocation4 + $0x70] sm:$0xff] %vm660, %v593
      %676 = vst.msk [vmem:[#allocation4 + $0x78] sm:$0xff] %vm660, %v595
      %677 = vst.msk [vmem:[#allocation4 + $0x80] sm:$0xff] %vm660, %v597
      %678 = vst.msk [vmem:[#allocation4 + $0x88] sm:$0xff] %vm660, %v599
      %679 = vst.msk [vmem:[#allocation4 + $0x90] sm:$0xff] %vm660, %v601
      %680 = vst.msk [vmem:[#allocation4 + $0x98] sm:$0xff] %vm660, %v603
      %681 = vst.msk [vmem:[#allocation4 + $0xa0] sm:$0xff] %vm660, %v605
      %682 = vst.msk [vmem:[#allocation4 + $0xa8] sm:$0xff] %vm660, %v607
      %683 = vst.msk [vmem:[#allocation4 + $0xb0] sm:$0xff] %vm660, %v609
      %684 = vst.msk [vmem:[#allocation4 + $0xb8] sm:$0xff] %vm660, %v611
      %685 = vst.msk [vmem:[#allocation4 + $0xc0] sm:$0xff] %vm660, %v613
      %686 = vst.msk [vmem:[#allocation4 + $0xc8] sm:$0xff] %vm660, %v615
      %687 = vst.msk [vmem:[#allocation4 + $0xd0] sm:$0xff] %vm660, %v617
      %688 = vst.msk [vmem:[#allocation4 + $0xd8] sm:$0xff] %vm660, %v619
      %689 = vst.msk [vmem:[#allocation4 + $0xe0] sm:$0xff] %vm660, %v621
      %690 = vst.msk [vmem:[#allocation4 + $0xe8] sm:$0xff] %vm660, %v623
      %691 = vst.msk [vmem:[#allocation4 + $0xf0] sm:$0xff] %vm660, %v625
      %692 = vst.msk [vmem:[#allocation4 + $0xf8] sm:$0xff] %vm660, %v627
      %v693 = vld [vmem:[#allocation2 + $0x2] sm:$0xff]
      %v694 = vld [vmem:[#allocation2 + $0xa] sm:$0xff]
      %v695 = vld [vmem:[#allocation2 + $0x1a] sm:$0xff]
      %v696 = vld [vmem:[#allocation2 + $0x22] sm:$0xff]
      %v697 = vld [vmem:[#allocation2 + $0x32] sm:$0xff]
      %v698 = vld [vmem:[#allocation2 + $0x3a] sm:$0xff]
      %v699 = vld [vmem:[#allocation2 + $0x4a] sm:$0xff]
      %v700 = vld [vmem:[#allocation2 + $0x52] sm:$0xff]
      %v701 = vld [vmem:[#allocation2 + $0x62] sm:$0xff]
      %v702 = vld [vmem:[#allocation2 + $0x6a] sm:$0xff]
      %v703 = vld [vmem:[#allocation2 + $0x7a] sm:$0xff]
      %v704 = vld [vmem:[#allocation2 + $0x82] sm:$0xff]
      %v705 = vld [vmem:[#allocation2 + $0x92] sm:$0xff]
      %v706 = vld [vmem:[#allocation2 + $0x9a] sm:$0xff]
      %v707 = vld [vmem:[#allocation2 + $0xaa] sm:$0xff]
      %v708 = vld [vmem:[#allocation2 + $0xb2] sm:$0xff]
      %v709 = vld [vmem:[#allocation2 + $0xc2] sm:$0xff]
      %v710 = vld [vmem:[#allocation2 + $0xca] sm:$0xff]
      %v711 = vld [vmem:[#allocation2 + $0xda] sm:$0xff]
      %v712 = vld [vmem:[#allocation2 + $0xe2] sm:$0xff]
      %v713 = vld [vmem:[#allocation2 + $0xf2] sm:$0xff]
      %v714 = vld [vmem:[#allocation2 + $0xfa] sm:$0xff]
      %v715 = vld [vmem:[#allocation2 + $0x10a] sm:$0xff]
      %v716 = vld [vmem:[#allocation2 + $0x112] sm:$0xff]
      %v717 = vld [vmem:[#allocation2 + $0x122] sm:$0xff]
      %v718 = vld [vmem:[#allocation2 + $0x12a] sm:$0xff]
      %v719 = vld [vmem:[#allocation2 + $0x13a] sm:$0xff]
      %v720 = vld [vmem:[#allocation2 + $0x142] sm:$0xff]
      %v721 = vld [vmem:[#allocation2 + $0x152] sm:$0xff]
      %v722 = vld [vmem:[#allocation2 + $0x15a] sm:$0xff]
      %v723 = vld [vmem:[#allocation2 + $0x16a] sm:$0xff]
      %v724 = vld [vmem:[#allocation2 + $0x172] sm:$0xff]
      %757 = vrot.lane.b32.xlu0 %v693, 8
      %v758 = vpop.permute.xlu0 %757
      %759 = vrot.lane.b32.xlu0 %v694, 8
      %v760 = vpop.permute.xlu0 %759
      %761 = vrot.lane.b32.xlu0 %v695, 8
      %v762 = vpop.permute.xlu0 %761
      %763 = vrot.lane.b32.xlu0 %v696, 8
      %v764 = vpop.permute.xlu0 %763
      %765 = vrot.lane.b32.xlu0 %v697, 8
      %v766 = vpop.permute.xlu0 %765
      %767 = vrot.lane.b32.xlu0 %v698, 8
      %v768 = vpop.permute.xlu0 %767
      %769 = vrot.lane.b32.xlu0 %v699, 8
      %v770 = vpop.permute.xlu0 %769
      %771 = vrot.lane.b32.xlu0 %v700, 8
      %v772 = vpop.permute.xlu0 %771
      %773 = vrot.lane.b32.xlu0 %v701, 8
      %v774 = vpop.permute.xlu0 %773
      %775 = vrot.lane.b32.xlu0 %v702, 8
      %v776 = vpop.permute.xlu0 %775
      %777 = vrot.lane.b32.xlu0 %v703, 8
      %v778 = vpop.permute.xlu0 %777
      %779 = vrot.lane.b32.xlu0 %v704, 8
      %v780 = vpop.permute.xlu0 %779
      %781 = vrot.lane.b32.xlu0 %v705, 8
      %v782 = vpop.permute.xlu0 %781
      %783 = vrot.lane.b32.xlu0 %v706, 8
      %v784 = vpop.permute.xlu0 %783
      %785 = vrot.lane.b32.xlu0 %v707, 8
      %v786 = vpop.permute.xlu0 %785
      %787 = vrot.lane.b32.xlu0 %v708, 8
      %v788 = vpop.permute.xlu0 %787
      %789 = vrot.lane.b32.xlu0 %v709, 8
      %v790 = vpop.permute.xlu0 %789
      %791 = vrot.lane.b32.xlu0 %v710, 8
      %v792 = vpop.permute.xlu0 %791
      %793 = vrot.lane.b32.xlu0 %v711, 8
      %v794 = vpop.permute.xlu0 %793
      %795 = vrot.lane.b32.xlu0 %v712, 8
      %v796 = vpop.permute.xlu0 %795
      %797 = vrot.lane.b32.xlu0 %v713, 8
      %v798 = vpop.permute.xlu0 %797
      %799 = vrot.lane.b32.xlu0 %v714, 8
      %v800 = vpop.permute.xlu0 %799
      %801 = vrot.lane.b32.xlu0 %v715, 8
      %v802 = vpop.permute.xlu0 %801
      %803 = vrot.lane.b32.xlu0 %v716, 8
      %v804 = vpop.permute.xlu0 %803
      %805 = vrot.lane.b32.xlu0 %v717, 8
      %v806 = vpop.permute.xlu0 %805
      %807 = vrot.lane.b32.xlu0 %v718, 8
      %v808 = vpop.permute.xlu0 %807
      %809 = vrot.lane.b32.xlu0 %v719, 8
      %v810 = vpop.permute.xlu0 %809
      %811 = vrot.lane.b32.xlu0 %v720, 8
      %v812 = vpop.permute.xlu0 %811
      %813 = vrot.lane.b32.xlu0 %v721, 8
      %v814 = vpop.permute.xlu0 %813
      %815 = vrot.lane.b32.xlu0 %v722, 8
      %v816 = vpop.permute.xlu0 %815
      %817 = vrot.lane.b32.xlu0 %v723, 8
      %v818 = vpop.permute.xlu0 %817
      %819 = vrot.lane.b32.xlu0 %v724, 8
      %v820 = vpop.permute.xlu0 %819
      %vm853 = vcmask 97344
      %854 = vst.msk [vmem:[#allocation4] sm:$0xff] %vm853, %v758
      %855 = vst.msk [vmem:[#allocation4 + $0x8] sm:$0xff] %vm853, %v760
      %856 = vst.msk [vmem:[#allocation4 + $0x10] sm:$0xff] %vm853, %v762
      %857 = vst.msk [vmem:[#allocation4 + $0x18] sm:$0xff] %vm853, %v764
      %858 = vst.msk [vmem:[#allocation4 + $0x20] sm:$0xff] %vm853, %v766
      %859 = vst.msk [vmem:[#allocation4 + $0x28] sm:$0xff] %vm853, %v768
      %860 = vst.msk [vmem:[#allocation4 + $0x30] sm:$0xff] %vm853, %v770
      %861 = vst.msk [vmem:[#allocation4 + $0x38] sm:$0xff] %vm853, %v772
      %862 = vst.msk [vmem:[#allocation4 + $0x40] sm:$0xff] %vm853, %v774
      %863 = vst.msk [vmem:[#allocation4 + $0x48] sm:$0xff] %vm853, %v776
      %864 = vst.msk [vmem:[#allocation4 + $0x50] sm:$0xff] %vm853, %v778
      %865 = vst.msk [vmem:[#allocation4 + $0x58] sm:$0xff] %vm853, %v780
      %866 = vst.msk [vmem:[#allocation4 + $0x60] sm:$0xff] %vm853, %v782
      %867 = vst.msk [vmem:[#allocation4 + $0x68] sm:$0xff] %vm853, %v784
      %868 = vst.msk [vmem:[#allocation4 + $0x70] sm:$0xff] %vm853, %v786
      %869 = vst.msk [vmem:[#allocation4 + $0x78] sm:$0xff] %vm853, %v788
      %870 = vst.msk [vmem:[#allocation4 + $0x80] sm:$0xff] %vm853, %v790
      %871 = vst.msk [vmem:[#allocation4 + $0x88] sm:$0xff] %vm853, %v792
      %872 = vst.msk [vmem:[#allocation4 + $0x90] sm:$0xff] %vm853, %v794
      %873 = vst.msk [vmem:[#allocation4 + $0x98] sm:$0xff] %vm853, %v796
      %874 = vst.msk [vmem:[#allocation4 + $0xa0] sm:$0xff] %vm853, %v798
      %875 = vst.msk [vmem:[#allocation4 + $0xa8] sm:$0xff] %vm853, %v800
      %876 = vst.msk [vmem:[#allocation4 + $0xb0] sm:$0xff] %vm853, %v802
      %877 = vst.msk [vmem:[#allocation4 + $0xb8] sm:$0xff] %vm853, %v804
      %878 = vst.msk [vmem:[#allocation4 + $0xc0] sm:$0xff] %vm853, %v806
      %879 = vst.msk [vmem:[#allocation4 + $0xc8] sm:$0xff] %vm853, %v808
      %880 = vst.msk [vmem:[#allocation4 + $0xd0] sm:$0xff] %vm853, %v810
      %881 = vst.msk [vmem:[#allocation4 + $0xd8] sm:$0xff] %vm853, %v812
      %882 = vst.msk [vmem:[#allocation4 + $0xe0] sm:$0xff] %vm853, %v814
      %883 = vst.msk [vmem:[#allocation4 + $0xe8] sm:$0xff] %vm853, %v816
      %884 = vst.msk [vmem:[#allocation4 + $0xf0] sm:$0xff] %vm853, %v818
      %885 = vst.msk [vmem:[#allocation4 + $0xf8] sm:$0xff] %vm853, %v820
      %v886 = vld [vmem:[%s357] sm:$0xff]
      %v887 = vld [vmem:[%s357 + $0x8] sm:$0xff]
      %v888 = vld [vmem:[%s357 + $0x18] sm:$0xff]
      %v889 = vld [vmem:[%s357 + $0x20] sm:$0xff]
      %v890 = vld [vmem:[%s357 + $0x30] sm:$0xff]
      %v891 = vld [vmem:[%s357 + $0x38] sm:$0xff]
      %v892 = vld [vmem:[%s357 + $0x48] sm:$0xff]
      %v893 = vld [vmem:[%s357 + $0x50] sm:$0xff]
      %v894 = vld [vmem:[%s357 + $0x60] sm:$0xff]
      %v895 = vld [vmem:[%s357 + $0x68] sm:$0xff]
      %v896 = vld [vmem:[%s357 + $0x78] sm:$0xff]
      %v897 = vld [vmem:[%s357 + $0x80] sm:$0xff]
      %v898 = vld [vmem:[%s357 + $0x90] sm:$0xff]
      %v899 = vld [vmem:[%s357 + $0x98] sm:$0xff]
      %v900 = vld [vmem:[%s357 + $0xa8] sm:$0xff]
      %v901 = vld [vmem:[%s357 + $0xb0] sm:$0xff]
      %v902 = vld [vmem:[%s357 + $0xc0] sm:$0xff]
      %v903 = vld [vmem:[%s357 + $0xc8] sm:$0xff]
      %v904 = vld [vmem:[%s357 + $0xd8] sm:$0xff]
      %v905 = vld [vmem:[%s357 + $0xe0] sm:$0xff]
      %v906 = vld [vmem:[%s357 + $0xf0] sm:$0xff]
      %v907 = vld [vmem:[%s357 + $0xf8] sm:$0xff]
      %v908 = vld [vmem:[%s357 + $0x108] sm:$0xff]
      %v909 = vld [vmem:[%s357 + $0x110] sm:$0xff]
      %v910 = vld [vmem:[%s357 + $0x120] sm:$0xff]
      %v911 = vld [vmem:[%s357 + $0x128] sm:$0xff]
      %v912 = vld [vmem:[%s357 + $0x138] sm:$0xff]
      %v913 = vld [vmem:[%s357 + $0x140] sm:$0xff]
      %v914 = vld [vmem:[%s357 + $0x150] sm:$0xff]
      %v915 = vld [vmem:[%s357 + $0x158] sm:$0xff]
      %v916 = vld [vmem:[%s357 + $0x168] sm:$0xff]
      %v917 = vld [vmem:[%s357 + $0x170] sm:$0xff]
      %950 = vrot.lane.b32.xlu0 %v886, 12
      %v951 = vpop.permute.xlu0 %950
      %952 = vrot.lane.b32.xlu0 %v887, 12
      %v953 = vpop.permute.xlu0 %952
      %954 = vrot.lane.b32.xlu0 %v888, 12
      %v955 = vpop.permute.xlu0 %954
      %956 = vrot.lane.b32.xlu0 %v889, 12
      %v957 = vpop.permute.xlu0 %956
      %958 = vrot.lane.b32.xlu0 %v890, 12
      %v959 = vpop.permute.xlu0 %958
      %960 = vrot.lane.b32.xlu0 %v891, 12
      %v961 = vpop.permute.xlu0 %960
      %962 = vrot.lane.b32.xlu0 %v892, 12
      %v963 = vpop.permute.xlu0 %962
      %964 = vrot.lane.b32.xlu0 %v893, 12
      %v965 = vpop.permute.xlu0 %964
      %966 = vrot.lane.b32.xlu0 %v894, 12
      %v967 = vpop.permute.xlu0 %966
      %968 = vrot.lane.b32.xlu0 %v895, 12
      %v969 = vpop.permute.xlu0 %968
      %970 = vrot.lane.b32.xlu0 %v896, 12
      %v971 = vpop.permute.xlu0 %970
      %972 = vrot.lane.b32.xlu0 %v897, 12
      %v973 = vpop.permute.xlu0 %972
      %974 = vrot.lane.b32.xlu0 %v898, 12
      %v975 = vpop.permute.xlu0 %974
      %976 = vrot.lane.b32.xlu0 %v899, 12
      %v977 = vpop.permute.xlu0 %976
      %978 = vrot.lane.b32.xlu0 %v900, 12
      %v979 = vpop.permute.xlu0 %978
      %980 = vrot.lane.b32.xlu0 %v901, 12
      %v981 = vpop.permute.xlu0 %980
      %982 = vrot.lane.b32.xlu0 %v902, 12
      %v983 = vpop.permute.xlu0 %982
      %984 = vrot.lane.b32.xlu0 %v903, 12
      %v985 = vpop.permute.xlu0 %984
      %986 = vrot.lane.b32.xlu0 %v904, 12
      %v987 = vpop.permute.xlu0 %986
      %988 = vrot.lane.b32.xlu0 %v905, 12
      %v989 = vpop.permute.xlu0 %988
      %990 = vrot.lane.b32.xlu0 %v906, 12
      %v991 = vpop.permute.xlu0 %990
      %992 = vrot.lane.b32.xlu0 %v907, 12
      %v993 = vpop.permute.xlu0 %992
      %994 = vrot.lane.b32.xlu0 %v908, 12
      %v995 = vpop.permute.xlu0 %994
      %996 = vrot.lane.b32.xlu0 %v909, 12
      %v997 = vpop.permute.xlu0 %996
      %998 = vrot.lane.b32.xlu0 %v910, 12
      %v999 = vpop.permute.xlu0 %998
      %1000 = vrot.lane.b32.xlu0 %v911, 12
      %v1001 = vpop.permute.xlu0 %1000
      %1002 = vrot.lane.b32.xlu0 %v912, 12
      %v1003 = vpop.permute.xlu0 %1002
      %1004 = vrot.lane.b32.xlu0 %v913, 12
      %v1005 = vpop.permute.xlu0 %1004
      %1006 = vrot.lane.b32.xlu0 %v914, 12
      %v1007 = vpop.permute.xlu0 %1006
      %1008 = vrot.lane.b32.xlu0 %v915, 12
      %v1009 = vpop.permute.xlu0 %1008
      %1010 = vrot.lane.b32.xlu0 %v916, 12
      %v1011 = vpop.permute.xlu0 %1010
      %1012 = vrot.lane.b32.xlu0 %v917, 12
      %v1013 = vpop.permute.xlu0 %1012
      %vm1046 = vcmask 130144
      %1047 = vst.msk [vmem:[#allocation4] sm:$0xff] %vm1046, %v951
      %1048 = vst.msk [vmem:[#allocation4 + $0x8] sm:$0xff] %vm1046, %v953
      %1049 = vst.msk [vmem:[#allocation4 + $0x10] sm:$0xff] %vm1046, %v955
      %1050 = vst.msk [vmem:[#allocation4 + $0x18] sm:$0xff] %vm1046, %v957
      %1051 = vst.msk [vmem:[#allocation4 + $0x20] sm:$0xff] %vm1046, %v959
      %1052 = vst.msk [vmem:[#allocation4 + $0x28] sm:$0xff] %vm1046, %v961
      %1053 = vst.msk [vmem:[#allocation4 + $0x30] sm:$0xff] %vm1046, %v963
      %1054 = vst.msk [vmem:[#allocation4 + $0x38] sm:$0xff] %vm1046, %v965
      %1055 = vst.msk [vmem:[#allocation4 + $0x40] sm:$0xff] %vm1046, %v967
      %1056 = vst.msk [vmem:[#allocation4 + $0x48] sm:$0xff] %vm1046, %v969
      %1057 = vst.msk [vmem:[#allocation4 + $0x50] sm:$0xff] %vm1046, %v971
      %1058 = vst.msk [vmem:[#allocation4 + $0x58] sm:$0xff] %vm1046, %v973
      %1059 = vst.msk [vmem:[#allocation4 + $0x60] sm:$0xff] %vm1046, %v975
      %1060 = vst.msk [vmem:[#allocation4 + $0x68] sm:$0xff] %vm1046, %v977
      %1061 = vst.msk [vmem:[#allocation4 + $0x70] sm:$0xff] %vm1046, %v979
      %1062 = vst.msk [vmem:[#allocation4 + $0x78] sm:$0xff] %vm1046, %v981
      %1063 = vst.msk [vmem:[#allocation4 + $0x80] sm:$0xff] %vm1046, %v983
      %1064 = vst.msk [vmem:[#allocation4 + $0x88] sm:$0xff] %vm1046, %v985
      %1065 = vst.msk [vmem:[#allocation4 + $0x90] sm:$0xff] %vm1046, %v987
      %1066 = vst.msk [vmem:[#allocation4 + $0x98] sm:$0xff] %vm1046, %v989
      %1067 = vst.msk [vmem:[#allocation4 + $0xa0] sm:$0xff] %vm1046, %v991
      %1068 = vst.msk [vmem:[#allocation4 + $0xa8] sm:$0xff] %vm1046, %v993
      %1069 = vst.msk [vmem:[#allocation4 + $0xb0] sm:$0xff] %vm1046, %v995
      %1070 = vst.msk [vmem:[#allocation4 + $0xb8] sm:$0xff] %vm1046, %v997
      %1071 = vst.msk [vmem:[#allocation4 + $0xc0] sm:$0xff] %vm1046, %v999
      %1072 = vst.msk [vmem:[#allocation4 + $0xc8] sm:$0xff] %vm1046, %v1001
      %1073 = vst.msk [vmem:[#allocation4 + $0xd0] sm:$0xff] %vm1046, %v1003
      %1074 = vst.msk [vmem:[#allocation4 + $0xd8] sm:$0xff] %vm1046, %v1005
      %1075 = vst.msk [vmem:[#allocation4 + $0xe0] sm:$0xff] %vm1046, %v1007
      %1076 = vst.msk [vmem:[#allocation4 + $0xe8] sm:$0xff] %vm1046, %v1009
      %1077 = vst.msk [vmem:[#allocation4 + $0xf0] sm:$0xff] %vm1046, %v1011
      %1078 = vst.msk [vmem:[#allocation4 + $0xf8] sm:$0xff] %vm1046, %v1013
      %v1079 = vld [vmem:[%s357 + $0x1] sm:$0xff]
      %v1080 = vld [vmem:[%s357 + $0x9] sm:$0xff]
      %v1081 = vld [vmem:[%s357 + $0x19] sm:$0xff]
      %v1082 = vld [vmem:[%s357 + $0x21] sm:$0xff]
      %v1083 = vld [vmem:[%s357 + $0x31] sm:$0xff]
      %v1084 = vld [vmem:[%s357 + $0x39] sm:$0xff]
      %v1085 = vld [vmem:[%s357 + $0x49] sm:$0xff]
      %v1086 = vld [vmem:[%s357 + $0x51] sm:$0xff]
      %v1087 = vld [vmem:[%s357 + $0x61] sm:$0xff]
      %v1088 = vld [vmem:[%s357 + $0x69] sm:$0xff]
      %v1089 = vld [vmem:[%s357 + $0x79] sm:$0xff]
      %v1090 = vld [vmem:[%s357 + $0x81] sm:$0xff]
      %v1091 = vld [vmem:[%s357 + $0x91] sm:$0xff]
      %v1092 = vld [vmem:[%s357 + $0x99] sm:$0xff]
      %v1093 = vld [vmem:[%s357 + $0xa9] sm:$0xff]
      %v1094 = vld [vmem:[%s357 + $0xb1] sm:$0xff]
      %v1095 = vld [vmem:[%s357 + $0xc1] sm:$0xff]
      %v1096 = vld [vmem:[%s357 + $0xc9] sm:$0xff]
      %v1097 = vld [vmem:[%s357 + $0xd9] sm:$0xff]
      %v1098 = vld [vmem:[%s357 + $0xe1] sm:$0xff]
      %v1099 = vld [vmem:[%s357 + $0xf1] sm:$0xff]
      %v1100 = vld [vmem:[%s357 + $0xf9] sm:$0xff]
      %v1101 = vld [vmem:[%s357 + $0x109] sm:$0xff]
      %v1102 = vld [vmem:[%s357 + $0x111] sm:$0xff]
      %v1103 = vld [vmem:[%s357 + $0x121] sm:$0xff]
      %v1104 = vld [vmem:[%s357 + $0x129] sm:$0xff]
      %v1105 = vld [vmem:[%s357 + $0x139] sm:$0xff]
      %v1106 = vld [vmem:[%s357 + $0x141] sm:$0xff]
      %v1107 = vld [vmem:[%s357 + $0x151] sm:$0xff]
      %v1108 = vld [vmem:[%s357 + $0x159] sm:$0xff]
      %v1109 = vld [vmem:[%s357 + $0x169] sm:$0xff]
      %v1110 = vld [vmem:[%s357 + $0x171] sm:$0xff]
      %1143 = vrot.lane.b32.xlu0 %v1079, 16
      %v1144 = vpop.permute.xlu0 %1143
      %1145 = vrot.lane.b32.xlu0 %v1080, 16
      %v1146 = vpop.permute.xlu0 %1145
      %1147 = vrot.lane.b32.xlu0 %v1081, 16
      %v1148 = vpop.permute.xlu0 %1147
      %1149 = vrot.lane.b32.xlu0 %v1082, 16
      %v1150 = vpop.permute.xlu0 %1149
      %1151 = vrot.lane.b32.xlu0 %v1083, 16
      %v1152 = vpop.permute.xlu0 %1151
      %1153 = vrot.lane.b32.xlu0 %v1084, 16
      %v1154 = vpop.permute.xlu0 %1153
      %1155 = vrot.lane.b32.xlu0 %v1085, 16
      %v1156 = vpop.permute.xlu0 %1155
      %1157 = vrot.lane.b32.xlu0 %v1086, 16
      %v1158 = vpop.permute.xlu0 %1157
      %1159 = vrot.lane.b32.xlu0 %v1087, 16
      %v1160 = vpop.permute.xlu0 %1159
      %1161 = vrot.lane.b32.xlu0 %v1088, 16
      %v1162 = vpop.permute.xlu0 %1161
      %1163 = vrot.lane.b32.xlu0 %v1089, 16
      %v1164 = vpop.permute.xlu0 %1163
      %1165 = vrot.lane.b32.xlu0 %v1090, 16
      %v1166 = vpop.permute.xlu0 %1165
      %1167 = vrot.lane.b32.xlu0 %v1091, 16
      %v1168 = vpop.permute.xlu0 %1167
      %1169 = vrot.lane.b32.xlu0 %v1092, 16
      %v1170 = vpop.permute.xlu0 %1169
      %1171 = vrot.lane.b32.xlu0 %v1093, 16
      %v1172 = vpop.permute.xlu0 %1171
      %1173 = vrot.lane.b32.xlu0 %v1094, 16
      %v1174 = vpop.permute.xlu0 %1173
      %1175 = vrot.lane.b32.xlu0 %v1095, 16
      %v1176 = vpop.permute.xlu0 %1175
      %1177 = vrot.lane.b32.xlu0 %v1096, 16
      %v1178 = vpop.permute.xlu0 %1177
      %1179 = vrot.lane.b32.xlu0 %v1097, 16
      %v1180 = vpop.permute.xlu0 %1179
      %1181 = vrot.lane.b32.xlu0 %v1098, 16
      %v1182 = vpop.permute.xlu0 %1181
      %1183 = vrot.lane.b32.xlu0 %v1099, 16
      %v1184 = vpop.permute.xlu0 %1183
      %1185 = vrot.lane.b32.xlu0 %v1100, 16
      %v1186 = vpop.permute.xlu0 %1185
      %1187 = vrot.lane.b32.xlu0 %v1101, 16
      %v1188 = vpop.permute.xlu0 %1187
      %1189 = vrot.lane.b32.xlu0 %v1102, 16
      %v1190 = vpop.permute.xlu0 %1189
      %1191 = vrot.lane.b32.xlu0 %v1103, 16
      %v1192 = vpop.permute.xlu0 %1191
      %1193 = vrot.lane.b32.xlu0 %v1104, 16
      %v1194 = vpop.permute.xlu0 %1193
      %1195 = vrot.lane.b32.xlu0 %v1105, 16
      %v1196 = vpop.permute.xlu0 %1195
      %1197 = vrot.lane.b32.xlu0 %v1106, 16
      %v1198 = vpop.permute.xlu0 %1197
      %1199 = vrot.lane.b32.xlu0 %v1107, 16
      %v1200 = vpop.permute.xlu0 %1199
      %1201 = vrot.lane.b32.xlu0 %v1108, 16
      %v1202 = vpop.permute.xlu0 %1201
      %1203 = vrot.lane.b32.xlu0 %v1109, 16
      %v1204 = vpop.permute.xlu0 %1203
      %1205 = vrot.lane.b32.xlu0 %v1110, 16
      %v1206 = vpop.permute.xlu0 %1205
      %vm1239 = vcmask 162944
      %1240 = vst.msk [vmem:[#allocation4] sm:$0xff] %vm1239, %v1144
      %1241 = vst.msk [vmem:[#allocation4 + $0x8] sm:$0xff] %vm1239, %v1146
      %1242 = vst.msk [vmem:[#allocation4 + $0x10] sm:$0xff] %vm1239, %v1148
      %1243 = vst.msk [vmem:[#allocation4 + $0x18] sm:$0xff] %vm1239, %v1150
      %1244 = vst.msk [vmem:[#allocation4 + $0x20] sm:$0xff] %vm1239, %v1152
      %1245 = vst.msk [vmem:[#allocation4 + $0x28] sm:$0xff] %vm1239, %v1154
      %1246 = vst.msk [vmem:[#allocation4 + $0x30] sm:$0xff] %vm1239, %v1156
      %1247 = vst.msk [vmem:[#allocation4 + $0x38] sm:$0xff] %vm1239, %v1158
      %1248 = vst.msk [vmem:[#allocation4 + $0x40] sm:$0xff] %vm1239, %v1160
      %1249 = vst.msk [vmem:[#allocation4 + $0x48] sm:$0xff] %vm1239, %v1162
      %1250 = vst.msk [vmem:[#allocation4 + $0x50] sm:$0xff] %vm1239, %v1164
      %1251 = vst.msk [vmem:[#allocation4 + $0x58] sm:$0xff] %vm1239, %v1166
      %1252 = vst.msk [vmem:[#allocation4 + $0x60] sm:$0xff] %vm1239, %v1168
      %1253 = vst.msk [vmem:[#allocation4 + $0x68] sm:$0xff] %vm1239, %v1170
      %1254 = vst.msk [vmem:[#allocation4 + $0x70] sm:$0xff] %vm1239, %v1172
      %1255 = vst.msk [vmem:[#allocation4 + $0x78] sm:$0xff] %vm1239, %v1174
      %1256 = vst.msk [vmem:[#allocation4 + $0x80] sm:$0xff] %vm1239, %v1176
      %1257 = vst.msk [vmem:[#allocation4 + $0x88] sm:$0xff] %vm1239, %v1178
      %1258 = vst.msk [vmem:[#allocation4 + $0x90] sm:$0xff] %vm1239, %v1180
      %1259 = vst.msk [vmem:[#allocation4 + $0x98] sm:$0xff] %vm1239, %v1182
      %1260 = vst.msk [vmem:[#allocation4 + $0xa0] sm:$0xff] %vm1239, %v1184
      %1261 = vst.msk [vmem:[#allocation4 + $0xa8] sm:$0xff] %vm1239, %v1186
      %1262 = vst.msk [vmem:[#allocation4 + $0xb0] sm:$0xff] %vm1239, %v1188
      %1263 = vst.msk [vmem:[#allocation4 + $0xb8] sm:$0xff] %vm1239, %v1190
      %1264 = vst.msk [vmem:[#allocation4 + $0xc0] sm:$0xff] %vm1239, %v1192
      %1265 = vst.msk [vmem:[#allocation4 + $0xc8] sm:$0xff] %vm1239, %v1194
      %1266 = vst.msk [vmem:[#allocation4 + $0xd0] sm:$0xff] %vm1239, %v1196
      %1267 = vst.msk [vmem:[#allocation4 + $0xd8] sm:$0xff] %vm1239, %v1198
      %1268 = vst.msk [vmem:[#allocation4 + $0xe0] sm:$0xff] %vm1239, %v1200
      %1269 = vst.msk [vmem:[#allocation4 + $0xe8] sm:$0xff] %vm1239, %v1202
      %1270 = vst.msk [vmem:[#allocation4 + $0xf0] sm:$0xff] %vm1239, %v1204
      %1271 = vst.msk [vmem:[#allocation4 + $0xf8] sm:$0xff] %vm1239, %v1206
      %v1272 = vld [vmem:[%s357 + $0x2] sm:$0xff]
      %v1273 = vld [vmem:[%s357 + $0xa] sm:$0xff]
      %v1274 = vld [vmem:[%s357 + $0x1a] sm:$0xff]
      %v1275 = vld [vmem:[%s357 + $0x22] sm:$0xff]
      %v1276 = vld [vmem:[%s357 + $0x32] sm:$0xff]
      %v1277 = vld [vmem:[%s357 + $0x3a] sm:$0xff]
      %v1278 = vld [vmem:[%s357 + $0x4a] sm:$0xff]
      %v1279 = vld [vmem:[%s357 + $0x52] sm:$0xff]
      %v1280 = vld [vmem:[%s357 + $0x62] sm:$0xff]
      %v1281 = vld [vmem:[%s357 + $0x6a] sm:$0xff]
      %v1282 = vld [vmem:[%s357 + $0x7a] sm:$0xff]
      %v1283 = vld [vmem:[%s357 + $0x82] sm:$0xff]
      %v1284 = vld [vmem:[%s357 + $0x92] sm:$0xff]
      %v1285 = vld [vmem:[%s357 + $0x9a] sm:$0xff]
      %v1286 = vld [vmem:[%s357 + $0xaa] sm:$0xff]
      %v1287 = vld [vmem:[%s357 + $0xb2] sm:$0xff]
      %v1288 = vld [vmem:[%s357 + $0xc2] sm:$0xff]
      %v1289 = vld [vmem:[%s357 + $0xca] sm:$0xff]
      %v1290 = vld [vmem:[%s357 + $0xda] sm:$0xff]
      %v1291 = vld [vmem:[%s357 + $0xe2] sm:$0xff]
      %v1292 = vld [vmem:[%s357 + $0xf2] sm:$0xff]
      %v1293 = vld [vmem:[%s357 + $0xfa] sm:$0xff]
      %v1294 = vld [vmem:[%s357 + $0x10a] sm:$0xff]
      %v1295 = vld [vmem:[%s357 + $0x112] sm:$0xff]
      %v1296 = vld [vmem:[%s357 + $0x122] sm:$0xff]
      %v1297 = vld [vmem:[%s357 + $0x12a] sm:$0xff]
      %v1298 = vld [vmem:[%s357 + $0x13a] sm:$0xff]
      %v1299 = vld [vmem:[%s357 + $0x142] sm:$0xff]
      %v1300 = vld [vmem:[%s357 + $0x152] sm:$0xff]
      %v1301 = vld [vmem:[%s357 + $0x15a] sm:$0xff]
      %v1302 = vld [vmem:[%s357 + $0x16a] sm:$0xff]
      %v1303 = vld [vmem:[%s357 + $0x172] sm:$0xff]
      %1336 = vrot.lane.b32.xlu0 %v1272, 20
      %v1337 = vpop.permute.xlu0 %1336
      %1338 = vrot.lane.b32.xlu0 %v1273, 20
      %v1339 = vpop.permute.xlu0 %1338
      %1340 = vrot.lane.b32.xlu0 %v1274, 20
      %v1341 = vpop.permute.xlu0 %1340
      %1342 = vrot.lane.b32.xlu0 %v1275, 20
      %v1343 = vpop.permute.xlu0 %1342
      %1344 = vrot.lane.b32.xlu0 %v1276, 20
      %v1345 = vpop.permute.xlu0 %1344
      %1346 = vrot.lane.b32.xlu0 %v1277, 20
      %v1347 = vpop.permute.xlu0 %1346
      %1348 = vrot.lane.b32.xlu0 %v1278, 20
      %v1349 = vpop.permute.xlu0 %1348
      %1350 = vrot.lane.b32.xlu0 %v1279, 20
      %v1351 = vpop.permute.xlu0 %1350
      %1352 = vrot.lane.b32.xlu0 %v1280, 20
      %v1353 = vpop.permute.xlu0 %1352
      %1354 = vrot.lane.b32.xlu0 %v1281, 20
      %v1355 = vpop.permute.xlu0 %1354
      %1356 = vrot.lane.b32.xlu0 %v1282, 20
      %v1357 = vpop.permute.xlu0 %1356
      %1358 = vrot.lane.b32.xlu0 %v1283, 20
      %v1359 = vpop.permute.xlu0 %1358
      %1360 = vrot.lane.b32.xlu0 %v1284, 20
      %v1361 = vpop.permute.xlu0 %1360
      %1362 = vrot.lane.b32.xlu0 %v1285, 20
      %v1363 = vpop.permute.xlu0 %1362
      %1364 = vrot.lane.b32.xlu0 %v1286, 20
      %v1365 = vpop.permute.xlu0 %1364
      %1366 = vrot.lane.b32.xlu0 %v1287, 20
      %v1367 = vpop.permute.xlu0 %1366
      %1368 = vrot.lane.b32.xlu0 %v1288, 20
      %v1369 = vpop.permute.xlu0 %1368
      %1370 = vrot.lane.b32.xlu0 %v1289, 20
      %v1371 = vpop.permute.xlu0 %1370
      %1372 = vrot.lane.b32.xlu0 %v1290, 20
      %v1373 = vpop.permute.xlu0 %1372
      %1374 = vrot.lane.b32.xlu0 %v1291, 20
      %v1375 = vpop.permute.xlu0 %1374
      %1376 = vrot.lane.b32.xlu0 %v1292, 20
      %v1377 = vpop.permute.xlu0 %1376
      %1378 = vrot.lane.b32.xlu0 %v1293, 20
      %v1379 = vpop.permute.xlu0 %1378
      %1380 = vrot.lane.b32.xlu0 %v1294, 20
      %v1381 = vpop.permute.xlu0 %1380
      %1382 = vrot.lane.b32.xlu0 %v1295, 20
      %v1383 = vpop.permute.xlu0 %1382
      %1384 = vrot.lane.b32.xlu0 %v1296, 20
      %v1385 = vpop.permute.xlu0 %1384
      %1386 = vrot.lane.b32.xlu0 %v1297, 20
      %v1387 = vpop.permute.xlu0 %1386
      %1388 = vrot.lane.b32.xlu0 %v1298, 20
      %v1389 = vpop.permute.xlu0 %1388
      %1390 = vrot.lane.b32.xlu0 %v1299, 20
      %v1391 = vpop.permute.xlu0 %1390
      %1392 = vrot.lane.b32.xlu0 %v1300, 20
      %v1393 = vpop.permute.xlu0 %1392
      %1394 = vrot.lane.b32.xlu0 %v1301, 20
      %v1395 = vpop.permute.xlu0 %1394
      %1396 = vrot.lane.b32.xlu0 %v1302, 20
      %v1397 = vpop.permute.xlu0 %1396
      %1398 = vrot.lane.b32.xlu0 %v1303, 20
      %v1399 = vpop.permute.xlu0 %1398
      %vm1432 = vcmask 195744
      %1433 = vst.msk [vmem:[#allocation4] sm:$0xff] %vm1432, %v1337
      %1434 = vst.msk [vmem:[#allocation4 + $0x8] sm:$0xff] %vm1432, %v1339
      %1435 = vst.msk [vmem:[#allocation4 + $0x10] sm:$0xff] %vm1432, %v1341
      %1436 = vst.msk [vmem:[#allocation4 + $0x18] sm:$0xff] %vm1432, %v1343
      %1437 = vst.msk [vmem:[#allocation4 + $0x20] sm:$0xff] %vm1432, %v1345
      %1438 = vst.msk [vmem:[#allocation4 + $0x28] sm:$0xff] %vm1432, %v1347
      %1439 = vst.msk [vmem:[#allocation4 + $0x30] sm:$0xff] %vm1432, %v1349
      %1440 = vst.msk [vmem:[#allocation4 + $0x38] sm:$0xff] %vm1432, %v1351
      %1441 = vst.msk [vmem:[#allocation4 + $0x40] sm:$0xff] %vm1432, %v1353
      %1442 = vst.msk [vmem:[#allocation4 + $0x48] sm:$0xff] %vm1432, %v1355
      %1443 = vst.msk [vmem:[#allocation4 + $0x50] sm:$0xff] %vm1432, %v1357
      %1444 = vst.msk [vmem:[#allocation4 + $0x58] sm:$0xff] %vm1432, %v1359
      %1445 = vst.msk [vmem:[#allocation4 + $0x60] sm:$0xff] %vm1432, %v1361
      %1446 = vst.msk [vmem:[#allocation4 + $0x68] sm:$0xff] %vm1432, %v1363
      %1447 = vst.msk [vmem:[#allocation4 + $0x70] sm:$0xff] %vm1432, %v1365
      %1448 = vst.msk [vmem:[#allocation4 + $0x78] sm:$0xff] %vm1432, %v1367
      %1449 = vst.msk [vmem:[#allocation4 + $0x80] sm:$0xff] %vm1432, %v1369
      %1450 = vst.msk [vmem:[#allocation4 + $0x88] sm:$0xff] %vm1432, %v1371
      %1451 = vst.msk [vmem:[#allocation4 + $0x90] sm:$0xff] %vm1432, %v1373
      %1452 = vst.msk [vmem:[#allocation4 + $0x98] sm:$0xff] %vm1432, %v1375
      %1453 = vst.msk [vmem:[#allocation4 + $0xa0] sm:$0xff] %vm1432, %v1377
      %1454 = vst.msk [vmem:[#allocation4 + $0xa8] sm:$0xff] %vm1432, %v1379
      %1455 = vst.msk [vmem:[#allocation4 + $0xb0] sm:$0xff] %vm1432, %v1381
      %1456 = vst.msk [vmem:[#allocation4 + $0xb8] sm:$0xff] %vm1432, %v1383
      %1457 = vst.msk [vmem:[#allocation4 + $0xc0] sm:$0xff] %vm1432, %v1385
      %1458 = vst.msk [vmem:[#allocation4 + $0xc8] sm:$0xff] %vm1432, %v1387
      %1459 = vst.msk [vmem:[#allocation4 + $0xd0] sm:$0xff] %vm1432, %v1389
      %1460 = vst.msk [vmem:[#allocation4 + $0xd8] sm:$0xff] %vm1432, %v1391
      %1461 = vst.msk [vmem:[#allocation4 + $0xe0] sm:$0xff] %vm1432, %v1393
      %1462 = vst.msk [vmem:[#allocation4 + $0xe8] sm:$0xff] %vm1432, %v1395
      %1463 = vst.msk [vmem:[#allocation4 + $0xf0] sm:$0xff] %vm1432, %v1397
      %1464 = vst.msk [vmem:[#allocation4 + $0xf8] sm:$0xff] %vm1432, %v1399
      %s1465 = scalar_lea.vmem [#allocation2], 48
      %v1466 = vld [vmem:[%s1465] sm:$0xff]
      %v1467 = vld [vmem:[%s1465 + $0x8] sm:$0xff]
      %v1468 = vld [vmem:[%s1465 + $0x18] sm:$0xff]
      %v1469 = vld [vmem:[%s1465 + $0x20] sm:$0xff]
      %v1470 = vld [vmem:[%s1465 + $0x30] sm:$0xff]
      %v1471 = vld [vmem:[%s1465 + $0x38] sm:$0xff]
      %v1472 = vld [vmem:[%s1465 + $0x48] sm:$0xff]
      %v1473 = vld [vmem:[%s1465 + $0x50] sm:$0xff]
      %v1474 = vld [vmem:[%s1465 + $0x60] sm:$0xff]
      %v1475 = vld [vmem:[%s1465 + $0x68] sm:$0xff]
      %v1476 = vld [vmem:[%s1465 + $0x78] sm:$0xff]
      %v1477 = vld [vmem:[%s1465 + $0x80] sm:$0xff]
      %v1478 = vld [vmem:[%s1465 + $0x90] sm:$0xff]
      %v1479 = vld [vmem:[%s1465 + $0x98] sm:$0xff]
      %v1480 = vld [vmem:[%s1465 + $0xa8] sm:$0xff]
      %v1481 = vld [vmem:[%s1465 + $0xb0] sm:$0xff]
      %v1482 = vld [vmem:[%s1465 + $0xc0] sm:$0xff]
      %v1483 = vld [vmem:[%s1465 + $0xc8] sm:$0xff]
      %v1484 = vld [vmem:[%s1465 + $0xd8] sm:$0xff]
      %v1485 = vld [vmem:[%s1465 + $0xe0] sm:$0xff]
      %v1486 = vld [vmem:[%s1465 + $0xf0] sm:$0xff]
      %v1487 = vld [vmem:[%s1465 + $0xf8] sm:$0xff]
      %v1488 = vld [vmem:[%s1465 + $0x108] sm:$0xff]
      %v1489 = vld [vmem:[%s1465 + $0x110] sm:$0xff]
      %v1490 = vld [vmem:[%s1465 + $0x120] sm:$0xff]
      %v1491 = vld [vmem:[%s1465 + $0x128] sm:$0xff]
      %v1492 = vld [vmem:[%s1465 + $0x138] sm:$0xff]
      %v1493 = vld [vmem:[%s1465 + $0x140] sm:$0xff]
      %v1494 = vld [vmem:[%s1465 + $0x150] sm:$0xff]
      %v1495 = vld [vmem:[%s1465 + $0x158] sm:$0xff]
      %v1496 = vld [vmem:[%s1465 + $0x168] sm:$0xff]
      %v1497 = vld [vmem:[%s1465 + $0x170] sm:$0xff]
      %1530 = vrot.lane.b32.xlu0 %v1466, 24
      %v1531 = vpop.permute.xlu0 %1530
      %1532 = vrot.lane.b32.xlu0 %v1467, 24
      %v1533 = vpop.permute.xlu0 %1532
      %1534 = vrot.lane.b32.xlu0 %v1468, 24
      %v1535 = vpop.permute.xlu0 %1534
      %1536 = vrot.lane.b32.xlu0 %v1469, 24
      %v1537 = vpop.permute.xlu0 %1536
      %1538 = vrot.lane.b32.xlu0 %v1470, 24
      %v1539 = vpop.permute.xlu0 %1538
      %1540 = vrot.lane.b32.xlu0 %v1471, 24
      %v1541 = vpop.permute.xlu0 %1540
      %1542 = vrot.lane.b32.xlu0 %v1472, 24
      %v1543 = vpop.permute.xlu0 %1542
      %1544 = vrot.lane.b32.xlu0 %v1473, 24
      %v1545 = vpop.permute.xlu0 %1544
      %1546 = vrot.lane.b32.xlu0 %v1474, 24
      %v1547 = vpop.permute.xlu0 %1546
      %1548 = vrot.lane.b32.xlu0 %v1475, 24
      %v1549 = vpop.permute.xlu0 %1548
      %1550 = vrot.lane.b32.xlu0 %v1476, 24
      %v1551 = vpop.permute.xlu0 %1550
      %1552 = vrot.lane.b32.xlu0 %v1477, 24
      %v1553 = vpop.permute.xlu0 %1552
      %1554 = vrot.lane.b32.xlu0 %v1478, 24
      %v1555 = vpop.permute.xlu0 %1554
      %1556 = vrot.lane.b32.xlu0 %v1479, 24
      %v1557 = vpop.permute.xlu0 %1556
      %1558 = vrot.lane.b32.xlu0 %v1480, 24
      %v1559 = vpop.permute.xlu0 %1558
      %1560 = vrot.lane.b32.xlu0 %v1481, 24
      %v1561 = vpop.permute.xlu0 %1560
      %1562 = vrot.lane.b32.xlu0 %v1482, 24
      %v1563 = vpop.permute.xlu0 %1562
      %1564 = vrot.lane.b32.xlu0 %v1483, 24
      %v1565 = vpop.permute.xlu0 %1564
      %1566 = vrot.lane.b32.xlu0 %v1484, 24
      %v1567 = vpop.permute.xlu0 %1566
      %1568 = vrot.lane.b32.xlu0 %v1485, 24
      %v1569 = vpop.permute.xlu0 %1568
      %1570 = vrot.lane.b32.xlu0 %v1486, 24
      %v1571 = vpop.permute.xlu0 %1570
      %1572 = vrot.lane.b32.xlu0 %v1487, 24
      %v1573 = vpop.permute.xlu0 %1572
      %1574 = vrot.lane.b32.xlu0 %v1488, 24
      %v1575 = vpop.permute.xlu0 %1574
      %1576 = vrot.lane.b32.xlu0 %v1489, 24
      %v1577 = vpop.permute.xlu0 %1576
      %1578 = vrot.lane.b32.xlu0 %v1490, 24
      %v1579 = vpop.permute.xlu0 %1578
      %1580 = vrot.lane.b32.xlu0 %v1491, 24
      %v1581 = vpop.permute.xlu0 %1580
      %1582 = vrot.lane.b32.xlu0 %v1492, 24
      %v1583 = vpop.permute.xlu0 %1582
      %1584 = vrot.lane.b32.xlu0 %v1493, 24
      %v1585 = vpop.permute.xlu0 %1584
      %1586 = vrot.lane.b32.xlu0 %v1494, 24
      %v1587 = vpop.permute.xlu0 %1586
      %1588 = vrot.lane.b32.xlu0 %v1495, 24
      %v1589 = vpop.permute.xlu0 %1588
      %1590 = vrot.lane.b32.xlu0 %v1496, 24
      %v1591 = vpop.permute.xlu0 %1590
      %1592 = vrot.lane.b32.xlu0 %v1497, 24
      %v1593 = vpop.permute.xlu0 %1592
      %vm1626 = vcmask 228544
      %1627 = vst.msk [vmem:[#allocation4] sm:$0xff] %vm1626, %v1531
      %1628 = vst.msk [vmem:[#allocation4 + $0x8] sm:$0xff] %vm1626, %v1533
      %1629 = vst.msk [vmem:[#allocation4 + $0x10] sm:$0xff] %vm1626, %v1535
      %1630 = vst.msk [vmem:[#allocation4 + $0x18] sm:$0xff] %vm1626, %v1537
      %1631 = vst.msk [vmem:[#allocation4 + $0x20] sm:$0xff] %vm1626, %v1539
      %1632 = vst.msk [vmem:[#allocation4 + $0x28] sm:$0xff] %vm1626, %v1541
      %1633 = vst.msk [vmem:[#allocation4 + $0x30] sm:$0xff] %vm1626, %v1543
      %1634 = vst.msk [vmem:[#allocation4 + $0x38] sm:$0xff] %vm1626, %v1545
      %1635 = vst.msk [vmem:[#allocation4 + $0x40] sm:$0xff] %vm1626, %v1547
      %1636 = vst.msk [vmem:[#allocation4 + $0x48] sm:$0xff] %vm1626, %v1549
      %1637 = vst.msk [vmem:[#allocation4 + $0x50] sm:$0xff] %vm1626, %v1551
      %1638 = vst.msk [vmem:[#allocation4 + $0x58] sm:$0xff] %vm1626, %v1553
      %1639 = vst.msk [vmem:[#allocation4 + $0x60] sm:$0xff] %vm1626, %v1555
      %1640 = vst.msk [vmem:[#allocation4 + $0x68] sm:$0xff] %vm1626, %v1557
      %1641 = vst.msk [vmem:[#allocation4 + $0x70] sm:$0xff] %vm1626, %v1559
      %1642 = vst.msk [vmem:[#allocation4 + $0x78] sm:$0xff] %vm1626, %v1561
      %1643 = vst.msk [vmem:[#allocation4 + $0x80] sm:$0xff] %vm1626, %v1563
      %1644 = vst.msk [vmem:[#allocation4 + $0x88] sm:$0xff] %vm1626, %v1565
      %1645 = vst.msk [vmem:[#allocation4 + $0x90] sm:$0xff] %vm1626, %v1567
      %1646 = vst.msk [vmem:[#allocation4 + $0x98] sm:$0xff] %vm1626, %v1569
      %1647 = vst.msk [vmem:[#allocation4 + $0xa0] sm:$0xff] %vm1626, %v1571
      %1648 = vst.msk [vmem:[#allocation4 + $0xa8] sm:$0xff] %vm1626, %v1573
      %1649 = vst.msk [vmem:[#allocation4 + $0xb0] sm:$0xff] %vm1626, %v1575
      %1650 = vst.msk [vmem:[#allocation4 + $0xb8] sm:$0xff] %vm1626, %v1577
      %1651 = vst.msk [vmem:[#allocation4 + $0xc0] sm:$0xff] %vm1626, %v1579
      %1652 = vst.msk [vmem:[#allocation4 + $0xc8] sm:$0xff] %vm1626, %v1581
      %1653 = vst.msk [vmem:[#allocation4 + $0xd0] sm:$0xff] %vm1626, %v1583
      %1654 = vst.msk [vmem:[#allocation4 + $0xd8] sm:$0xff] %vm1626, %v1585
      %1655 = vst.msk [vmem:[#allocation4 + $0xe0] sm:$0xff] %vm1626, %v1587
      %1656 = vst.msk [vmem:[#allocation4 + $0xe8] sm:$0xff] %vm1626, %v1589
      %1657 = vst.msk [vmem:[#allocation4 + $0xf0] sm:$0xff] %vm1626, %v1591
      %1658 = vst.msk [vmem:[#allocation4 + $0xf8] sm:$0xff] %vm1626, %v1593
      %v1659 = vld [vmem:[%s1465 + $0x1] sm:$0xff]
      %v1660 = vld [vmem:[%s1465 + $0x9] sm:$0xff]
      %v1661 = vld [vmem:[%s1465 + $0x19] sm:$0xff]
      %v1662 = vld [vmem:[%s1465 + $0x21] sm:$0xff]
      %v1663 = vld [vmem:[%s1465 + $0x31] sm:$0xff]
      %v1664 = vld [vmem:[%s1465 + $0x39] sm:$0xff]
      %v1665 = vld [vmem:[%s1465 + $0x49] sm:$0xff]
      %v1666 = vld [vmem:[%s1465 + $0x51] sm:$0xff]
      %v1667 = vld [vmem:[%s1465 + $0x61] sm:$0xff]
      %v1668 = vld [vmem:[%s1465 + $0x69] sm:$0xff]
      %v1669 = vld [vmem:[%s1465 + $0x79] sm:$0xff]
      %v1670 = vld [vmem:[%s1465 + $0x81] sm:$0xff]
      %v1671 = vld [vmem:[%s1465 + $0x91] sm:$0xff]
      %v1672 = vld [vmem:[%s1465 + $0x99] sm:$0xff]
      %v1673 = vld [vmem:[%s1465 + $0xa9] sm:$0xff]
      %v1674 = vld [vmem:[%s1465 + $0xb1] sm:$0xff]
      %v1675 = vld [vmem:[%s1465 + $0xc1] sm:$0xff]
      %v1676 = vld [vmem:[%s1465 + $0xc9] sm:$0xff]
      %v1677 = vld [vmem:[%s1465 + $0xd9] sm:$0xff]
      %v1678 = vld [vmem:[%s1465 + $0xe1] sm:$0xff]
      %v1679 = vld [vmem:[%s1465 + $0xf1] sm:$0xff]
      %v1680 = vld [vmem:[%s1465 + $0xf9] sm:$0xff]
      %v1681 = vld [vmem:[%s1465 + $0x109] sm:$0xff]
      %v1682 = vld [vmem:[%s1465 + $0x111] sm:$0xff]
      %v1683 = vld [vmem:[%s1465 + $0x121] sm:$0xff]
      %v1684 = vld [vmem:[%s1465 + $0x129] sm:$0xff]
      %v1685 = vld [vmem:[%s1465 + $0x139] sm:$0xff]
      %v1686 = vld [vmem:[%s1465 + $0x141] sm:$0xff]
      %v1687 = vld [vmem:[%s1465 + $0x151] sm:$0xff]
      %v1688 = vld [vmem:[%s1465 + $0x159] sm:$0xff]
      %v1689 = vld [vmem:[%s1465 + $0x169] sm:$0xff]
      %v1690 = vld [vmem:[%s1465 + $0x171] sm:$0xff]
      %1723 = vrot.lane.b32.xlu0 %v1659, 28
      %v1724 = vpop.permute.xlu0 %1723
      %1725 = vrot.lane.b32.xlu0 %v1660, 28
      %v1726 = vpop.permute.xlu0 %1725
      %1727 = vrot.lane.b32.xlu0 %v1661, 28
      %v1728 = vpop.permute.xlu0 %1727
      %1729 = vrot.lane.b32.xlu0 %v1662, 28
      %v1730 = vpop.permute.xlu0 %1729
      %1731 = vrot.lane.b32.xlu0 %v1663, 28
      %v1732 = vpop.permute.xlu0 %1731
      %1733 = vrot.lane.b32.xlu0 %v1664, 28
      %v1734 = vpop.permute.xlu0 %1733
      %1735 = vrot.lane.b32.xlu0 %v1665, 28
      %v1736 = vpop.permute.xlu0 %1735
      %1737 = vrot.lane.b32.xlu0 %v1666, 28
      %v1738 = vpop.permute.xlu0 %1737
      %1739 = vrot.lane.b32.xlu0 %v1667, 28
      %v1740 = vpop.permute.xlu0 %1739
      %1741 = vrot.lane.b32.xlu0 %v1668, 28
      %v1742 = vpop.permute.xlu0 %1741
      %1743 = vrot.lane.b32.xlu0 %v1669, 28
      %v1744 = vpop.permute.xlu0 %1743
      %1745 = vrot.lane.b32.xlu0 %v1670, 28
      %v1746 = vpop.permute.xlu0 %1745
      %1747 = vrot.lane.b32.xlu0 %v1671, 28
      %v1748 = vpop.permute.xlu0 %1747
      %1749 = vrot.lane.b32.xlu0 %v1672, 28
      %v1750 = vpop.permute.xlu0 %1749
      %1751 = vrot.lane.b32.xlu0 %v1673, 28
      %v1752 = vpop.permute.xlu0 %1751
      %1753 = vrot.lane.b32.xlu0 %v1674, 28
      %v1754 = vpop.permute.xlu0 %1753
      %1755 = vrot.lane.b32.xlu0 %v1675, 28
      %v1756 = vpop.permute.xlu0 %1755
      %1757 = vrot.lane.b32.xlu0 %v1676, 28
      %v1758 = vpop.permute.xlu0 %1757
      %1759 = vrot.lane.b32.xlu0 %v1677, 28
      %v1760 = vpop.permute.xlu0 %1759
      %1761 = vrot.lane.b32.xlu0 %v1678, 28
      %v1762 = vpop.permute.xlu0 %1761
      %1763 = vrot.lane.b32.xlu0 %v1679, 28
      %v1764 = vpop.permute.xlu0 %1763
      %1765 = vrot.lane.b32.xlu0 %v1680, 28
      %v1766 = vpop.permute.xlu0 %1765
      %1767 = vrot.lane.b32.xlu0 %v1681, 28
      %v1768 = vpop.permute.xlu0 %1767
      %1769 = vrot.lane.b32.xlu0 %v1682, 28
      %v1770 = vpop.permute.xlu0 %1769
      %1771 = vrot.lane.b32.xlu0 %v1683, 28
      %v1772 = vpop.permute.xlu0 %1771
      %1773 = vrot.lane.b32.xlu0 %v1684, 28
      %v1774 = vpop.permute.xlu0 %1773
      %1775 = vrot.lane.b32.xlu0 %v1685, 28
      %v1776 = vpop.permute.xlu0 %1775
      %1777 = vrot.lane.b32.xlu0 %v1686, 28
      %v1778 = vpop.permute.xlu0 %1777
      %1779 = vrot.lane.b32.xlu0 %v1687, 28
      %v1780 = vpop.permute.xlu0 %1779
      %1781 = vrot.lane.b32.xlu0 %v1688, 28
      %v1782 = vpop.permute.xlu0 %1781
      %1783 = vrot.lane.b32.xlu0 %v1689, 28
      %v1784 = vpop.permute.xlu0 %1783
      %1785 = vrot.lane.b32.xlu0 %v1690, 28
      %v1786 = vpop.permute.xlu0 %1785
      %vm1819 = vcmask 261344
      %1820 = vst.msk [vmem:[#allocation4] sm:$0xff] %vm1819, %v1724
      %1821 = vst.msk [vmem:[#allocation4 + $0x8] sm:$0xff] %vm1819, %v1726
      %1822 = vst.msk [vmem:[#allocation4 + $0x10] sm:$0xff] %vm1819, %v1728
      %1823 = vst.msk [vmem:[#allocation4 + $0x18] sm:$0xff] %vm1819, %v1730
      %1824 = vst.msk [vmem:[#allocation4 + $0x20] sm:$0xff] %vm1819, %v1732
      %1825 = vst.msk [vmem:[#allocation4 + $0x28] sm:$0xff] %vm1819, %v1734
      %1826 = vst.msk [vmem:[#allocation4 + $0x30] sm:$0xff] %vm1819, %v1736
      %1827 = vst.msk [vmem:[#allocation4 + $0x38] sm:$0xff] %vm1819, %v1738
      %1828 = vst.msk [vmem:[#allocation4 + $0x40] sm:$0xff] %vm1819, %v1740
      %1829 = vst.msk [vmem:[#allocation4 + $0x48] sm:$0xff] %vm1819, %v1742
      %1830 = vst.msk [vmem:[#allocation4 + $0x50] sm:$0xff] %vm1819, %v1744
      %1831 = vst.msk [vmem:[#allocation4 + $0x58] sm:$0xff] %vm1819, %v1746
      %1832 = vst.msk [vmem:[#allocation4 + $0x60] sm:$0xff] %vm1819, %v1748
      %1833 = vst.msk [vmem:[#allocation4 + $0x68] sm:$0xff] %vm1819, %v1750
      %1834 = vst.msk [vmem:[#allocation4 + $0x70] sm:$0xff] %vm1819, %v1752
      %1835 = vst.msk [vmem:[#allocation4 + $0x78] sm:$0xff] %vm1819, %v1754
      %1836 = vst.msk [vmem:[#allocation4 + $0x80] sm:$0xff] %vm1819, %v1756
      %1837 = vst.msk [vmem:[#allocation4 + $0x88] sm:$0xff] %vm1819, %v1758
      %1838 = vst.msk [vmem:[#allocation4 + $0x90] sm:$0xff] %vm1819, %v1760
      %1839 = vst.msk [vmem:[#allocation4 + $0x98] sm:$0xff] %vm1819, %v1762
      %1840 = vst.msk [vmem:[#allocation4 + $0xa0] sm:$0xff] %vm1819, %v1764
      %1841 = vst.msk [vmem:[#allocation4 + $0xa8] sm:$0xff] %vm1819, %v1766
      %1842 = vst.msk [vmem:[#allocation4 + $0xb0] sm:$0xff] %vm1819, %v1768
      %1843 = vst.msk [vmem:[#allocation4 + $0xb8] sm:$0xff] %vm1819, %v1770
      %1844 = vst.msk [vmem:[#allocation4 + $0xc0] sm:$0xff] %vm1819, %v1772
      %1845 = vst.msk [vmem:[#allocation4 + $0xc8] sm:$0xff] %vm1819, %v1774
      %1846 = vst.msk [vmem:[#allocation4 + $0xd0] sm:$0xff] %vm1819, %v1776
      %1847 = vst.msk [vmem:[#allocation4 + $0xd8] sm:$0xff] %vm1819, %v1778
      %1848 = vst.msk [vmem:[#allocation4 + $0xe0] sm:$0xff] %vm1819, %v1780
      %1849 = vst.msk [vmem:[#allocation4 + $0xe8] sm:$0xff] %vm1819, %v1782
      %1850 = vst.msk [vmem:[#allocation4 + $0xf0] sm:$0xff] %vm1819, %v1784
      %1851 = vst.msk [vmem:[#allocation4 + $0xf8] sm:$0xff] %vm1819, %v1786
      %v1852 = vld [vmem:[%s1465 + $0x2] sm:$0xff]
      %v1853 = vld [vmem:[%s1465 + $0xa] sm:$0xff]
      %v1854 = vld [vmem:[%s1465 + $0x1a] sm:$0xff]
      %v1855 = vld [vmem:[%s1465 + $0x22] sm:$0xff]
      %v1856 = vld [vmem:[%s1465 + $0x32] sm:$0xff]
      %v1857 = vld [vmem:[%s1465 + $0x3a] sm:$0xff]
      %v1858 = vld [vmem:[%s1465 + $0x4a] sm:$0xff]
      %v1859 = vld [vmem:[%s1465 + $0x52] sm:$0xff]
      %v1860 = vld [vmem:[%s1465 + $0x62] sm:$0xff]
      %v1861 = vld [vmem:[%s1465 + $0x6a] sm:$0xff]
      %v1862 = vld [vmem:[%s1465 + $0x7a] sm:$0xff]
      %v1863 = vld [vmem:[%s1465 + $0x82] sm:$0xff]
      %v1864 = vld [vmem:[%s1465 + $0x92] sm:$0xff]
      %v1865 = vld [vmem:[%s1465 + $0x9a] sm:$0xff]
      %v1866 = vld [vmem:[%s1465 + $0xaa] sm:$0xff]
      %v1867 = vld [vmem:[%s1465 + $0xb2] sm:$0xff]
      %v1868 = vld [vmem:[%s1465 + $0xc2] sm:$0xff]
      %v1869 = vld [vmem:[%s1465 + $0xca] sm:$0xff]
      %v1870 = vld [vmem:[%s1465 + $0xda] sm:$0xff]
      %v1871 = vld [vmem:[%s1465 + $0xe2] sm:$0xff]
      %v1872 = vld [vmem:[%s1465 + $0xf2] sm:$0xff]
      %v1873 = vld [vmem:[%s1465 + $0xfa] sm:$0xff]
      %v1874 = vld [vmem:[%s1465 + $0x10a] sm:$0xff]
      %v1875 = vld [vmem:[%s1465 + $0x112] sm:$0xff]
      %v1876 = vld [vmem:[%s1465 + $0x122] sm:$0xff]
      %v1877 = vld [vmem:[%s1465 + $0x12a] sm:$0xff]
      %v1878 = vld [vmem:[%s1465 + $0x13a] sm:$0xff]
      %v1879 = vld [vmem:[%s1465 + $0x142] sm:$0xff]
      %v1880 = vld [vmem:[%s1465 + $0x152] sm:$0xff]
      %v1881 = vld [vmem:[%s1465 + $0x15a] sm:$0xff]
      %v1882 = vld [vmem:[%s1465 + $0x16a] sm:$0xff]
      %v1883 = vld [vmem:[%s1465 + $0x172] sm:$0xff]
      %1916 = vrot.lane.b32.xlu0 %v1852, 32
      %v1917 = vpop.permute.xlu0 %1916
      %1918 = vrot.lane.b32.xlu0 %v1853, 32
      %v1919 = vpop.permute.xlu0 %1918
      %1920 = vrot.lane.b32.xlu0 %v1854, 32
      %v1921 = vpop.permute.xlu0 %1920
      %1922 = vrot.lane.b32.xlu0 %v1855, 32
      %v1923 = vpop.permute.xlu0 %1922
      %1924 = vrot.lane.b32.xlu0 %v1856, 32
      %v1925 = vpop.permute.xlu0 %1924
      %1926 = vrot.lane.b32.xlu0 %v1857, 32
      %v1927 = vpop.permute.xlu0 %1926
      %1928 = vrot.lane.b32.xlu0 %v1858, 32
      %v1929 = vpop.permute.xlu0 %1928
      %1930 = vrot.lane.b32.xlu0 %v1859, 32
      %v1931 = vpop.permute.xlu0 %1930
      %1932 = vrot.lane.b32.xlu0 %v1860, 32
      %v1933 = vpop.permute.xlu0 %1932
      %1934 = vrot.lane.b32.xlu0 %v1861, 32
      %v1935 = vpop.permute.xlu0 %1934
      %1936 = vrot.lane.b32.xlu0 %v1862, 32
      %v1937 = vpop.permute.xlu0 %1936
      %1938 = vrot.lane.b32.xlu0 %v1863, 32
      %v1939 = vpop.permute.xlu0 %1938
      %1940 = vrot.lane.b32.xlu0 %v1864, 32
      %v1941 = vpop.permute.xlu0 %1940
      %1942 = vrot.lane.b32.xlu0 %v1865, 32
      %v1943 = vpop.permute.xlu0 %1942
      %1944 = vrot.lane.b32.xlu0 %v1866, 32
      %v1945 = vpop.permute.xlu0 %1944
      %1946 = vrot.lane.b32.xlu0 %v1867, 32
      %v1947 = vpop.permute.xlu0 %1946
      %1948 = vrot.lane.b32.xlu0 %v1868, 32
      %v1949 = vpop.permute.xlu0 %1948
      %1950 = vrot.lane.b32.xlu0 %v1869, 32
      %v1951 = vpop.permute.xlu0 %1950
      %1952 = vrot.lane.b32.xlu0 %v1870, 32
      %v1953 = vpop.permute.xlu0 %1952
      %1954 = vrot.lane.b32.xlu0 %v1871, 32
      %v1955 = vpop.permute.xlu0 %1954
      %1956 = vrot.lane.b32.xlu0 %v1872, 32
      %v1957 = vpop.permute.xlu0 %1956
      %1958 = vrot.lane.b32.xlu0 %v1873, 32
      %v1959 = vpop.permute.xlu0 %1958
      %1960 = vrot.lane.b32.xlu0 %v1874, 32
      %v1961 = vpop.permute.xlu0 %1960
      %1962 = vrot.lane.b32.xlu0 %v1875, 32
      %v1963 = vpop.permute.xlu0 %1962
      %1964 = vrot.lane.b32.xlu0 %v1876, 32
      %v1965 = vpop.permute.xlu0 %1964
      %1966 = vrot.lane.b32.xlu0 %v1877, 32
      %v1967 = vpop.permute.xlu0 %1966
      %1968 = vrot.lane.b32.xlu0 %v1878, 32
      %v1969 = vpop.permute.xlu0 %1968
      %1970 = vrot.lane.b32.xlu0 %v1879, 32
      %v1971 = vpop.permute.xlu0 %1970
      %1972 = vrot.lane.b32.xlu0 %v1880, 32
      %v1973 = vpop.permute.xlu0 %1972
      %1974 = vrot.lane.b32.xlu0 %v1881, 32
      %v1975 = vpop.permute.xlu0 %1974
      %1976 = vrot.lane.b32.xlu0 %v1882, 32
      %v1977 = vpop.permute.xlu0 %1976
      %1978 = vrot.lane.b32.xlu0 %v1883, 32
      %v1979 = vpop.permute.xlu0 %1978
      %vm2012 = vcmask 294144
      %2013 = vst.msk [vmem:[#allocation4] sm:$0xff] %vm2012, %v1917
      %2014 = vst.msk [vmem:[#allocation4 + $0x8] sm:$0xff] %vm2012, %v1919
      %2015 = vst.msk [vmem:[#allocation4 + $0x10] sm:$0xff] %vm2012, %v1921
      %2016 = vst.msk [vmem:[#allocation4 + $0x18] sm:$0xff] %vm2012, %v1923
      %2017 = vst.msk [vmem:[#allocation4 + $0x20] sm:$0xff] %vm2012, %v1925
      %2018 = vst.msk [vmem:[#allocation4 + $0x28] sm:$0xff] %vm2012, %v1927
      %2019 = vst.msk [vmem:[#allocation4 + $0x30] sm:$0xff] %vm2012, %v1929
      %2020 = vst.msk [vmem:[#allocation4 + $0x38] sm:$0xff] %vm2012, %v1931
      %2021 = vst.msk [vmem:[#allocation4 + $0x40] sm:$0xff] %vm2012, %v1933
      %2022 = vst.msk [vmem:[#allocation4 + $0x48] sm:$0xff] %vm2012, %v1935
      %2023 = vst.msk [vmem:[#allocation4 + $0x50] sm:$0xff] %vm2012, %v1937
      %2024 = vst.msk [vmem:[#allocation4 + $0x58] sm:$0xff] %vm2012, %v1939
      %2025 = vst.msk [vmem:[#allocation4 + $0x60] sm:$0xff] %vm2012, %v1941
      %2026 = vst.msk [vmem:[#allocation4 + $0x68] sm:$0xff] %vm2012, %v1943
      %2027 = vst.msk [vmem:[#allocation4 + $0x70] sm:$0xff] %vm2012, %v1945
      %2028 = vst.msk [vmem:[#allocation4 + $0x78] sm:$0xff] %vm2012, %v1947
      %2029 = vst.msk [vmem:[#allocation4 + $0x80] sm:$0xff] %vm2012, %v1949
      %2030 = vst.msk [vmem:[#allocation4 + $0x88] sm:$0xff] %vm2012, %v1951
      %2031 = vst.msk [vmem:[#allocation4 + $0x90] sm:$0xff] %vm2012, %v1953
      %2032 = vst.msk [vmem:[#allocation4 + $0x98] sm:$0xff] %vm2012, %v1955
      %2033 = vst.msk [vmem:[#allocation4 + $0xa0] sm:$0xff] %vm2012, %v1957
      %2034 = vst.msk [vmem:[#allocation4 + $0xa8] sm:$0xff] %vm2012, %v1959
      %2035 = vst.msk [vmem:[#allocation4 + $0xb0] sm:$0xff] %vm2012, %v1961
      %2036 = vst.msk [vmem:[#allocation4 + $0xb8] sm:$0xff] %vm2012, %v1963
      %2037 = vst.msk [vmem:[#allocation4 + $0xc0] sm:$0xff] %vm2012, %v1965
      %2038 = vst.msk [vmem:[#allocation4 + $0xc8] sm:$0xff] %vm2012, %v1967
      %2039 = vst.msk [vmem:[#allocation4 + $0xd0] sm:$0xff] %vm2012, %v1969
      %2040 = vst.msk [vmem:[#allocation4 + $0xd8] sm:$0xff] %vm2012, %v1971
      %2041 = vst.msk [vmem:[#allocation4 + $0xe0] sm:$0xff] %vm2012, %v1973
      %2042 = vst.msk [vmem:[#allocation4 + $0xe8] sm:$0xff] %vm2012, %v1975
      %2043 = vst.msk [vmem:[#allocation4 + $0xf0] sm:$0xff] %vm2012, %v1977
      %2044 = vst.msk [vmem:[#allocation4 + $0xf8] sm:$0xff] %vm2012, %v1979
      %v2045 = vld [vmem:[#allocation4] sm:$0xff]
      %v2046 = vld [vmem:[#allocation4 + $0x8] sm:$0xff]
      %v2047 = vld [vmem:[#allocation4 + $0x10] sm:$0xff]
      %v2048 = vld [vmem:[#allocation4 + $0x18] sm:$0xff]
      %v2049 = vld [vmem:[#allocation4 + $0x20] sm:$0xff]
      %v2050 = vld [vmem:[#allocation4 + $0x28] sm:$0xff]
      %v2051 = vld [vmem:[#allocation4 + $0x30] sm:$0xff]
      %v2052 = vld [vmem:[#allocation4 + $0x38] sm:$0xff]
      %v2053 = vld [vmem:[#allocation4 + $0x40] sm:$0xff]
      %v2054 = vld [vmem:[#allocation4 + $0x48] sm:$0xff]
      %v2055 = vld [vmem:[#allocation4 + $0x50] sm:$0xff]
      %v2056 = vld [vmem:[#allocation4 + $0x58] sm:$0xff]
      %v2057 = vld [vmem:[#allocation4 + $0x60] sm:$0xff]
      %v2058 = vld [vmem:[#allocation4 + $0x68] sm:$0xff]
      %v2059 = vld [vmem:[#allocation4 + $0x70] sm:$0xff]
      %v2060 = vld [vmem:[#allocation4 + $0x78] sm:$0xff]
      %v2061 = vld [vmem:[#allocation4 + $0x80] sm:$0xff]
      %v2062 = vld [vmem:[#allocation4 + $0x88] sm:$0xff]
      %v2063 = vld [vmem:[#allocation4 + $0x90] sm:$0xff]
      %v2064 = vld [vmem:[#allocation4 + $0x98] sm:$0xff]
      %v2065 = vld [vmem:[#allocation4 + $0xa0] sm:$0xff]
      %v2066 = vld [vmem:[#allocation4 + $0xa8] sm:$0xff]
      %v2067 = vld [vmem:[#allocation4 + $0xb0] sm:$0xff]
      %v2068 = vld [vmem:[#allocation4 + $0xb8] sm:$0xff]
      %v2069 = vld [vmem:[#allocation4 + $0xc0] sm:$0xff]
      %v2070 = vld [vmem:[#allocation4 + $0xc8] sm:$0xff]
      %v2071 = vld [vmem:[#allocation4 + $0xd0] sm:$0xff]
      %v2072 = vld [vmem:[#allocation4 + $0xd8] sm:$0xff]
      %v2073 = vld [vmem:[#allocation4 + $0xe0] sm:$0xff]
      %v2074 = vld [vmem:[#allocation4 + $0xe8] sm:$0xff]
      %v2075 = vld [vmem:[#allocation4 + $0xf0] sm:$0xff]
      %v2076 = vld [vmem:[#allocation4 + $0xf8] sm:$0xff]
      %v2077 = vld [vmem:[%s1] sm:$0xff]
      %v2078 = vld [vmem:[%s1 + $0x8] sm:$0xff]
      %v2079 = vld [vmem:[%s1 + $0x10] sm:$0xff]
      %v2080 = vld [vmem:[%s1 + $0x18] sm:$0xff]
      %v2081 = vld [vmem:[%s1 + $0x20] sm:$0xf]
      %v2082 = vld [vmem:[%s2] sm:$0x1]
      %v2084 = vperm.slane %v2082, 0
      %vm2086 = vcmask 293888
      %v2088 = vsel %vm2086, %v2045, 0
      %v2091 = vsel %vm2086, %v2046, 0
      %v2094 = vsel %vm2086, %v2047, 0
      %v2097 = vsel %vm2086, %v2048, 0
      %v2100 = vsel %vm2086, %v2049, 0
      %v2103 = vsel %vm2086, %v2050, 0
      %v2106 = vsel %vm2086, %v2051, 0
      %v2109 = vsel %vm2086, %v2052, 0
      %v2112 = vsel %vm2086, %v2053, 0
      %v2115 = vsel %vm2086, %v2054, 0
      %v2118 = vsel %vm2086, %v2055, 0
      %v2121 = vsel %vm2086, %v2056, 0
      %v2124 = vsel %vm2086, %v2057, 0
      %v2127 = vsel %vm2086, %v2058, 0
      %v2130 = vsel %vm2086, %v2059, 0
      %v2133 = vsel %vm2086, %v2060, 0
      %v2136 = vsel %vm2086, %v2061, 0
      %v2139 = vsel %vm2086, %v2062, 0
      %v2142 = vsel %vm2086, %v2063, 0
      %v2145 = vsel %vm2086, %v2064, 0
      %v2148 = vsel %vm2086, %v2065, 0
      %v2151 = vsel %vm2086, %v2066, 0
      %v2154 = vsel %vm2086, %v2067, 0
      %v2157 = vsel %vm2086, %v2068, 0
      %v2160 = vsel %vm2086, %v2069, 0
      %v2163 = vsel %vm2086, %v2070, 0
      %v2166 = vsel %vm2086, %v2071, 0
      %v2169 = vsel %vm2086, %v2072, 0
      %v2172 = vsel %vm2086, %v2073, 0
      %v2175 = vsel %vm2086, %v2074, 0
      %v2178 = vsel %vm2086, %v2075, 0
      %v2181 = vsel %vm2086, %v2076, 0
      %vm2183 = vcmask 1043456
      %v2185 = vsel %vm2183, %v2081, 0
      %2187 = vmatpush.msra.mxu0 0.0
      %2188 = vmatpush.msra.mxu0 0.0
      %2189 = vmatpush.msra.mxu0 0.0
      %2190 = vmatpush.msra.mxu0 0.0
      %2191 = vmatpush.msra.mxu0 0.0
      %2192 = vmatpush.msra.mxu0 0.0
      %2193 = vmatpush.msra.mxu0 0.0
      %2194 = vmatpush.msra.mxu0 0.0
      %2195 = vmatpush.msra.mxu0 0.0
      %2196 = vmatpush.msra.mxu0 0.0
      %2197 = vmatpush.msra.mxu0 0.0
      %2198 = vmatpush.msra.mxu0 %v2185
      %2199 = vmatpush.msra.mxu0 %v2080
      %2200 = vmatpush.msra.mxu0 %v2079
      %2201 = vmatpush.msra.mxu0 %v2078
      %2202 = vmatpush.msra.mxu0 %v2077
      %2203 = vmatmul.f32.gmra.mxu0 %v2088
      %v2204 = vpop.f32.mrf.mxu0
      %v2205 = vadd.f32 %v2084, %v2204
      %2206 = vmatmul.f32.gmra.mxu0 %v2091
      %v2207 = vpop.f32.mrf.mxu0
      %v2208 = vadd.f32 %v2084, %v2207
      %2209 = vmatmul.f32.gmra.mxu0 %v2094
      %v2210 = vpop.f32.mrf.mxu0
      %v2211 = vadd.f32 %v2084, %v2210
      %2212 = vmatmul.f32.gmra.mxu0 %v2097
      %v2213 = vpop.f32.mrf.mxu0
      %v2214 = vadd.f32 %v2084, %v2213
      %2215 = vmatmul.f32.gmra.mxu0 %v2100
      %v2216 = vpop.f32.mrf.mxu0
      %v2217 = vadd.f32 %v2084, %v2216
      %2218 = vmatmul.f32.gmra.mxu0 %v2103
      %v2219 = vpop.f32.mrf.mxu0
      %v2220 = vadd.f32 %v2084, %v2219
      %2221 = vmatmul.f32.gmra.mxu0 %v2106
      %v2222 = vpop.f32.mrf.mxu0
      %v2223 = vadd.f32 %v2084, %v2222
      %2224 = vmatmul.f32.gmra.mxu0 %v2109
      %v2225 = vpop.f32.mrf.mxu0
      %v2226 = vadd.f32 %v2084, %v2225
      %2227 = vmatmul.f32.gmra.mxu0 %v2112
      %v2228 = vpop.f32.mrf.mxu0
      %v2229 = vadd.f32 %v2084, %v2228
      %2230 = vmatmul.f32.gmra.mxu0 %v2115
      %v2231 = vpop.f32.mrf.mxu0
      %v2232 = vadd.f32 %v2084, %v2231
      %2233 = vmatmul.f32.gmra.mxu0 %v2118
      %v2234 = vpop.f32.mrf.mxu0
      %v2235 = vadd.f32 %v2084, %v2234
      %2236 = vmatmul.f32.gmra.mxu0 %v2121
      %v2237 = vpop.f32.mrf.mxu0
      %v2238 = vadd.f32 %v2084, %v2237
      %2239 = vmatmul.f32.gmra.mxu0 %v2124
      %v2240 = vpop.f32.mrf.mxu0
      %v2241 = vadd.f32 %v2084, %v2240
      %2242 = vmatmul.f32.gmra.mxu0 %v2127
      %v2243 = vpop.f32.mrf.mxu0
      %v2244 = vadd.f32 %v2084, %v2243
      %2245 = vmatmul.f32.gmra.mxu0 %v2130
      %v2246 = vpop.f32.mrf.mxu0
      %v2247 = vadd.f32 %v2084, %v2246
      %2248 = vmatmul.f32.gmra.mxu0 %v2133
      %v2249 = vpop.f32.mrf.mxu0
      %v2250 = vadd.f32 %v2084, %v2249
      %2251 = vmatmul.f32.gmra.mxu0 %v2136
      %v2252 = vpop.f32.mrf.mxu0
      %v2253 = vadd.f32 %v2084, %v2252
      %2254 = vmatmul.f32.gmra.mxu0 %v2139
      %v2255 = vpop.f32.mrf.mxu0
      %v2256 = vadd.f32 %v2084, %v2255
      %2257 = vmatmul.f32.gmra.mxu0 %v2142
      %v2258 = vpop.f32.mrf.mxu0
      %v2259 = vadd.f32 %v2084, %v2258
      %2260 = vmatmul.f32.gmra.mxu0 %v2145
      %v2261 = vpop.f32.mrf.mxu0
      %v2262 = vadd.f32 %v2084, %v2261
      %2263 = vmatmul.f32.gmra.mxu0 %v2148
      %v2264 = vpop.f32.mrf.mxu0
      %v2265 = vadd.f32 %v2084, %v2264
      %2266 = vmatmul.f32.gmra.mxu0 %v2151
      %v2267 = vpop.f32.mrf.mxu0
      %v2268 = vadd.f32 %v2084, %v2267
      %2269 = vmatmul.f32.gmra.mxu0 %v2154
      %v2270 = vpop.f32.mrf.mxu0
      %v2271 = vadd.f32 %v2084, %v2270
      %2272 = vmatmul.f32.gmra.mxu0 %v2157
      %v2273 = vpop.f32.mrf.mxu0
      %v2274 = vadd.f32 %v2084, %v2273
      %2275 = vmatmul.f32.gmra.mxu0 %v2160
      %v2276 = vpop.f32.mrf.mxu0
      %v2277 = vadd.f32 %v2084, %v2276
      %2278 = vmatmul.f32.gmra.mxu0 %v2163
      %v2279 = vpop.f32.mrf.mxu0
      %v2280 = vadd.f32 %v2084, %v2279
      %2281 = vmatmul.f32.gmra.mxu0 %v2166
      %v2282 = vpop.f32.mrf.mxu0
      %v2283 = vadd.f32 %v2084, %v2282
      %2284 = vmatmul.f32.gmra.mxu0 %v2169
      %v2285 = vpop.f32.mrf.mxu0
      %v2286 = vadd.f32 %v2084, %v2285
      %2287 = vmatmul.f32.gmra.mxu0 %v2172
      %v2288 = vpop.f32.mrf.mxu0
      %v2289 = vadd.f32 %v2084, %v2288
      %2290 = vmatmul.f32.gmra.mxu0 %v2175
      %v2291 = vpop.f32.mrf.mxu0
      %v2292 = vadd.f32 %v2084, %v2291
      %2293 = vmatmul.f32.gmra.mxu0 %v2178
      %v2294 = vpop.f32.mrf.mxu0
      %v2295 = vadd.f32 %v2084, %v2294
      %2296 = vmatmul.f32.gmra.mxu0 %v2181
      %v2297 = vpop.f32.mrf.mxu0
      %v2298 = vadd.f32 %v2084, %v2297
      %2299 = vdwg.mxu0
      %v2300 = vmax.f32 %v2205, 0.0
      %v2301 = vmax.f32 %v2208, 0.0
      %v2302 = vmax.f32 %v2211, 0.0
      %v2303 = vmax.f32 %v2214, 0.0
      %v2304 = vmax.f32 %v2217, 0.0
      %v2305 = vmax.f32 %v2220, 0.0
      %v2306 = vmax.f32 %v2223, 0.0
      %v2307 = vmax.f32 %v2226, 0.0
      %v2308 = vmax.f32 %v2229, 0.0
      %v2309 = vmax.f32 %v2232, 0.0
      %v2310 = vmax.f32 %v2235, 0.0
      %v2311 = vmax.f32 %v2238, 0.0
      %v2312 = vmax.f32 %v2241, 0.0
      %v2313 = vmax.f32 %v2244, 0.0
      %v2314 = vmax.f32 %v2247, 0.0
      %v2315 = vmax.f32 %v2250, 0.0
      %v2316 = vmax.f32 %v2253, 0.0
      %v2317 = vmax.f32 %v2256, 0.0
      %v2318 = vmax.f32 %v2259, 0.0
      %v2319 = vmax.f32 %v2262, 0.0
      %v2320 = vmax.f32 %v2265, 0.0
      %v2321 = vmax.f32 %v2268, 0.0
      %v2322 = vmax.f32 %v2271, 0.0
      %v2323 = vmax.f32 %v2274, 0.0
      %v2324 = vmax.f32 %v2277, 0.0
      %v2325 = vmax.f32 %v2280, 0.0
      %v2326 = vmax.f32 %v2283, 0.0
      %v2327 = vmax.f32 %v2286, 0.0
      %v2328 = vmax.f32 %v2289, 0.0
      %v2329 = vmax.f32 %v2292, 0.0
      %v2330 = vmax.f32 %v2295, 0.0
      %v2331 = vmax.f32 %v2298, 0.0
      %s2332 = scalar_lea.vmem [#allocation3], 24
      %2333 = vst.msk [vmem:[%s2332 + $0x1] sm:$0xff] %vm390, %v2300
      %2334 = vst.msk [vmem:[%s2332 + $0x9] sm:$0xff] %vm390, %v2301
      %2335 = vst.msk [vmem:[%s2332 + $0x19] sm:$0xff] %vm390, %v2302
      %2336 = vst.msk [vmem:[%s2332 + $0x21] sm:$0xff] %vm390, %v2303
      %2337 = vst.msk [vmem:[%s2332 + $0x31] sm:$0xff] %vm390, %v2304
      %2338 = vst.msk [vmem:[%s2332 + $0x39] sm:$0xff] %vm390, %v2305
      %2339 = vst.msk [vmem:[%s2332 + $0x49] sm:$0xff] %vm390, %v2306
      %2340 = vst.msk [vmem:[%s2332 + $0x51] sm:$0xff] %vm390, %v2307
      %2341 = vst.msk [vmem:[%s2332 + $0x61] sm:$0xff] %vm390, %v2308
      %2342 = vst.msk [vmem:[%s2332 + $0x69] sm:$0xff] %vm390, %v2309
      %2343 = vst.msk [vmem:[%s2332 + $0x79] sm:$0xff] %vm390, %v2310
      %2344 = vst.msk [vmem:[%s2332 + $0x81] sm:$0xff] %vm390, %v2311
      %2345 = vst.msk [vmem:[%s2332 + $0x91] sm:$0xff] %vm390, %v2312
      %2346 = vst.msk [vmem:[%s2332 + $0x99] sm:$0xff] %vm390, %v2313
      %2347 = vst.msk [vmem:[%s2332 + $0xa9] sm:$0xff] %vm390, %v2314
      %2348 = vst.msk [vmem:[%s2332 + $0xb1] sm:$0xff] %vm390, %v2315
      %2349 = vst.msk [vmem:[%s2332 + $0xc1] sm:$0xff] %vm390, %v2316
      %2350 = vst.msk [vmem:[%s2332 + $0xc9] sm:$0xff] %vm390, %v2317
      %2351 = vst.msk [vmem:[%s2332 + $0xd9] sm:$0xff] %vm390, %v2318
      %2352 = vst.msk [vmem:[%s2332 + $0xe1] sm:$0xff] %vm390, %v2319
      %2353 = vst.msk [vmem:[%s2332 + $0xf1] sm:$0xff] %vm390, %v2320
      %2354 = vst.msk [vmem:[%s2332 + $0xf9] sm:$0xff] %vm390, %v2321
      %2355 = vst.msk [vmem:[%s2332 + $0x109] sm:$0xff] %vm390, %v2322
      %2356 = vst.msk [vmem:[%s2332 + $0x111] sm:$0xff] %vm390, %v2323
      %2357 = vst.msk [vmem:[%s2332 + $0x121] sm:$0xff] %vm390, %v2324
      %2358 = vst.msk [vmem:[%s2332 + $0x129] sm:$0xff] %vm390, %v2325
      %2359 = vst.msk [vmem:[%s2332 + $0x139] sm:$0xff] %vm390, %v2326
      %2360 = vst.msk [vmem:[%s2332 + $0x141] sm:$0xff] %vm390, %v2327
      %2361 = vst.msk [vmem:[%s2332 + $0x151] sm:$0xff] %vm390, %v2328
      %2362 = vst.msk [vmem:[%s2332 + $0x159] sm:$0xff] %vm390, %v2329
      %2363 = vst.msk [vmem:[%s2332 + $0x169] sm:$0xff] %vm390, %v2330
      %2364 = vst.msk [vmem:[%s2332 + $0x171] sm:$0xff] %vm390, %v2331
      %v2365 = vld [vmem:[#allocation3] ss:$2 sm:$0xff]
      %s2366 = scalar_lea.vmem [#allocation3], 48
      %v2367 = vld [vmem:[%s2366] ss:$2 sm:$0xff]
      %s2368 = scalar_lea.vmem [#allocation3], 96
      %v2369 = vld [vmem:[%s2368] ss:$2 sm:$0xff]
      %s2370 = scalar_lea.vmem [#allocation3], 144
      %v2371 = vld [vmem:[%s2370] ss:$2 sm:$0xff]
      %s2372 = scalar_lea.vmem [#allocation3], 192
      %v2373 = vld [vmem:[%s2372] ss:$2 sm:$0xff]
      %s2374 = scalar_lea.vmem [#allocation3], 240
      %v2375 = vld [vmem:[%s2374] ss:$2 sm:$0xff]
      %s2376 = scalar_lea.vmem [#allocation3], 288
      %v2377 = vld [vmem:[%s2376] ss:$2 sm:$0xff]
      %s2378 = scalar_lea.vmem [#allocation3], 336
      %v2379 = vld [vmem:[%s2378] ss:$2 sm:$0xff]
      %v2380 = vld [vmem:[%s3] sm:$0xff]
      %s2381 = scalar_lea.vmem [#allocation3], 1
      %v2382 = vld [vmem:[%s2381] ss:$2 sm:$0xff]
      %s2383 = scalar_lea.vmem [#allocation3], 49
      %v2384 = vld [vmem:[%s2383] ss:$2 sm:$0xff]
      %s2385 = scalar_lea.vmem [#allocation3], 97
      %v2386 = vld [vmem:[%s2385] ss:$2 sm:$0xff]
      %s2387 = scalar_lea.vmem [#allocation3], 145
      %v2388 = vld [vmem:[%s2387] ss:$2 sm:$0xff]
      %s2389 = scalar_lea.vmem [#allocation3], 193
      %v2390 = vld [vmem:[%s2389] ss:$2 sm:$0xff]
      %s2391 = scalar_lea.vmem [#allocation3], 241
      %v2392 = vld [vmem:[%s2391] ss:$2 sm:$0xff]
      %s2393 = scalar_lea.vmem [#allocation3], 289
      %v2394 = vld [vmem:[%s2393] ss:$2 sm:$0xff]
      %s2395 = scalar_lea.vmem [#allocation3], 337
      %v2396 = vld [vmem:[%s2395] ss:$2 sm:$0xff]
      %s2397 = scalar_lea.vmem %s3, 8
      %v2398 = vld [vmem:[%s2397] sm:$0xff]
      %v2400 = vsel %vm390, %v2382, 0
      %v2403 = vsel %vm390, %v2384, 0
      %v2406 = vsel %vm390, %v2386, 0
      %v2409 = vsel %vm390, %v2388, 0
      %v2412 = vsel %vm390, %v2390, 0
      %v2415 = vsel %vm390, %v2392, 0
      %v2418 = vsel %vm390, %v2394, 0
      %v2421 = vsel %vm390, %v2396, 0
      %2423 = vmatpush.msra.mxu0 0.0
      %2424 = vmatpush.msra.mxu0 0.0
      %2425 = vmatpush.msra.mxu0 0.0
      %2426 = vmatpush.msra.mxu0 0.0
      %2427 = vmatpush.msra.mxu0 0.0
      %2428 = vmatpush.msra.mxu0 0.0
      %2429 = vmatpush.msra.mxu0 0.0
      %2430 = vmatpush.msra.mxu0 0.0
      %2431 = vmatpush.msra.mxu0 0.0
      %2432 = vmatpush.msra.mxu0 0.0
      %2433 = vmatpush.msra.mxu0 0.0
      %2434 = vmatpush.msra.mxu0 0.0
      %2435 = vmatpush.msra.mxu0 0.0
      %2436 = vmatpush.msra.mxu0 0.0
      %2437 = vmatpush.msra.mxu0 0.0
      %2438 = vmatpush.msra.mxu0 %v2398
      %2439 = vmatmul.f32.gmra.mxu0 %v2400
      %v2440 = vpop.f32.mrf.mxu0
      %v2441 = vadd.f32 0.0, %v2440
      %2442 = vmatmul.f32.gmra.mxu0 %v2403
      %v2443 = vpop.f32.mrf.mxu0
      %v2444 = vadd.f32 0.0, %v2443
      %2445 = vmatmul.f32.gmra.mxu0 %v2406
      %v2446 = vpop.f32.mrf.mxu0
      %v2447 = vadd.f32 0.0, %v2446
      %2448 = vmatmul.f32.gmra.mxu0 %v2409
      %v2449 = vpop.f32.mrf.mxu0
      %v2450 = vadd.f32 0.0, %v2449
      %2451 = vmatmul.f32.gmra.mxu0 %v2412
      %v2452 = vpop.f32.mrf.mxu0
      %v2453 = vadd.f32 0.0, %v2452
      %2454 = vmatmul.f32.gmra.mxu0 %v2415
      %v2455 = vpop.f32.mrf.mxu0
      %v2456 = vadd.f32 0.0, %v2455
      %2457 = vmatmul.f32.gmra.mxu0 %v2418
      %v2458 = vpop.f32.mrf.mxu0
      %v2459 = vadd.f32 0.0, %v2458
      %2460 = vmatmul.f32.gmra.mxu0 %v2421
      %v2461 = vpop.f32.mrf.mxu0
      %v2462 = vadd.f32 0.0, %v2461
      %2463 = vdwg.mxu0
      %v2465 = vsel %vm390, %v2365, 0
      %v2468 = vsel %vm390, %v2367, 0
      %v2471 = vsel %vm390, %v2369, 0
      %v2474 = vsel %vm390, %v2371, 0
      %v2477 = vsel %vm390, %v2373, 0
      %v2480 = vsel %vm390, %v2375, 0
      %v2483 = vsel %vm390, %v2377, 0
      %v2486 = vsel %vm390, %v2379, 0
      %2488 = vmatpush.msra.mxu0 0.0
      %2489 = vmatpush.msra.mxu0 0.0
      %2490 = vmatpush.msra.mxu0 0.0
      %2491 = vmatpush.msra.mxu0 0.0
      %2492 = vmatpush.msra.mxu0 0.0
      %2493 = vmatpush.msra.mxu0 0.0
      %2494 = vmatpush.msra.mxu0 0.0
      %2495 = vmatpush.msra.mxu0 0.0
      %2496 = vmatpush.msra.mxu0 0.0
      %2497 = vmatpush.msra.mxu0 0.0
      %2498 = vmatpush.msra.mxu0 0.0
      %2499 = vmatpush.msra.mxu0 0.0
      %2500 = vmatpush.msra.mxu0 0.0
      %2501 = vmatpush.msra.mxu0 0.0
      %2502 = vmatpush.msra.mxu0 0.0
      %2503 = vmatpush.msra.mxu0 %v2380
      %2504 = vmatmul.f32.gmra.mxu0 %v2465
      %v2505 = vpop.f32.mrf.mxu0
      %v2506 = vadd.f32 %v2441, %v2505
      %2507 = vmatmul.f32.gmra.mxu0 %v2468
      %v2508 = vpop.f32.mrf.mxu0
      %v2509 = vadd.f32 %v2444, %v2508
      %2510 = vmatmul.f32.gmra.mxu0 %v2471
      %v2511 = vpop.f32.mrf.mxu0
      %v2512 = vadd.f32 %v2447, %v2511
      %2513 = vmatmul.f32.gmra.mxu0 %v2474
      %v2514 = vpop.f32.mrf.mxu0
      %v2515 = vadd.f32 %v2450, %v2514
      %2516 = vmatmul.f32.gmra.mxu0 %v2477
      %v2517 = vpop.f32.mrf.mxu0
      %v2518 = vadd.f32 %v2453, %v2517
      %2519 = vmatmul.f32.gmra.mxu0 %v2480
      %v2520 = vpop.f32.mrf.mxu0
      %v2521 = vadd.f32 %v2456, %v2520
      %2522 = vmatmul.f32.gmra.mxu0 %v2483
      %v2523 = vpop.f32.mrf.mxu0
      %v2524 = vadd.f32 %v2459, %v2523
      %2525 = vmatmul.f32.gmra.mxu0 %v2486
      %v2526 = vpop.f32.mrf.mxu0
      %v2527 = vadd.f32 %v2462, %v2526
      %2528 = vdwg.mxu0
      %s2529 = scalar_lea.vmem [#allocation3], 2
      %v2530 = vld [vmem:[%s2529] ss:$2 sm:$0xff]
      %s2531 = scalar_lea.vmem [#allocation3], 50
      %v2532 = vld [vmem:[%s2531] ss:$2 sm:$0xff]
      %s2533 = scalar_lea.vmem [#allocation3], 98
      %v2534 = vld [vmem:[%s2533] ss:$2 sm:$0xff]
      %s2535 = scalar_lea.vmem [#allocation3], 146
      %v2536 = vld [vmem:[%s2535] ss:$2 sm:$0xff]
      %s2537 = scalar_lea.vmem [#allocation3], 194
      %v2538 = vld [vmem:[%s2537] ss:$2 sm:$0xff]
      %s2539 = scalar_lea.vmem [#allocation3], 242
      %v2540 = vld [vmem:[%s2539] ss:$2 sm:$0xff]
      %s2541 = scalar_lea.vmem [#allocation3], 290
      %v2542 = vld [vmem:[%s2541] ss:$2 sm:$0xff]
      %s2543 = scalar_lea.vmem [#allocation3], 338
      %v2544 = vld [vmem:[%s2543] ss:$2 sm:$0xff]
      %s2545 = scalar_lea.vmem %s3, 16
      %v2546 = vld [vmem:[%s2545] sm:$0xff]
      %v2548 = vsel %vm390, %v2530, 0
      %v2551 = vsel %vm390, %v2532, 0
      %v2554 = vsel %vm390, %v2534, 0
      %v2557 = vsel %vm390, %v2536, 0
      %v2560 = vsel %vm390, %v2538, 0
      %v2563 = vsel %vm390, %v2540, 0
      %v2566 = vsel %vm390, %v2542, 0
      %v2569 = vsel %vm390, %v2544, 0
      %2571 = vmatpush.msra.mxu0 0.0
      %2572 = vmatpush.msra.mxu0 0.0
      %2573 = vmatpush.msra.mxu0 0.0
      %2574 = vmatpush.msra.mxu0 0.0
      %2575 = vmatpush.msra.mxu0 0.0
      %2576 = vmatpush.msra.mxu0 0.0
      %2577 = vmatpush.msra.mxu0 0.0
      %2578 = vmatpush.msra.mxu0 0.0
      %2579 = vmatpush.msra.mxu0 0.0
      %2580 = vmatpush.msra.mxu0 0.0
      %2581 = vmatpush.msra.mxu0 0.0
      %2582 = vmatpush.msra.mxu0 0.0
      %2583 = vmatpush.msra.mxu0 0.0
      %2584 = vmatpush.msra.mxu0 0.0
      %2585 = vmatpush.msra.mxu0 0.0
      %2586 = vmatpush.msra.mxu0 %v2546
      %2587 = vmatmul.f32.gmra.mxu0 %v2548
      %v2588 = vpop.f32.mrf.mxu0
      %v2589 = vadd.f32 0.0, %v2588
      %2590 = vmatmul.f32.gmra.mxu0 %v2551
      %v2591 = vpop.f32.mrf.mxu0
      %v2592 = vadd.f32 0.0, %v2591
      %2593 = vmatmul.f32.gmra.mxu0 %v2554
      %v2594 = vpop.f32.mrf.mxu0
      %v2595 = vadd.f32 0.0, %v2594
      %2596 = vmatmul.f32.gmra.mxu0 %v2557
      %v2597 = vpop.f32.mrf.mxu0
      %v2598 = vadd.f32 0.0, %v2597
      %2599 = vmatmul.f32.gmra.mxu0 %v2560
      %v2600 = vpop.f32.mrf.mxu0
      %v2601 = vadd.f32 0.0, %v2600
      %2602 = vmatmul.f32.gmra.mxu0 %v2563
      %v2603 = vpop.f32.mrf.mxu0
      %v2604 = vadd.f32 0.0, %v2603
      %2605 = vmatmul.f32.gmra.mxu0 %v2566
      %v2606 = vpop.f32.mrf.mxu0
      %v2607 = vadd.f32 0.0, %v2606
      %2608 = vmatmul.f32.gmra.mxu0 %v2569
      %v2609 = vpop.f32.mrf.mxu0
      %v2610 = vadd.f32 0.0, %v2609
      %2611 = vdwg.mxu0
      %v2612 = vadd.f32 %v2506, %v2589
      %v2613 = vadd.f32 %v2509, %v2592
      %v2614 = vadd.f32 %v2512, %v2595
      %v2615 = vadd.f32 %v2515, %v2598
      %v2616 = vadd.f32 %v2518, %v2601
      %v2617 = vadd.f32 %v2521, %v2604
      %v2618 = vadd.f32 %v2524, %v2607
      %v2619 = vadd.f32 %v2527, %v2610
      %s2620 = scalar_lea.vmem [#allocation3], 3
      %v2621 = vld [vmem:[%s2620] ss:$2 sm:$0xff]
      %s2622 = scalar_lea.vmem [#allocation3], 51
      %v2623 = vld [vmem:[%s2622] ss:$2 sm:$0xff]
      %s2624 = scalar_lea.vmem [#allocation3], 99
      %v2625 = vld [vmem:[%s2624] ss:$2 sm:$0xff]
      %s2626 = scalar_lea.vmem [#allocation3], 147
      %v2627 = vld [vmem:[%s2626] ss:$2 sm:$0xff]
      %s2628 = scalar_lea.vmem [#allocation3], 195
      %v2629 = vld [vmem:[%s2628] ss:$2 sm:$0xff]
      %s2630 = scalar_lea.vmem [#allocation3], 243
      %v2631 = vld [vmem:[%s2630] ss:$2 sm:$0xff]
      %s2632 = scalar_lea.vmem [#allocation3], 291
      %v2633 = vld [vmem:[%s2632] ss:$2 sm:$0xff]
      %s2634 = scalar_lea.vmem [#allocation3], 339
      %v2635 = vld [vmem:[%s2634] ss:$2 sm:$0xff]
      %s2636 = scalar_lea.vmem %s3, 24
      %v2637 = vld [vmem:[%s2636] sm:$0xff]
      %v2639 = vsel %vm390, %v2621, 0
      %v2642 = vsel %vm390, %v2623, 0
      %v2645 = vsel %vm390, %v2625, 0
      %v2648 = vsel %vm390, %v2627, 0
      %v2651 = vsel %vm390, %v2629, 0
      %v2654 = vsel %vm390, %v2631, 0
      %v2657 = vsel %vm390, %v2633, 0
      %v2660 = vsel %vm390, %v2635, 0
      %2662 = vmatpush.msra.mxu0 0.0
      %2663 = vmatpush.msra.mxu0 0.0
      %2664 = vmatpush.msra.mxu0 0.0
      %2665 = vmatpush.msra.mxu0 0.0
      %2666 = vmatpush.msra.mxu0 0.0
      %2667 = vmatpush.msra.mxu0 0.0
      %2668 = vmatpush.msra.mxu0 0.0
      %2669 = vmatpush.msra.mxu0 0.0
      %2670 = vmatpush.msra.mxu0 0.0
      %2671 = vmatpush.msra.mxu0 0.0
      %2672 = vmatpush.msra.mxu0 0.0
      %2673 = vmatpush.msra.mxu0 0.0
      %2674 = vmatpush.msra.mxu0 0.0
      %2675 = vmatpush.msra.mxu0 0.0
      %2676 = vmatpush.msra.mxu0 0.0
      %2677 = vmatpush.msra.mxu0 %v2637
      %2678 = vmatmul.f32.gmra.mxu0 %v2639
      %v2679 = vpop.f32.mrf.mxu0
      %v2680 = vadd.f32 0.0, %v2679
      %2681 = vmatmul.f32.gmra.mxu0 %v2642
      %v2682 = vpop.f32.mrf.mxu0
      %v2683 = vadd.f32 0.0, %v2682
      %2684 = vmatmul.f32.gmra.mxu0 %v2645
      %v2685 = vpop.f32.mrf.mxu0
      %v2686 = vadd.f32 0.0, %v2685
      %2687 = vmatmul.f32.gmra.mxu0 %v2648
      %v2688 = vpop.f32.mrf.mxu0
      %v2689 = vadd.f32 0.0, %v2688
      %2690 = vmatmul.f32.gmra.mxu0 %v2651
      %v2691 = vpop.f32.mrf.mxu0
      %v2692 = vadd.f32 0.0, %v2691
      %2693 = vmatmul.f32.gmra.mxu0 %v2654
      %v2694 = vpop.f32.mrf.mxu0
      %v2695 = vadd.f32 0.0, %v2694
      %2696 = vmatmul.f32.gmra.mxu0 %v2657
      %v2697 = vpop.f32.mrf.mxu0
      %v2698 = vadd.f32 0.0, %v2697
      %2699 = vmatmul.f32.gmra.mxu0 %v2660
      %v2700 = vpop.f32.mrf.mxu0
      %v2701 = vadd.f32 0.0, %v2700
      %2702 = vdwg.mxu0
      %v2703 = vadd.f32 %v2612, %v2680
      %v2704 = vadd.f32 %v2613, %v2683
      %v2705 = vadd.f32 %v2614, %v2686
      %v2706 = vadd.f32 %v2615, %v2689
      %v2707 = vadd.f32 %v2616, %v2692
      %v2708 = vadd.f32 %v2617, %v2695
      %v2709 = vadd.f32 %v2618, %v2698
      %v2710 = vadd.f32 %v2619, %v2701
      %v2711 = vld [vmem:[%s2332] ss:$2 sm:$0xff]
      %s2712 = scalar_lea.vmem %s2332, 48 [#allocation3]
      %v2713 = vld [vmem:[%s2712] ss:$2 sm:$0xff]
      %s2714 = scalar_lea.vmem %s2332, 96 [#allocation3]
      %v2715 = vld [vmem:[%s2714] ss:$2 sm:$0xff]
      %s2716 = scalar_lea.vmem %s2332, 144 [#allocation3]
      %v2717 = vld [vmem:[%s2716] ss:$2 sm:$0xff]
      %s2718 = scalar_lea.vmem %s2332, 192 [#allocation3]
      %v2719 = vld [vmem:[%s2718] ss:$2 sm:$0xff]
      %s2720 = scalar_lea.vmem %s2332, 240 [#allocation3]
      %v2721 = vld [vmem:[%s2720] ss:$2 sm:$0xff]
      %s2722 = scalar_lea.vmem %s2332, 288 [#allocation3]
      %v2723 = vld [vmem:[%s2722] ss:$2 sm:$0xff]
      %s2724 = scalar_lea.vmem %s2332, 336 [#allocation3]
      %v2725 = vld [vmem:[%s2724] ss:$2 sm:$0xff]
      %s2726 = scalar_lea.vmem %s3, 32
      %v2727 = vld [vmem:[%s2726] sm:$0xff]
      %v2729 = vsel %vm390, %v2711, 0
      %v2732 = vsel %vm390, %v2713, 0
      %v2735 = vsel %vm390, %v2715, 0
      %v2738 = vsel %vm390, %v2717, 0
      %v2741 = vsel %vm390, %v2719, 0
      %v2744 = vsel %vm390, %v2721, 0
      %v2747 = vsel %vm390, %v2723, 0
      %v2750 = vsel %vm390, %v2725, 0
      %2752 = vmatpush.msra.mxu0 0.0
      %2753 = vmatpush.msra.mxu0 0.0
      %2754 = vmatpush.msra.mxu0 0.0
      %2755 = vmatpush.msra.mxu0 0.0
      %2756 = vmatpush.msra.mxu0 0.0
      %2757 = vmatpush.msra.mxu0 0.0
      %2758 = vmatpush.msra.mxu0 0.0
      %2759 = vmatpush.msra.mxu0 0.0
      %2760 = vmatpush.msra.mxu0 0.0
      %2761 = vmatpush.msra.mxu0 0.0
      %2762 = vmatpush.msra.mxu0 0.0
      %2763 = vmatpush.msra.mxu0 0.0
      %2764 = vmatpush.msra.mxu0 0.0
      %2765 = vmatpush.msra.mxu0 0.0
      %2766 = vmatpush.msra.mxu0 0.0
      %2767 = vmatpush.msra.mxu0 %v2727
      %2768 = vmatmul.f32.gmra.mxu0 %v2729
      %v2769 = vpop.f32.mrf.mxu0
      %v2770 = vadd.f32 0.0, %v2769
      %2771 = vmatmul.f32.gmra.mxu0 %v2732
      %v2772 = vpop.f32.mrf.mxu0
      %v2773 = vadd.f32 0.0, %v2772
      %2774 = vmatmul.f32.gmra.mxu0 %v2735
      %v2775 = vpop.f32.mrf.mxu0
      %v2776 = vadd.f32 0.0, %v2775
      %2777 = vmatmul.f32.gmra.mxu0 %v2738
      %v2778 = vpop.f32.mrf.mxu0
      %v2779 = vadd.f32 0.0, %v2778
      %2780 = vmatmul.f32.gmra.mxu0 %v2741
      %v2781 = vpop.f32.mrf.mxu0
      %v2782 = vadd.f32 0.0, %v2781
      %2783 = vmatmul.f32.gmra.mxu0 %v2744
      %v2784 = vpop.f32.mrf.mxu0
      %v2785 = vadd.f32 0.0, %v2784
      %2786 = vmatmul.f32.gmra.mxu0 %v2747
      %v2787 = vpop.f32.mrf.mxu0
      %v2788 = vadd.f32 0.0, %v2787
      %2789 = vmatmul.f32.gmra.mxu0 %v2750
      %v2790 = vpop.f32.mrf.mxu0
      %v2791 = vadd.f32 0.0, %v2790
      %2792 = vdwg.mxu0
      %v2793 = vadd.f32 %v2703, %v2770
      %v2794 = vadd.f32 %v2704, %v2773
      %v2795 = vadd.f32 %v2705, %v2776
      %v2796 = vadd.f32 %v2706, %v2779
      %v2797 = vadd.f32 %v2707, %v2782
      %v2798 = vadd.f32 %v2708, %v2785
      %v2799 = vadd.f32 %v2709, %v2788
      %v2800 = vadd.f32 %v2710, %v2791
      %s2801 = scalar_lea.vmem %s2332, 1 [#allocation3]
      %v2802 = vld [vmem:[%s2801] ss:$2 sm:$0xff]
      %s2803 = scalar_lea.vmem %s2332, 49 [#allocation3]
      %v2804 = vld [vmem:[%s2803] ss:$2 sm:$0xff]
      %s2805 = scalar_lea.vmem %s2332, 97 [#allocation3]
      %v2806 = vld [vmem:[%s2805] ss:$2 sm:$0xff]
      %s2807 = scalar_lea.vmem %s2332, 145 [#allocation3]
      %v2808 = vld [vmem:[%s2807] ss:$2 sm:$0xff]
      %s2809 = scalar_lea.vmem %s2332, 193 [#allocation3]
      %v2810 = vld [vmem:[%s2809] ss:$2 sm:$0xff]
      %s2811 = scalar_lea.vmem %s2332, 241 [#allocation3]
      %v2812 = vld [vmem:[%s2811] ss:$2 sm:$0xff]
      %s2813 = scalar_lea.vmem %s2332, 289 [#allocation3]
      %v2814 = vld [vmem:[%s2813] ss:$2 sm:$0xff]
      %s2815 = scalar_lea.vmem %s2332, 337 [#allocation3]
      %v2816 = vld [vmem:[%s2815] ss:$2 sm:$0xff]
      %s2817 = scalar_lea.vmem %s3, 40
      %v2818 = vld [vmem:[%s2817] sm:$0xff]
      %v2820 = vsel %vm390, %v2802, 0
      %v2823 = vsel %vm390, %v2804, 0
      %v2826 = vsel %vm390, %v2806, 0
      %v2829 = vsel %vm390, %v2808, 0
      %v2832 = vsel %vm390, %v2810, 0
      %v2835 = vsel %vm390, %v2812, 0
      %v2838 = vsel %vm390, %v2814, 0
      %v2841 = vsel %vm390, %v2816, 0
      %2843 = vmatpush.msra.mxu0 0.0
      %2844 = vmatpush.msra.mxu0 0.0
      %2845 = vmatpush.msra.mxu0 0.0
      %2846 = vmatpush.msra.mxu0 0.0
      %2847 = vmatpush.msra.mxu0 0.0
      %2848 = vmatpush.msra.mxu0 0.0
      %2849 = vmatpush.msra.mxu0 0.0
      %2850 = vmatpush.msra.mxu0 0.0
      %2851 = vmatpush.msra.mxu0 0.0
      %2852 = vmatpush.msra.mxu0 0.0
      %2853 = vmatpush.msra.mxu0 0.0
      %2854 = vmatpush.msra.mxu0 0.0
      %2855 = vmatpush.msra.mxu0 0.0
      %2856 = vmatpush.msra.mxu0 0.0
      %2857 = vmatpush.msra.mxu0 0.0
      %2858 = vmatpush.msra.mxu0 %v2818
      %2859 = vmatmul.f32.gmra.mxu0 %v2820
      %v2860 = vpop.f32.mrf.mxu0
      %v2861 = vadd.f32 0.0, %v2860
      %2862 = vmatmul.f32.gmra.mxu0 %v2823
      %v2863 = vpop.f32.mrf.mxu0
      %v2864 = vadd.f32 0.0, %v2863
      %2865 = vmatmul.f32.gmra.mxu0 %v2826
      %v2866 = vpop.f32.mrf.mxu0
      %v2867 = vadd.f32 0.0, %v2866
      %2868 = vmatmul.f32.gmra.mxu0 %v2829
      %v2869 = vpop.f32.mrf.mxu0
      %v2870 = vadd.f32 0.0, %v2869
      %2871 = vmatmul.f32.gmra.mxu0 %v2832
      %v2872 = vpop.f32.mrf.mxu0
      %v2873 = vadd.f32 0.0, %v2872
      %2874 = vmatmul.f32.gmra.mxu0 %v2835
      %v2875 = vpop.f32.mrf.mxu0
      %v2876 = vadd.f32 0.0, %v2875
      %2877 = vmatmul.f32.gmra.mxu0 %v2838
      %v2878 = vpop.f32.mrf.mxu0
      %v2879 = vadd.f32 0.0, %v2878
      %2880 = vmatmul.f32.gmra.mxu0 %v2841
      %v2881 = vpop.f32.mrf.mxu0
      %v2882 = vadd.f32 0.0, %v2881
      %2883 = vdwg.mxu0
      %v2884 = vadd.f32 %v2793, %v2861
      %v2885 = vadd.f32 %v2794, %v2864
      %v2886 = vadd.f32 %v2795, %v2867
      %v2887 = vadd.f32 %v2796, %v2870
      %v2888 = vadd.f32 %v2797, %v2873
      %v2889 = vadd.f32 %v2798, %v2876
      %v2890 = vadd.f32 %v2799, %v2879
      %v2891 = vadd.f32 %v2800, %v2882
      %s2892 = scalar_lea.vmem %s2332, 2 [#allocation3]
      %v2893 = vld [vmem:[%s2892] ss:$2 sm:$0xff]
      %s2894 = scalar_lea.vmem %s2332, 50 [#allocation3]
      %v2895 = vld [vmem:[%s2894] ss:$2 sm:$0xff]
      %s2896 = scalar_lea.vmem %s2332, 98 [#allocation3]
      %v2897 = vld [vmem:[%s2896] ss:$2 sm:$0xff]
      %s2898 = scalar_lea.vmem %s2332, 146 [#allocation3]
      %v2899 = vld [vmem:[%s2898] ss:$2 sm:$0xff]
      %s2900 = scalar_lea.vmem %s2332, 194 [#allocation3]
      %v2901 = vld [vmem:[%s2900] ss:$2 sm:$0xff]
      %s2902 = scalar_lea.vmem %s2332, 242 [#allocation3]
      %v2903 = vld [vmem:[%s2902] ss:$2 sm:$0xff]
      %s2904 = scalar_lea.vmem %s2332, 290 [#allocation3]
      %v2905 = vld [vmem:[%s2904] ss:$2 sm:$0xff]
      %s2906 = scalar_lea.vmem %s2332, 338 [#allocation3]
      %v2907 = vld [vmem:[%s2906] ss:$2 sm:$0xff]
      %s2908 = scalar_lea.vmem %s3, 48
      %v2909 = vld [vmem:[%s2908] sm:$0xff]
      %v2911 = vsel %vm390, %v2893, 0
      %v2914 = vsel %vm390, %v2895, 0
      %v2917 = vsel %vm390, %v2897, 0
      %v2920 = vsel %vm390, %v2899, 0
      %v2923 = vsel %vm390, %v2901, 0
      %v2926 = vsel %vm390, %v2903, 0
      %v2929 = vsel %vm390, %v2905, 0
      %v2932 = vsel %vm390, %v2907, 0
      %2934 = vmatpush.msra.mxu0 0.0
      %2935 = vmatpush.msra.mxu0 0.0
      %2936 = vmatpush.msra.mxu0 0.0
      %2937 = vmatpush.msra.mxu0 0.0
      %2938 = vmatpush.msra.mxu0 0.0
      %2939 = vmatpush.msra.mxu0 0.0
      %2940 = vmatpush.msra.mxu0 0.0
      %2941 = vmatpush.msra.mxu0 0.0
      %2942 = vmatpush.msra.mxu0 0.0
      %2943 = vmatpush.msra.mxu0 0.0
      %2944 = vmatpush.msra.mxu0 0.0
      %2945 = vmatpush.msra.mxu0 0.0
      %2946 = vmatpush.msra.mxu0 0.0
      %2947 = vmatpush.msra.mxu0 0.0
      %2948 = vmatpush.msra.mxu0 0.0
      %2949 = vmatpush.msra.mxu0 %v2909
      %2950 = vmatmul.f32.gmra.mxu0 %v2911
      %v2951 = vpop.f32.mrf.mxu0
      %v2952 = vadd.f32 0.0, %v2951
      %2953 = vmatmul.f32.gmra.mxu0 %v2914
      %v2954 = vpop.f32.mrf.mxu0
      %v2955 = vadd.f32 0.0, %v2954
      %2956 = vmatmul.f32.gmra.mxu0 %v2917
      %v2957 = vpop.f32.mrf.mxu0
      %v2958 = vadd.f32 0.0, %v2957
      %2959 = vmatmul.f32.gmra.mxu0 %v2920
      %v2960 = vpop.f32.mrf.mxu0
      %v2961 = vadd.f32 0.0, %v2960
      %2962 = vmatmul.f32.gmra.mxu0 %v2923
      %v2963 = vpop.f32.mrf.mxu0
      %v2964 = vadd.f32 0.0, %v2963
      %2965 = vmatmul.f32.gmra.mxu0 %v2926
      %v2966 = vpop.f32.mrf.mxu0
      %v2967 = vadd.f32 0.0, %v2966
      %2968 = vmatmul.f32.gmra.mxu0 %v2929
      %v2969 = vpop.f32.mrf.mxu0
      %v2970 = vadd.f32 0.0, %v2969
      %2971 = vmatmul.f32.gmra.mxu0 %v2932
      %v2972 = vpop.f32.mrf.mxu0
      %v2973 = vadd.f32 0.0, %v2972
      %2974 = vdwg.mxu0
      %v2975 = vadd.f32 %v2884, %v2952
      %v2976 = vadd.f32 %v2885, %v2955
      %v2977 = vadd.f32 %v2886, %v2958
      %v2978 = vadd.f32 %v2887, %v2961
      %v2979 = vadd.f32 %v2888, %v2964
      %v2980 = vadd.f32 %v2889, %v2967
      %v2981 = vadd.f32 %v2890, %v2970
      %v2982 = vadd.f32 %v2891, %v2973
      %s2983 = scalar_lea.vmem %s2332, 3 [#allocation3]
      %v2984 = vld [vmem:[%s2983] ss:$2 sm:$0xff]
      %s2985 = scalar_lea.vmem %s2332, 51 [#allocation3]
      %v2986 = vld [vmem:[%s2985] ss:$2 sm:$0xff]
      %s2987 = scalar_lea.vmem %s2332, 99 [#allocation3]
      %v2988 = vld [vmem:[%s2987] ss:$2 sm:$0xff]
      %s2989 = scalar_lea.vmem %s2332, 147 [#allocation3]
      %v2990 = vld [vmem:[%s2989] ss:$2 sm:$0xff]
      %s2991 = scalar_lea.vmem %s2332, 195 [#allocation3]
      %v2992 = vld [vmem:[%s2991] ss:$2 sm:$0xff]
      %s2993 = scalar_lea.vmem %s2332, 243 [#allocation3]
      %v2994 = vld [vmem:[%s2993] ss:$2 sm:$0xff]
      %s2995 = scalar_lea.vmem %s2332, 291 [#allocation3]
      %v2996 = vld [vmem:[%s2995] ss:$2 sm:$0xff]
      %s2997 = scalar_lea.vmem %s2332, 339 [#allocation3]
      %v2998 = vld [vmem:[%s2997] ss:$2 sm:$0xff]
      %s2999 = scalar_lea.vmem %s3, 56
      %v3000 = vld [vmem:[%s2999] sm:$0xff]
      %v3002 = vsel %vm390, %v2984, 0
      %v3005 = vsel %vm390, %v2986, 0
      %v3008 = vsel %vm390, %v2988, 0
      %v3011 = vsel %vm390, %v2990, 0
      %v3014 = vsel %vm390, %v2992, 0
      %v3017 = vsel %vm390, %v2994, 0
      %v3020 = vsel %vm390, %v2996, 0
      %v3023 = vsel %vm390, %v2998, 0
      %3025 = vmatpush.msra.mxu0 0.0
      %3026 = vmatpush.msra.mxu0 0.0
      %3027 = vmatpush.msra.mxu0 0.0
      %3028 = vmatpush.msra.mxu0 0.0
      %3029 = vmatpush.msra.mxu0 0.0
      %3030 = vmatpush.msra.mxu0 0.0
      %3031 = vmatpush.msra.mxu0 0.0
      %3032 = vmatpush.msra.mxu0 0.0
      %3033 = vmatpush.msra.mxu0 0.0
      %3034 = vmatpush.msra.mxu0 0.0
      %3035 = vmatpush.msra.mxu0 0.0
      %3036 = vmatpush.msra.mxu0 0.0
      %3037 = vmatpush.msra.mxu0 0.0
      %3038 = vmatpush.msra.mxu0 0.0
      %3039 = vmatpush.msra.mxu0 0.0
      %3040 = vmatpush.msra.mxu0 %v3000
      %3041 = vmatmul.f32.gmra.mxu0 %v3002
      %v3042 = vpop.f32.mrf.mxu0
      %v3043 = vadd.f32 0.0, %v3042
      %3044 = vmatmul.f32.gmra.mxu0 %v3005
      %v3045 = vpop.f32.mrf.mxu0
      %v3046 = vadd.f32 0.0, %v3045
      %3047 = vmatmul.f32.gmra.mxu0 %v3008
      %v3048 = vpop.f32.mrf.mxu0
      %v3049 = vadd.f32 0.0, %v3048
      %3050 = vmatmul.f32.gmra.mxu0 %v3011
      %v3051 = vpop.f32.mrf.mxu0
      %v3052 = vadd.f32 0.0, %v3051
      %3053 = vmatmul.f32.gmra.mxu0 %v3014
      %v3054 = vpop.f32.mrf.mxu0
      %v3055 = vadd.f32 0.0, %v3054
      %3056 = vmatmul.f32.gmra.mxu0 %v3017
      %v3057 = vpop.f32.mrf.mxu0
      %v3058 = vadd.f32 0.0, %v3057
      %3059 = vmatmul.f32.gmra.mxu0 %v3020
      %v3060 = vpop.f32.mrf.mxu0
      %v3061 = vadd.f32 0.0, %v3060
      %3062 = vmatmul.f32.gmra.mxu0 %v3023
      %v3063 = vpop.f32.mrf.mxu0
      %v3064 = vadd.f32 0.0, %v3063
      %3065 = vdwg.mxu0
      %v3066 = vadd.f32 %v2975, %v3043
      %v3067 = vadd.f32 %v2976, %v3046
      %v3068 = vadd.f32 %v2977, %v3049
      %v3069 = vadd.f32 %v2978, %v3052
      %v3070 = vadd.f32 %v2979, %v3055
      %v3071 = vadd.f32 %v2980, %v3058
      %v3072 = vadd.f32 %v2981, %v3061
      %v3073 = vadd.f32 %v2982, %v3064
      %s3074 = scalar_lea.vmem [#allocation3], 48
      %v3075 = vld [vmem:[%s3074] ss:$2 sm:$0xff]
      %s3076 = scalar_lea.vmem %s3074, 48 [#allocation3]
      %v3077 = vld [vmem:[%s3076] ss:$2 sm:$0xff]
      %s3078 = scalar_lea.vmem %s3074, 96 [#allocation3]
      %v3079 = vld [vmem:[%s3078] ss:$2 sm:$0xff]
      %s3080 = scalar_lea.vmem %s3074, 144 [#allocation3]
      %v3081 = vld [vmem:[%s3080] ss:$2 sm:$0xff]
      %s3082 = scalar_lea.vmem %s3074, 192 [#allocation3]
      %v3083 = vld [vmem:[%s3082] ss:$2 sm:$0xff]
      %s3084 = scalar_lea.vmem %s3074, 240 [#allocation3]
      %v3085 = vld [vmem:[%s3084] ss:$2 sm:$0xff]
      %s3086 = scalar_lea.vmem %s3074, 288 [#allocation3]
      %v3087 = vld [vmem:[%s3086] ss:$2 sm:$0xff]
      %s3088 = scalar_lea.vmem %s3074, 336 [#allocation3]
      %v3089 = vld [vmem:[%s3088] ss:$2 sm:$0xff]
      %s3090 = scalar_lea.vmem %s3, 64
      %v3091 = vld [vmem:[%s3090] sm:$0xff]
      %v3093 = vsel %vm390, %v3075, 0
      %v3096 = vsel %vm390, %v3077, 0
      %v3099 = vsel %vm390, %v3079, 0
      %v3102 = vsel %vm390, %v3081, 0
      %v3105 = vsel %vm390, %v3083, 0
      %v3108 = vsel %vm390, %v3085, 0
      %v3111 = vsel %vm390, %v3087, 0
      %v3114 = vsel %vm390, %v3089, 0
      %3116 = vmatpush.msra.mxu0 0.0
      %3117 = vmatpush.msra.mxu0 0.0
      %3118 = vmatpush.msra.mxu0 0.0
      %3119 = vmatpush.msra.mxu0 0.0
      %3120 = vmatpush.msra.mxu0 0.0
      %3121 = vmatpush.msra.mxu0 0.0
      %3122 = vmatpush.msra.mxu0 0.0
      %3123 = vmatpush.msra.mxu0 0.0
      %3124 = vmatpush.msra.mxu0 0.0
      %3125 = vmatpush.msra.mxu0 0.0
      %3126 = vmatpush.msra.mxu0 0.0
      %3127 = vmatpush.msra.mxu0 0.0
      %3128 = vmatpush.msra.mxu0 0.0
      %3129 = vmatpush.msra.mxu0 0.0
      %3130 = vmatpush.msra.mxu0 0.0
      %3131 = vmatpush.msra.mxu0 %v3091
      %3132 = vmatmul.f32.gmra.mxu0 %v3093
      %v3133 = vpop.f32.mrf.mxu0
      %v3134 = vadd.f32 0.0, %v3133
      %3135 = vmatmul.f32.gmra.mxu0 %v3096
      %v3136 = vpop.f32.mrf.mxu0
      %v3137 = vadd.f32 0.0, %v3136
      %3138 = vmatmul.f32.gmra.mxu0 %v3099
      %v3139 = vpop.f32.mrf.mxu0
      %v3140 = vadd.f32 0.0, %v3139
      %3141 = vmatmul.f32.gmra.mxu0 %v3102
      %v3142 = vpop.f32.mrf.mxu0
      %v3143 = vadd.f32 0.0, %v3142
      %3144 = vmatmul.f32.gmra.mxu0 %v3105
      %v3145 = vpop.f32.mrf.mxu0
      %v3146 = vadd.f32 0.0, %v3145
      %3147 = vmatmul.f32.gmra.mxu0 %v3108
      %v3148 = vpop.f32.mrf.mxu0
      %v3149 = vadd.f32 0.0, %v3148
      %3150 = vmatmul.f32.gmra.mxu0 %v3111
      %v3151 = vpop.f32.mrf.mxu0
      %v3152 = vadd.f32 0.0, %v3151
      %3153 = vmatmul.f32.gmra.mxu0 %v3114
      %v3154 = vpop.f32.mrf.mxu0
      %v3155 = vadd.f32 0.0, %v3154
      %3156 = vdwg.mxu0
      %v3157 = vadd.f32 %v3066, %v3134
      %v3158 = vadd.f32 %v3067, %v3137
      %v3159 = vadd.f32 %v3068, %v3140
      %v3160 = vadd.f32 %v3069, %v3143
      %v3161 = vadd.f32 %v3070, %v3146
      %v3162 = vadd.f32 %v3071, %v3149
      %v3163 = vadd.f32 %v3072, %v3152
      %v3164 = vadd.f32 %v3073, %v3155
      %s3165 = scalar_lea.vmem %s3074, 1 [#allocation3]
      %v3166 = vld [vmem:[%s3165] ss:$2 sm:$0xff]
      %s3167 = scalar_lea.vmem %s3074, 49 [#allocation3]
      %v3168 = vld [vmem:[%s3167] ss:$2 sm:$0xff]
      %s3169 = scalar_lea.vmem %s3074, 97 [#allocation3]
      %v3170 = vld [vmem:[%s3169] ss:$2 sm:$0xff]
      %s3171 = scalar_lea.vmem %s3074, 145 [#allocation3]
      %v3172 = vld [vmem:[%s3171] ss:$2 sm:$0xff]
      %s3173 = scalar_lea.vmem %s3074, 193 [#allocation3]
      %v3174 = vld [vmem:[%s3173] ss:$2 sm:$0xff]
      %s3175 = scalar_lea.vmem %s3074, 241 [#allocation3]
      %v3176 = vld [vmem:[%s3175] ss:$2 sm:$0xff]
      %s3177 = scalar_lea.vmem %s3074, 289 [#allocation3]
      %v3178 = vld [vmem:[%s3177] ss:$2 sm:$0xff]
      %s3179 = scalar_lea.vmem %s3074, 337 [#allocation3]
      %v3180 = vld [vmem:[%s3179] ss:$2 sm:$0xff]
      %s3181 = scalar_lea.vmem %s3, 72
      %v3182 = vld [vmem:[%s3181] sm:$0xff]
      %v3184 = vsel %vm390, %v3166, 0
      %v3187 = vsel %vm390, %v3168, 0
      %v3190 = vsel %vm390, %v3170, 0
      %v3193 = vsel %vm390, %v3172, 0
      %v3196 = vsel %vm390, %v3174, 0
      %v3199 = vsel %vm390, %v3176, 0
      %v3202 = vsel %vm390, %v3178, 0
      %v3205 = vsel %vm390, %v3180, 0
      %3207 = vmatpush.msra.mxu0 0.0
      %3208 = vmatpush.msra.mxu0 0.0
      %3209 = vmatpush.msra.mxu0 0.0
      %3210 = vmatpush.msra.mxu0 0.0
      %3211 = vmatpush.msra.mxu0 0.0
      %3212 = vmatpush.msra.mxu0 0.0
      %3213 = vmatpush.msra.mxu0 0.0
      %3214 = vmatpush.msra.mxu0 0.0
      %3215 = vmatpush.msra.mxu0 0.0
      %3216 = vmatpush.msra.mxu0 0.0
      %3217 = vmatpush.msra.mxu0 0.0
      %3218 = vmatpush.msra.mxu0 0.0
      %3219 = vmatpush.msra.mxu0 0.0
      %3220 = vmatpush.msra.mxu0 0.0
      %3221 = vmatpush.msra.mxu0 0.0
      %3222 = vmatpush.msra.mxu0 %v3182
      %3223 = vmatmul.f32.gmra.mxu0 %v3184
      %v3224 = vpop.f32.mrf.mxu0
      %v3225 = vadd.f32 0.0, %v3224
      %3226 = vmatmul.f32.gmra.mxu0 %v3187
      %v3227 = vpop.f32.mrf.mxu0
      %v3228 = vadd.f32 0.0, %v3227
      %3229 = vmatmul.f32.gmra.mxu0 %v3190
      %v3230 = vpop.f32.mrf.mxu0
      %v3231 = vadd.f32 0.0, %v3230
      %3232 = vmatmul.f32.gmra.mxu0 %v3193
      %v3233 = vpop.f32.mrf.mxu0
      %v3234 = vadd.f32 0.0, %v3233
      %3235 = vmatmul.f32.gmra.mxu0 %v3196
      %v3236 = vpop.f32.mrf.mxu0
      %v3237 = vadd.f32 0.0, %v3236
      %3238 = vmatmul.f32.gmra.mxu0 %v3199
      %v3239 = vpop.f32.mrf.mxu0
      %v3240 = vadd.f32 0.0, %v3239
      %3241 = vmatmul.f32.gmra.mxu0 %v3202
      %v3242 = vpop.f32.mrf.mxu0
      %v3243 = vadd.f32 0.0, %v3242
      %3244 = vmatmul.f32.gmra.mxu0 %v3205
      %v3245 = vpop.f32.mrf.mxu0
      %v3246 = vadd.f32 0.0, %v3245
      %3247 = vdwg.mxu0
      %v3248 = vadd.f32 %v3157, %v3225
      %v3249 = vadd.f32 %v3158, %v3228
      %v3250 = vadd.f32 %v3159, %v3231
      %v3251 = vadd.f32 %v3160, %v3234
      %v3252 = vadd.f32 %v3161, %v3237
      %v3253 = vadd.f32 %v3162, %v3240
      %v3254 = vadd.f32 %v3163, %v3243
      %v3255 = vadd.f32 %v3164, %v3246
      %s3256 = scalar_lea.vmem %s3074, 2 [#allocation3]
      %v3257 = vld [vmem:[%s3256] ss:$2 sm:$0xff]
      %s3258 = scalar_lea.vmem %s3074, 50 [#allocation3]
      %v3259 = vld [vmem:[%s3258] ss:$2 sm:$0xff]
      %s3260 = scalar_lea.vmem %s3074, 98 [#allocation3]
      %v3261 = vld [vmem:[%s3260] ss:$2 sm:$0xff]
      %s3262 = scalar_lea.vmem %s3074, 146 [#allocation3]
      %v3263 = vld [vmem:[%s3262] ss:$2 sm:$0xff]
      %s3264 = scalar_lea.vmem %s3074, 194 [#allocation3]
      %v3265 = vld [vmem:[%s3264] ss:$2 sm:$0xff]
      %s3266 = scalar_lea.vmem %s3074, 242 [#allocation3]
      %v3267 = vld [vmem:[%s3266] ss:$2 sm:$0xff]
      %s3268 = scalar_lea.vmem %s3074, 290 [#allocation3]
      %v3269 = vld [vmem:[%s3268] ss:$2 sm:$0xff]
      %s3270 = scalar_lea.vmem %s3074, 338 [#allocation3]
      %v3271 = vld [vmem:[%s3270] ss:$2 sm:$0xff]
      %s3272 = scalar_lea.vmem %s3, 80
      %v3273 = vld [vmem:[%s3272] sm:$0xff]
      %v3275 = vsel %vm390, %v3257, 0
      %v3278 = vsel %vm390, %v3259, 0
      %v3281 = vsel %vm390, %v3261, 0
      %v3284 = vsel %vm390, %v3263, 0
      %v3287 = vsel %vm390, %v3265, 0
      %v3290 = vsel %vm390, %v3267, 0
      %v3293 = vsel %vm390, %v3269, 0
      %v3296 = vsel %vm390, %v3271, 0
      %3298 = vmatpush.msra.mxu0 0.0
      %3299 = vmatpush.msra.mxu0 0.0
      %3300 = vmatpush.msra.mxu0 0.0
      %3301 = vmatpush.msra.mxu0 0.0
      %3302 = vmatpush.msra.mxu0 0.0
      %3303 = vmatpush.msra.mxu0 0.0
      %3304 = vmatpush.msra.mxu0 0.0
      %3305 = vmatpush.msra.mxu0 0.0
      %3306 = vmatpush.msra.mxu0 0.0
      %3307 = vmatpush.msra.mxu0 0.0
      %3308 = vmatpush.msra.mxu0 0.0
      %3309 = vmatpush.msra.mxu0 0.0
      %3310 = vmatpush.msra.mxu0 0.0
      %3311 = vmatpush.msra.mxu0 0.0
      %3312 = vmatpush.msra.mxu0 0.0
      %3313 = vmatpush.msra.mxu0 %v3273
      %3314 = vmatmul.f32.gmra.mxu0 %v3275
      %v3315 = vpop.f32.mrf.mxu0
      %v3316 = vadd.f32 0.0, %v3315
      %3317 = vmatmul.f32.gmra.mxu0 %v3278
      %v3318 = vpop.f32.mrf.mxu0
      %v3319 = vadd.f32 0.0, %v3318
      %3320 = vmatmul.f32.gmra.mxu0 %v3281
      %v3321 = vpop.f32.mrf.mxu0
      %v3322 = vadd.f32 0.0, %v3321
      %3323 = vmatmul.f32.gmra.mxu0 %v3284
      %v3324 = vpop.f32.mrf.mxu0
      %v3325 = vadd.f32 0.0, %v3324
      %3326 = vmatmul.f32.gmra.mxu0 %v3287
      %v3327 = vpop.f32.mrf.mxu0
      %v3328 = vadd.f32 0.0, %v3327
      %3329 = vmatmul.f32.gmra.mxu0 %v3290
      %v3330 = vpop.f32.mrf.mxu0
      %v3331 = vadd.f32 0.0, %v3330
      %3332 = vmatmul.f32.gmra.mxu0 %v3293
      %v3333 = vpop.f32.mrf.mxu0
      %v3334 = vadd.f32 0.0, %v3333
      %3335 = vmatmul.f32.gmra.mxu0 %v3296
      %v3336 = vpop.f32.mrf.mxu0
      %v3337 = vadd.f32 0.0, %v3336
      %3338 = vdwg.mxu0
      %v3339 = vadd.f32 %v3248, %v3316
      %v3340 = vadd.f32 %v3249, %v3319
      %v3341 = vadd.f32 %v3250, %v3322
      %v3342 = vadd.f32 %v3251, %v3325
      %v3343 = vadd.f32 %v3252, %v3328
      %v3344 = vadd.f32 %v3253, %v3331
      %v3345 = vadd.f32 %v3254, %v3334
      %v3346 = vadd.f32 %v3255, %v3337
      %s3347 = scalar_lea.vmem %s3074, 3 [#allocation3]
      %v3348 = vld [vmem:[%s3347] ss:$2 sm:$0xff]
      %s3349 = scalar_lea.vmem %s3074, 51 [#allocation3]
      %v3350 = vld [vmem:[%s3349] ss:$2 sm:$0xff]
      %s3351 = scalar_lea.vmem %s3074, 99 [#allocation3]
      %v3352 = vld [vmem:[%s3351] ss:$2 sm:$0xff]
      %s3353 = scalar_lea.vmem %s3074, 147 [#allocation3]
      %v3354 = vld [vmem:[%s3353] ss:$2 sm:$0xff]
      %s3355 = scalar_lea.vmem %s3074, 195 [#allocation3]
      %v3356 = vld [vmem:[%s3355] ss:$2 sm:$0xff]
      %s3357 = scalar_lea.vmem %s3074, 243 [#allocation3]
      %v3358 = vld [vmem:[%s3357] ss:$2 sm:$0xff]
      %s3359 = scalar_lea.vmem %s3074, 291 [#allocation3]
      %v3360 = vld [vmem:[%s3359] ss:$2 sm:$0xff]
      %s3361 = scalar_lea.vmem %s3074, 339 [#allocation3]
      %v3362 = vld [vmem:[%s3361] ss:$2 sm:$0xff]
      %s3363 = scalar_lea.vmem %s3, 88
      %v3364 = vld [vmem:[%s3363] sm:$0xff]
      %v3366 = vsel %vm390, %v3348, 0
      %v3369 = vsel %vm390, %v3350, 0
      %v3372 = vsel %vm390, %v3352, 0
      %v3375 = vsel %vm390, %v3354, 0
      %v3378 = vsel %vm390, %v3356, 0
      %v3381 = vsel %vm390, %v3358, 0
      %v3384 = vsel %vm390, %v3360, 0
      %v3387 = vsel %vm390, %v3362, 0
      %3389 = vmatpush.msra.mxu0 0.0
      %3390 = vmatpush.msra.mxu0 0.0
      %3391 = vmatpush.msra.mxu0 0.0
      %3392 = vmatpush.msra.mxu0 0.0
      %3393 = vmatpush.msra.mxu0 0.0
      %3394 = vmatpush.msra.mxu0 0.0
      %3395 = vmatpush.msra.mxu0 0.0
      %3396 = vmatpush.msra.mxu0 0.0
      %3397 = vmatpush.msra.mxu0 0.0
      %3398 = vmatpush.msra.mxu0 0.0
      %3399 = vmatpush.msra.mxu0 0.0
      %3400 = vmatpush.msra.mxu0 0.0
      %3401 = vmatpush.msra.mxu0 0.0
      %3402 = vmatpush.msra.mxu0 0.0
      %3403 = vmatpush.msra.mxu0 0.0
      %3404 = vmatpush.msra.mxu0 %v3364
      %3405 = vmatmul.f32.gmra.mxu0 %v3366
      %v3406 = vpop.f32.mrf.mxu0
      %v3407 = vadd.f32 0.0, %v3406
      %3408 = vmatmul.f32.gmra.mxu0 %v3369
      %v3409 = vpop.f32.mrf.mxu0
      %v3410 = vadd.f32 0.0, %v3409
      %3411 = vmatmul.f32.gmra.mxu0 %v3372
      %v3412 = vpop.f32.mrf.mxu0
      %v3413 = vadd.f32 0.0, %v3412
      %3414 = vmatmul.f32.gmra.mxu0 %v3375
      %v3415 = vpop.f32.mrf.mxu0
      %v3416 = vadd.f32 0.0, %v3415
      %3417 = vmatmul.f32.gmra.mxu0 %v3378
      %v3418 = vpop.f32.mrf.mxu0
      %v3419 = vadd.f32 0.0, %v3418
      %3420 = vmatmul.f32.gmra.mxu0 %v3381
      %v3421 = vpop.f32.mrf.mxu0
      %v3422 = vadd.f32 0.0, %v3421
      %3423 = vmatmul.f32.gmra.mxu0 %v3384
      %v3424 = vpop.f32.mrf.mxu0
      %v3425 = vadd.f32 0.0, %v3424
      %3426 = vmatmul.f32.gmra.mxu0 %v3387
      %v3427 = vpop.f32.mrf.mxu0
      %v3428 = vadd.f32 0.0, %v3427
      %3429 = vdwg.mxu0
      %v3430 = vadd.f32 %v3339, %v3407
      %v3431 = vadd.f32 %v3340, %v3410
      %v3432 = vadd.f32 %v3341, %v3413
      %v3433 = vadd.f32 %v3342, %v3416
      %v3434 = vadd.f32 %v3343, %v3419
      %v3435 = vadd.f32 %v3344, %v3422
      %v3436 = vadd.f32 %v3345, %v3425
      %v3437 = vadd.f32 %v3346, %v3428
      %s3438 = scalar_lea.vmem [#allocation3], 72
      %v3439 = vld [vmem:[%s3438] ss:$2 sm:$0xff]
      %s3440 = scalar_lea.vmem %s3438, 48 [#allocation3]
      %v3441 = vld [vmem:[%s3440] ss:$2 sm:$0xff]
      %s3442 = scalar_lea.vmem %s3438, 96 [#allocation3]
      %v3443 = vld [vmem:[%s3442] ss:$2 sm:$0xff]
      %s3444 = scalar_lea.vmem %s3438, 144 [#allocation3]
      %v3445 = vld [vmem:[%s3444] ss:$2 sm:$0xff]
      %s3446 = scalar_lea.vmem %s3438, 192 [#allocation3]
      %v3447 = vld [vmem:[%s3446] ss:$2 sm:$0xff]
      %s3448 = scalar_lea.vmem %s3438, 240 [#allocation3]
      %v3449 = vld [vmem:[%s3448] ss:$2 sm:$0xff]
      %s3450 = scalar_lea.vmem %s3438, 288 [#allocation3]
      %v3451 = vld [vmem:[%s3450] ss:$2 sm:$0xff]
      %s3452 = scalar_lea.vmem %s3438, 336 [#allocation3]
      %v3453 = vld [vmem:[%s3452] ss:$2 sm:$0xff]
      %s3454 = scalar_lea.vmem %s3, 96
      %v3455 = vld [vmem:[%s3454] sm:$0xff]
      %v3457 = vsel %vm390, %v3439, 0
      %v3460 = vsel %vm390, %v3441, 0
      %v3463 = vsel %vm390, %v3443, 0
      %v3466 = vsel %vm390, %v3445, 0
      %v3469 = vsel %vm390, %v3447, 0
      %v3472 = vsel %vm390, %v3449, 0
      %v3475 = vsel %vm390, %v3451, 0
      %v3478 = vsel %vm390, %v3453, 0
      %3480 = vmatpush.msra.mxu0 0.0
      %3481 = vmatpush.msra.mxu0 0.0
      %3482 = vmatpush.msra.mxu0 0.0
      %3483 = vmatpush.msra.mxu0 0.0
      %3484 = vmatpush.msra.mxu0 0.0
      %3485 = vmatpush.msra.mxu0 0.0
      %3486 = vmatpush.msra.mxu0 0.0
      %3487 = vmatpush.msra.mxu0 0.0
      %3488 = vmatpush.msra.mxu0 0.0
      %3489 = vmatpush.msra.mxu0 0.0
      %3490 = vmatpush.msra.mxu0 0.0
      %3491 = vmatpush.msra.mxu0 0.0
      %3492 = vmatpush.msra.mxu0 0.0
      %3493 = vmatpush.msra.mxu0 0.0
      %3494 = vmatpush.msra.mxu0 0.0
      %3495 = vmatpush.msra.mxu0 %v3455
      %3496 = vmatmul.f32.gmra.mxu0 %v3457
      %v3497 = vpop.f32.mrf.mxu0
      %v3498 = vadd.f32 0.0, %v3497
      %3499 = vmatmul.f32.gmra.mxu0 %v3460
      %v3500 = vpop.f32.mrf.mxu0
      %v3501 = vadd.f32 0.0, %v3500
      %3502 = vmatmul.f32.gmra.mxu0 %v3463
      %v3503 = vpop.f32.mrf.mxu0
      %v3504 = vadd.f32 0.0, %v3503
      %3505 = vmatmul.f32.gmra.mxu0 %v3466
      %v3506 = vpop.f32.mrf.mxu0
      %v3507 = vadd.f32 0.0, %v3506
      %3508 = vmatmul.f32.gmra.mxu0 %v3469
      %v3509 = vpop.f32.mrf.mxu0
      %v3510 = vadd.f32 0.0, %v3509
      %3511 = vmatmul.f32.gmra.mxu0 %v3472
      %v3512 = vpop.f32.mrf.mxu0
      %v3513 = vadd.f32 0.0, %v3512
      %3514 = vmatmul.f32.gmra.mxu0 %v3475
      %v3515 = vpop.f32.mrf.mxu0
      %v3516 = vadd.f32 0.0, %v3515
      %3517 = vmatmul.f32.gmra.mxu0 %v3478
      %v3518 = vpop.f32.mrf.mxu0
      %v3519 = vadd.f32 0.0, %v3518
      %3520 = vdwg.mxu0
      %v3521 = vadd.f32 %v3430, %v3498
      %v3522 = vadd.f32 %v3431, %v3501
      %v3523 = vadd.f32 %v3432, %v3504
      %v3524 = vadd.f32 %v3433, %v3507
      %v3525 = vadd.f32 %v3434, %v3510
      %v3526 = vadd.f32 %v3435, %v3513
      %v3527 = vadd.f32 %v3436, %v3516
      %v3528 = vadd.f32 %v3437, %v3519
      %s3529 = scalar_lea.vmem %s3438, 1 [#allocation3]
      %v3530 = vld [vmem:[%s3529] ss:$2 sm:$0xff]
      %s3531 = scalar_lea.vmem %s3438, 49 [#allocation3]
      %v3532 = vld [vmem:[%s3531] ss:$2 sm:$0xff]
      %s3533 = scalar_lea.vmem %s3438, 97 [#allocation3]
      %v3534 = vld [vmem:[%s3533] ss:$2 sm:$0xff]
      %s3535 = scalar_lea.vmem %s3438, 145 [#allocation3]
      %v3536 = vld [vmem:[%s3535] ss:$2 sm:$0xff]
      %s3537 = scalar_lea.vmem %s3438, 193 [#allocation3]
      %v3538 = vld [vmem:[%s3537] ss:$2 sm:$0xff]
      %s3539 = scalar_lea.vmem %s3438, 241 [#allocation3]
      %v3540 = vld [vmem:[%s3539] ss:$2 sm:$0xff]
      %s3541 = scalar_lea.vmem %s3438, 289 [#allocation3]
      %v3542 = vld [vmem:[%s3541] ss:$2 sm:$0xff]
      %s3543 = scalar_lea.vmem %s3438, 337 [#allocation3]
      %v3544 = vld [vmem:[%s3543] ss:$2 sm:$0xff]
      %s3545 = scalar_lea.vmem %s3, 104
      %v3546 = vld [vmem:[%s3545] sm:$0xff]
      %v3548 = vsel %vm390, %v3530, 0
      %v3551 = vsel %vm390, %v3532, 0
      %v3554 = vsel %vm390, %v3534, 0
      %v3557 = vsel %vm390, %v3536, 0
      %v3560 = vsel %vm390, %v3538, 0
      %v3563 = vsel %vm390, %v3540, 0
      %v3566 = vsel %vm390, %v3542, 0
      %v3569 = vsel %vm390, %v3544, 0
      %3571 = vmatpush.msra.mxu0 0.0
      %3572 = vmatpush.msra.mxu0 0.0
      %3573 = vmatpush.msra.mxu0 0.0
      %3574 = vmatpush.msra.mxu0 0.0
      %3575 = vmatpush.msra.mxu0 0.0
      %3576 = vmatpush.msra.mxu0 0.0
      %3577 = vmatpush.msra.mxu0 0.0
      %3578 = vmatpush.msra.mxu0 0.0
      %3579 = vmatpush.msra.mxu0 0.0
      %3580 = vmatpush.msra.mxu0 0.0
      %3581 = vmatpush.msra.mxu0 0.0
      %3582 = vmatpush.msra.mxu0 0.0
      %3583 = vmatpush.msra.mxu0 0.0
      %3584 = vmatpush.msra.mxu0 0.0
      %3585 = vmatpush.msra.mxu0 0.0
      %3586 = vmatpush.msra.mxu0 %v3546
      %3587 = vmatmul.f32.gmra.mxu0 %v3548
      %v3588 = vpop.f32.mrf.mxu0
      %v3589 = vadd.f32 0.0, %v3588
      %3590 = vmatmul.f32.gmra.mxu0 %v3551
      %v3591 = vpop.f32.mrf.mxu0
      %v3592 = vadd.f32 0.0, %v3591
      %3593 = vmatmul.f32.gmra.mxu0 %v3554
      %v3594 = vpop.f32.mrf.mxu0
      %v3595 = vadd.f32 0.0, %v3594
      %3596 = vmatmul.f32.gmra.mxu0 %v3557
      %v3597 = vpop.f32.mrf.mxu0
      %v3598 = vadd.f32 0.0, %v3597
      %3599 = vmatmul.f32.gmra.mxu0 %v3560
      %v3600 = vpop.f32.mrf.mxu0
      %v3601 = vadd.f32 0.0, %v3600
      %3602 = vmatmul.f32.gmra.mxu0 %v3563
      %v3603 = vpop.f32.mrf.mxu0
      %v3604 = vadd.f32 0.0, %v3603
      %3605 = vmatmul.f32.gmra.mxu0 %v3566
      %v3606 = vpop.f32.mrf.mxu0
      %v3607 = vadd.f32 0.0, %v3606
      %3608 = vmatmul.f32.gmra.mxu0 %v3569
      %v3609 = vpop.f32.mrf.mxu0
      %v3610 = vadd.f32 0.0, %v3609
      %3611 = vdwg.mxu0
      %v3612 = vadd.f32 %v3521, %v3589
      %v3613 = vadd.f32 %v3522, %v3592
      %v3614 = vadd.f32 %v3523, %v3595
      %v3615 = vadd.f32 %v3524, %v3598
      %v3616 = vadd.f32 %v3525, %v3601
      %v3617 = vadd.f32 %v3526, %v3604
      %v3618 = vadd.f32 %v3527, %v3607
      %v3619 = vadd.f32 %v3528, %v3610
      %s3620 = scalar_lea.vmem %s3438, 2 [#allocation3]
      %v3621 = vld [vmem:[%s3620] ss:$2 sm:$0xff]
      %s3622 = scalar_lea.vmem %s3438, 50 [#allocation3]
      %v3623 = vld [vmem:[%s3622] ss:$2 sm:$0xff]
      %s3624 = scalar_lea.vmem %s3438, 98 [#allocation3]
      %v3625 = vld [vmem:[%s3624] ss:$2 sm:$0xff]
      %s3626 = scalar_lea.vmem %s3438, 146 [#allocation3]
      %v3627 = vld [vmem:[%s3626] ss:$2 sm:$0xff]
      %s3628 = scalar_lea.vmem %s3438, 194 [#allocation3]
      %v3629 = vld [vmem:[%s3628] ss:$2 sm:$0xff]
      %s3630 = scalar_lea.vmem %s3438, 242 [#allocation3]
      %v3631 = vld [vmem:[%s3630] ss:$2 sm:$0xff]
      %s3632 = scalar_lea.vmem %s3438, 290 [#allocation3]
      %v3633 = vld [vmem:[%s3632] ss:$2 sm:$0xff]
      %s3634 = scalar_lea.vmem %s3438, 338 [#allocation3]
      %v3635 = vld [vmem:[%s3634] ss:$2 sm:$0xff]
      %s3636 = scalar_lea.vmem %s3, 112
      %v3637 = vld [vmem:[%s3636] sm:$0xff]
      %v3639 = vsel %vm390, %v3621, 0
      %v3642 = vsel %vm390, %v3623, 0
      %v3645 = vsel %vm390, %v3625, 0
      %v3648 = vsel %vm390, %v3627, 0
      %v3651 = vsel %vm390, %v3629, 0
      %v3654 = vsel %vm390, %v3631, 0
      %v3657 = vsel %vm390, %v3633, 0
      %v3660 = vsel %vm390, %v3635, 0
      %3662 = vmatpush.msra.mxu0 0.0
      %3663 = vmatpush.msra.mxu0 0.0
      %3664 = vmatpush.msra.mxu0 0.0
      %3665 = vmatpush.msra.mxu0 0.0
      %3666 = vmatpush.msra.mxu0 0.0
      %3667 = vmatpush.msra.mxu0 0.0
      %3668 = vmatpush.msra.mxu0 0.0
      %3669 = vmatpush.msra.mxu0 0.0
      %3670 = vmatpush.msra.mxu0 0.0
      %3671 = vmatpush.msra.mxu0 0.0
      %3672 = vmatpush.msra.mxu0 0.0
      %3673 = vmatpush.msra.mxu0 0.0
      %3674 = vmatpush.msra.mxu0 0.0
      %3675 = vmatpush.msra.mxu0 0.0
      %3676 = vmatpush.msra.mxu0 0.0
      %3677 = vmatpush.msra.mxu0 %v3637
      %3678 = vmatmul.f32.gmra.mxu0 %v3639
      %v3679 = vpop.f32.mrf.mxu0
      %v3680 = vadd.f32 0.0, %v3679
      %3681 = vmatmul.f32.gmra.mxu0 %v3642
      %v3682 = vpop.f32.mrf.mxu0
      %v3683 = vadd.f32 0.0, %v3682
      %3684 = vmatmul.f32.gmra.mxu0 %v3645
      %v3685 = vpop.f32.mrf.mxu0
      %v3686 = vadd.f32 0.0, %v3685
      %3687 = vmatmul.f32.gmra.mxu0 %v3648
      %v3688 = vpop.f32.mrf.mxu0
      %v3689 = vadd.f32 0.0, %v3688
      %3690 = vmatmul.f32.gmra.mxu0 %v3651
      %v3691 = vpop.f32.mrf.mxu0
      %v3692 = vadd.f32 0.0, %v3691
      %3693 = vmatmul.f32.gmra.mxu0 %v3654
      %v3694 = vpop.f32.mrf.mxu0
      %v3695 = vadd.f32 0.0, %v3694
      %3696 = vmatmul.f32.gmra.mxu0 %v3657
      %v3697 = vpop.f32.mrf.mxu0
      %v3698 = vadd.f32 0.0, %v3697
      %3699 = vmatmul.f32.gmra.mxu0 %v3660
      %v3700 = vpop.f32.mrf.mxu0
      %v3701 = vadd.f32 0.0, %v3700
      %3702 = vdwg.mxu0
      %v3703 = vadd.f32 %v3612, %v3680
      %v3704 = vadd.f32 %v3613, %v3683
      %v3705 = vadd.f32 %v3614, %v3686
      %v3706 = vadd.f32 %v3615, %v3689
      %v3707 = vadd.f32 %v3616, %v3692
      %v3708 = vadd.f32 %v3617, %v3695
      %v3709 = vadd.f32 %v3618, %v3698
      %v3710 = vadd.f32 %v3619, %v3701
      %s3711 = scalar_lea.vmem %s3438, 3 [#allocation3]
      %v3712 = vld [vmem:[%s3711] ss:$2 sm:$0xff]
      %s3713 = scalar_lea.vmem %s3438, 51 [#allocation3]
      %v3714 = vld [vmem:[%s3713] ss:$2 sm:$0xff]
      %s3715 = scalar_lea.vmem %s3438, 99 [#allocation3]
      %v3716 = vld [vmem:[%s3715] ss:$2 sm:$0xff]
      %s3717 = scalar_lea.vmem %s3438, 147 [#allocation3]
      %v3718 = vld [vmem:[%s3717] ss:$2 sm:$0xff]
      %s3719 = scalar_lea.vmem %s3438, 195 [#allocation3]
      %v3720 = vld [vmem:[%s3719] ss:$2 sm:$0xff]
      %s3721 = scalar_lea.vmem %s3438, 243 [#allocation3]
      %v3722 = vld [vmem:[%s3721] ss:$2 sm:$0xff]
      %s3723 = scalar_lea.vmem %s3438, 291 [#allocation3]
      %v3724 = vld [vmem:[%s3723] ss:$2 sm:$0xff]
      %s3725 = scalar_lea.vmem %s3438, 339 [#allocation3]
      %v3726 = vld [vmem:[%s3725] ss:$2 sm:$0xff]
      %s3727 = scalar_lea.vmem %s3, 120
      %v3728 = vld [vmem:[%s3727] sm:$0xff]
      %v3730 = vsel %vm390, %v3712, 0
      %v3733 = vsel %vm390, %v3714, 0
      %v3736 = vsel %vm390, %v3716, 0
      %v3739 = vsel %vm390, %v3718, 0
      %v3742 = vsel %vm390, %v3720, 0
      %v3745 = vsel %vm390, %v3722, 0
      %v3748 = vsel %vm390, %v3724, 0
      %v3751 = vsel %vm390, %v3726, 0
      %3753 = vmatpush.msra.mxu0 0.0
      %3754 = vmatpush.msra.mxu0 0.0
      %3755 = vmatpush.msra.mxu0 0.0
      %3756 = vmatpush.msra.mxu0 0.0
      %3757 = vmatpush.msra.mxu0 0.0
      %3758 = vmatpush.msra.mxu0 0.0
      %3759 = vmatpush.msra.mxu0 0.0
      %3760 = vmatpush.msra.mxu0 0.0
      %3761 = vmatpush.msra.mxu0 0.0
      %3762 = vmatpush.msra.mxu0 0.0
      %3763 = vmatpush.msra.mxu0 0.0
      %3764 = vmatpush.msra.mxu0 0.0
      %3765 = vmatpush.msra.mxu0 0.0
      %3766 = vmatpush.msra.mxu0 0.0
      %3767 = vmatpush.msra.mxu0 0.0
      %3768 = vmatpush.msra.mxu0 %v3728
      %3769 = vmatmul.f32.gmra.mxu0 %v3730
      %v3770 = vpop.f32.mrf.mxu0
      %v3771 = vadd.f32 0.0, %v3770
      %3772 = vmatmul.f32.gmra.mxu0 %v3733
      %v3773 = vpop.f32.mrf.mxu0
      %v3774 = vadd.f32 0.0, %v3773
      %3775 = vmatmul.f32.gmra.mxu0 %v3736
      %v3776 = vpop.f32.mrf.mxu0
      %v3777 = vadd.f32 0.0, %v3776
      %3778 = vmatmul.f32.gmra.mxu0 %v3739
      %v3779 = vpop.f32.mrf.mxu0
      %v3780 = vadd.f32 0.0, %v3779
      %3781 = vmatmul.f32.gmra.mxu0 %v3742
      %v3782 = vpop.f32.mrf.mxu0
      %v3783 = vadd.f32 0.0, %v3782
      %3784 = vmatmul.f32.gmra.mxu0 %v3745
      %v3785 = vpop.f32.mrf.mxu0
      %v3786 = vadd.f32 0.0, %v3785
      %3787 = vmatmul.f32.gmra.mxu0 %v3748
      %v3788 = vpop.f32.mrf.mxu0
      %v3789 = vadd.f32 0.0, %v3788
      %3790 = vmatmul.f32.gmra.mxu0 %v3751
      %v3791 = vpop.f32.mrf.mxu0
      %v3792 = vadd.f32 0.0, %v3791
      %3793 = vdwg.mxu0
      %v3794 = vadd.f32 %v3703, %v3771
      %v3795 = vadd.f32 %v3704, %v3774
      %v3796 = vadd.f32 %v3705, %v3777
      %v3797 = vadd.f32 %v3706, %v3780
      %v3798 = vadd.f32 %v3707, %v3783
      %v3799 = vadd.f32 %v3708, %v3786
      %v3800 = vadd.f32 %v3709, %v3789
      %v3801 = vadd.f32 %v3710, %v3792
      %v3802 = vld [vmem:[%s4] sm:$0x1]
      %v3804 = vperm.slane %v3802, 0
      %v3806 = vadd.f32 %v3794, %v3804
      %v3807 = vadd.f32 %v3795, %v3804
      %v3808 = vadd.f32 %v3796, %v3804
      %v3809 = vadd.f32 %v3797, %v3804
      %v3810 = vadd.f32 %v3798, %v3804
      %v3811 = vadd.f32 %v3799, %v3804
      %v3812 = vadd.f32 %v3800, %v3804
      %v3813 = vadd.f32 %v3801, %v3804
      %s3814 = scalar_lea.vmem %s357, 1 [#allocation2]
      %v3815 = vld [vmem:[%s3814] ss:$2 sm:$0xff]
      %s3816 = scalar_lea.vmem %s357, 49 [#allocation2]
      %v3817 = vld [vmem:[%s3816] ss:$2 sm:$0xff]
      %s3818 = scalar_lea.vmem %s357, 97 [#allocation2]
      %v3819 = vld [vmem:[%s3818] ss:$2 sm:$0xff]
      %s3820 = scalar_lea.vmem %s357, 145 [#allocation2]
      %v3821 = vld [vmem:[%s3820] ss:$2 sm:$0xff]
      %s3822 = scalar_lea.vmem %s357, 193 [#allocation2]
      %v3823 = vld [vmem:[%s3822] ss:$2 sm:$0xff]
      %s3824 = scalar_lea.vmem %s357, 241 [#allocation2]
      %v3825 = vld [vmem:[%s3824] ss:$2 sm:$0xff]
      %s3826 = scalar_lea.vmem %s357, 289 [#allocation2]
      %v3827 = vld [vmem:[%s3826] ss:$2 sm:$0xff]
      %s3828 = scalar_lea.vmem %s357, 337 [#allocation2]
      %v3829 = vld [vmem:[%s3828] ss:$2 sm:$0xff]
      %s3830 = scalar_lea.vmem %s357, 2 [#allocation2]
      %v3831 = vld [vmem:[%s3830] ss:$2 sm:$0xff]
      %s3832 = scalar_lea.vmem %s357, 50 [#allocation2]
      %v3833 = vld [vmem:[%s3832] ss:$2 sm:$0xff]
      %s3834 = scalar_lea.vmem %s357, 98 [#allocation2]
      %v3835 = vld [vmem:[%s3834] ss:$2 sm:$0xff]
      %s3836 = scalar_lea.vmem %s357, 146 [#allocation2]
      %v3837 = vld [vmem:[%s3836] ss:$2 sm:$0xff]
      %s3838 = scalar_lea.vmem %s357, 194 [#allocation2]
      %v3839 = vld [vmem:[%s3838] ss:$2 sm:$0xff]
      %s3840 = scalar_lea.vmem %s357, 242 [#allocation2]
      %v3841 = vld [vmem:[%s3840] ss:$2 sm:$0xff]
      %s3842 = scalar_lea.vmem %s357, 290 [#allocation2]
      %v3843 = vld [vmem:[%s3842] ss:$2 sm:$0xff]
      %s3844 = scalar_lea.vmem %s357, 338 [#allocation2]
      %v3845 = vld [vmem:[%s3844] ss:$2 sm:$0xff]
      %v3846 = vadd.f32 %v3815, %v3831
      %v3847 = vadd.f32 %v3817, %v3833
      %v3848 = vadd.f32 %v3819, %v3835
      %v3849 = vadd.f32 %v3821, %v3837
      %v3850 = vadd.f32 %v3823, %v3839
      %v3851 = vadd.f32 %v3825, %v3841
      %v3852 = vadd.f32 %v3827, %v3843
      %v3853 = vadd.f32 %v3829, %v3845
      %s3854 = scalar_lea.vmem %s1465, 1 [#allocation2]
      %v3855 = vld [vmem:[%s3854] ss:$2 sm:$0xff]
      %s3856 = scalar_lea.vmem %s1465, 49 [#allocation2]
      %v3857 = vld [vmem:[%s3856] ss:$2 sm:$0xff]
      %s3858 = scalar_lea.vmem %s1465, 97 [#allocation2]
      %v3859 = vld [vmem:[%s3858] ss:$2 sm:$0xff]
      %s3860 = scalar_lea.vmem %s1465, 145 [#allocation2]
      %v3861 = vld [vmem:[%s3860] ss:$2 sm:$0xff]
      %s3862 = scalar_lea.vmem %s1465, 193 [#allocation2]
      %v3863 = vld [vmem:[%s3862] ss:$2 sm:$0xff]
      %s3864 = scalar_lea.vmem %s1465, 241 [#allocation2]
      %v3865 = vld [vmem:[%s3864] ss:$2 sm:$0xff]
      %s3866 = scalar_lea.vmem %s1465, 289 [#allocation2]
      %v3867 = vld [vmem:[%s3866] ss:$2 sm:$0xff]
      %s3868 = scalar_lea.vmem %s1465, 337 [#allocation2]
      %v3869 = vld [vmem:[%s3868] ss:$2 sm:$0xff]
      %v3870 = vadd.f32 %v3846, %v3855
      %v3871 = vadd.f32 %v3847, %v3857
      %v3872 = vadd.f32 %v3848, %v3859
      %v3873 = vadd.f32 %v3849, %v3861
      %v3874 = vadd.f32 %v3850, %v3863
      %v3875 = vadd.f32 %v3851, %v3865
      %v3876 = vadd.f32 %v3852, %v3867
      %v3877 = vadd.f32 %v3853, %v3869
      %s3878 = scalar_lea.vmem %s1465, 2 [#allocation2]
      %v3879 = vld [vmem:[%s3878] ss:$2 sm:$0xff]
      %s3880 = scalar_lea.vmem %s1465, 50 [#allocation2]
      %v3881 = vld [vmem:[%s3880] ss:$2 sm:$0xff]
      %s3882 = scalar_lea.vmem %s1465, 98 [#allocation2]
      %v3883 = vld [vmem:[%s3882] ss:$2 sm:$0xff]
      %s3884 = scalar_lea.vmem %s1465, 146 [#allocation2]
      %v3885 = vld [vmem:[%s3884] ss:$2 sm:$0xff]
      %s3886 = scalar_lea.vmem %s1465, 194 [#allocation2]
      %v3887 = vld [vmem:[%s3886] ss:$2 sm:$0xff]
      %s3888 = scalar_lea.vmem %s1465, 242 [#allocation2]
      %v3889 = vld [vmem:[%s3888] ss:$2 sm:$0xff]
      %s3890 = scalar_lea.vmem %s1465, 290 [#allocation2]
      %v3891 = vld [vmem:[%s3890] ss:$2 sm:$0xff]
      %s3892 = scalar_lea.vmem %s1465, 338 [#allocation2]
      %v3893 = vld [vmem:[%s3892] ss:$2 sm:$0xff]
      %v3894 = vadd.f32 %v3870, %v3879
      %v3895 = vadd.f32 %v3871, %v3881
      %v3896 = vadd.f32 %v3872, %v3883
      %v3897 = vadd.f32 %v3873, %v3885
      %v3898 = vadd.f32 %v3874, %v3887
      %v3899 = vadd.f32 %v3875, %v3889
      %v3900 = vadd.f32 %v3876, %v3891
      %v3901 = vadd.f32 %v3877, %v3893
      %v3902 = vmul.f32 %v3894, 0.25
      %v3903 = vmul.f32 %v3895, 0.25
      %v3904 = vmul.f32 %v3896, 0.25
      %v3905 = vmul.f32 %v3897, 0.25
      %v3906 = vmul.f32 %v3898, 0.25
      %v3907 = vmul.f32 %v3899, 0.25
      %v3908 = vmul.f32 %v3900, 0.25
      %v3909 = vmul.f32 %v3901, 0.25
      %v3910 = vld [vmem:[%s5] sm:$0xf]
      %v3911 = vld [vmem:[%s6] sm:$0x1]
      %v3913 = vperm.slane %v3911, 0
      %v3916 = vsel %vm279, %v3902, 0
      %v3919 = vsel %vm279, %v3903, 0
      %v3922 = vsel %vm279, %v3904, 0
      %v3925 = vsel %vm279, %v3905, 0
      %v3928 = vsel %vm279, %v3906, 0
      %v3931 = vsel %vm279, %v3907, 0
      %v3934 = vsel %vm279, %v3908, 0
      %v3937 = vsel %vm279, %v3909, 0
      %v3940 = vsel %vm2183, %v3910, 0
      %3942 = vmatpush.msra.mxu0 0.0
      %3943 = vmatpush.msra.mxu0 0.0
      %3944 = vmatpush.msra.mxu0 0.0
      %3945 = vmatpush.msra.mxu0 0.0
      %3946 = vmatpush.msra.mxu0 0.0
      %3947 = vmatpush.msra.mxu0 0.0
      %3948 = vmatpush.msra.mxu0 0.0
      %3949 = vmatpush.msra.mxu0 0.0
      %3950 = vmatpush.msra.mxu0 0.0
      %3951 = vmatpush.msra.mxu0 0.0
      %3952 = vmatpush.msra.mxu0 0.0
      %3953 = vmatpush.msra.mxu0 0.0
      %3954 = vmatpush.msra.mxu0 0.0
      %3955 = vmatpush.msra.mxu0 0.0
      %3956 = vmatpush.msra.mxu0 0.0
      %3957 = vmatpush.msra.mxu0 %v3940
      %3958 = vmatmul.f32.gmra.mxu0 %v3916
      %v3959 = vpop.f32.mrf.mxu0
      %v3960 = vadd.f32 %v3913, %v3959
      %3961 = vmatmul.f32.gmra.mxu0 %v3919
      %v3962 = vpop.f32.mrf.mxu0
      %v3963 = vadd.f32 %v3913, %v3962
      %3964 = vmatmul.f32.gmra.mxu0 %v3922
      %v3965 = vpop.f32.mrf.mxu0
      %v3966 = vadd.f32 %v3913, %v3965
      %3967 = vmatmul.f32.gmra.mxu0 %v3925
      %v3968 = vpop.f32.mrf.mxu0
      %v3969 = vadd.f32 %v3913, %v3968
      %3970 = vmatmul.f32.gmra.mxu0 %v3928
      %v3971 = vpop.f32.mrf.mxu0
      %v3972 = vadd.f32 %v3913, %v3971
      %3973 = vmatmul.f32.gmra.mxu0 %v3931
      %v3974 = vpop.f32.mrf.mxu0
      %v3975 = vadd.f32 %v3913, %v3974
      %3976 = vmatmul.f32.gmra.mxu0 %v3934
      %v3977 = vpop.f32.mrf.mxu0
      %v3978 = vadd.f32 %v3913, %v3977
      %3979 = vmatmul.f32.gmra.mxu0 %v3937
      %v3980 = vpop.f32.mrf.mxu0
      %v3981 = vadd.f32 %v3913, %v3980
      %3982 = vdwg.mxu0
      %v3983 = vadd.f32 %v3806, %v3960
      %v3984 = vadd.f32 %v3807, %v3963
      %v3985 = vadd.f32 %v3808, %v3966
      %v3986 = vadd.f32 %v3809, %v3969
      %v3987 = vadd.f32 %v3810, %v3972
      %v3988 = vadd.f32 %v3811, %v3975
      %v3989 = vadd.f32 %v3812, %v3978
      %v3990 = vadd.f32 %v3813, %v3981
      %3991 = vst.msk [vmem:[%s278] sm:$0xff] %vm390, %v3983
      %3992 = vst.msk [vmem:[%s278 + $0x8] sm:$0xff] %vm390, %v3984
      %3993 = vst.msk [vmem:[%s278 + $0x10] sm:$0xff] %vm390, %v3985
      %3994 = vst.msk [vmem:[%s278 + $0x18] sm:$0xff] %vm390, %v3986
      %3995 = vst.msk [vmem:[%s278 + $0x20] sm:$0xff] %vm390, %v3987
      %3996 = vst.msk [vmem:[%s278 + $0x28] sm:$0xff] %vm390, %v3988
      %3997 = vst.msk [vmem:[%s278 + $0x30] sm:$0xff] %vm390, %v3989
      %3998 = vst.msk [vmem:[%s278 + $0x38] sm:$0xff] %vm390, %v3990
      %p3999 = scmp.lt.s32.totalorder %s18, 1
      %s4000 = scalar_select %p3999, %s18, 1
      %s4001 = smul.addr %s4000, 8
      %s4002 = smul.addr %s4001, 8
      %s4003 = scalar_lea.vmem %s7, %s4002
      // Predicated region
      $region49: #{tpu_custom_call.1} parent=47 // pred_check
        %p4004 = pneg %p188
      $region50: #{tpu_custom_call.1} parent=47 // pred_check_branch
        %4006 = sbr.rel (%p4004) target = $region52
      $region51: #{tpu_custom_call.1} parent=47 // pred_region
        _
      $region52: #{tpu_custom_call.1} parent=47 // pred_fallthru
        _
    $region48: #{tpu_custom_call.1} parent=5 // pred_fallthru
      _
    %p4007 = scmp.le.s32.totalorder 2, %s13
    // Predicated region
    $region53: #{tpu_custom_call.1} parent=5 // pred_check
      %p4008 = pneg %p4007
    $region54: #{tpu_custom_call.1} parent=5 // pred_check_branch
      %4010 = sbr.rel (%p4008) target = $region56
    $region55: #{tpu_custom_call.1} parent=5 // pred_region
      %s4011 = ssub.s32 %s13, 2
      // Predicated region
      $region57: #{tpu_custom_call.1} parent=55 // pred_check
        %p4012 = pneg %p194
      $region58: #{tpu_custom_call.1} parent=55 // pred_check_branch
        %4014 = sbr.rel (%p4012) target = $region60
      $region59: #{tpu_custom_call.1} parent=55 // pred_region
        %p4015 = scmp.lt.s32.totalorder %s19, 1
        %s4016 = scalar_select %p4015, %s19, 1
        %s4017 = smul.addr %s4016, 8
        %s4018 = smul.addr %s4017, 8
        %s4019 = scalar_lea.vmem %s7, %s4018
      $region60: #{tpu_custom_call.1} parent=55 // pred_fallthru
        _
    $region56: #{tpu_custom_call.1} parent=5 // pred_fallthru
      _
  $region6: #{tpu_custom_call.1} parent=0 // loop_footer
    %s17 = sadd.s32 1, %s13
  $region7: #{tpu_custom_call.1} parent=0 // loop_footer_branch
    %12 = sbr.rel target = $region3
  $region8: #{tpu_custom_call.1} parent=0 // loop_exit
    _

</llo_original>
